<compile_context>
chip_gen: v5e
topology: v5e:2x2
jax: 0.10.0
libtpu: 0.0.40
codegen_flags: <defaults>
</compile_context>

<pallas_src>
import jax
import jax.numpy as jnp
from jax.experimental import pallas as pl
from jax.experimental.pallas import tpu as pltpu

K_HOPS = 3        # DGL TAGConv default k=3
LANE = 128        # TPU lane width
SUB = 8           # TPU sublane width

_VMEM = pl.BlockSpec(memory_space=pltpu.MemorySpace.VMEM)


def _round_up(x, m):
    return ((x + m - 1) // m) * m


def _vmem_capacity_bytes():
    # Per-generation VMEM (v5e/v6e: 128 MiB, v7x: 64 MiB per TensorCore).
    try:
        return int(pltpu.get_tpu_info().vmem_capacity_bytes)
    except Exception:
        return 64 << 20   # conservative fallback (v7x per-TC VMEM)


# ---------------------------------------------------------------------------
# Fused kernel: 5x (TAGConv + ReLU) -> mean_nodes -> Linear
# ---------------------------------------------------------------------------
def _gnn_fused_kernel(adjt_ref, norm_ref, x_ref, meanw_ref,
                      w1_ref, b1_ref, w2_ref, b2_ref, w3_ref, b3_ref,
                      w4_ref, b4_ref, w5_ref, b5_ref,
                      pw_ref, pb_ref, o_ref):
    # adjt_ref : [Np, Np] bf16  zero-padded A^T (0/1 entries, exact in bf16)
    # norm_ref : [Np, 1]  f32   clamp(out_deg,1)^-0.5 (0 on padded rows)
    # x_ref    : [Np, P]  f32   node features, zero-padded to P lanes
    # meanw_ref: [1, Np]  f32   1/N on real rows, 0 on padded rows
    # w*_ref   : [(K+1)*P, P] bf16 hop-stacked weights; b*_ref: [1, P] f32
    # pw_ref   : [P, 1] f32; pb_ref: [1, 1] f32; o_ref: [1, 1] f32
    p = w1_ref.shape[1]
    a = adjt_ref[...]                            # bf16, resident for all layers
    norm = norm_ref[...]                         # f32 [Np, 1]
    h = jnp.nan_to_num(x_ref[...])               # torch.nan_to_num (layer 1 only)

    layer_refs = ((w1_ref, b1_ref), (w2_ref, b2_ref), (w3_ref, b3_ref),
                  (w4_ref, b4_ref), (w5_ref, b5_ref))
    for w_ref, b_ref in layer_refs:
        # Hop 0 contribution; then accumulate per-hop f_k @ W_k (no concat,
        # no [Np,(K+1)P] temporary). bf16 matmul inputs, f32 accumulation.
        f = h                                                       # f32
        acc = jnp.dot(f.astype(jnp.bfloat16), w_ref[0:p, :],
                      preferred_element_type=jnp.float32)
        for k in range(1, K_HOPS + 1):
            # A_hat @ f == diag(norm) @ A^T @ (diag(norm) @ f): the two
            # row-scalings run on the (otherwise idle) VPU instead of
            # materializing A_hat.
            fs = (norm * f).astype(jnp.bfloat16)
            f = norm * jnp.dot(a, fs, preferred_element_type=jnp.float32)
            acc = acc + jnp.dot(f.astype(jnp.bfloat16),
                                w_ref[k * p:(k + 1) * p, :],
                                preferred_element_type=jnp.float32)
        h = jnp.maximum(acc + b_ref[...], 0.0)                      # F.relu

    # dgl.mean_nodes on the MXU: (mask/N) @ h, then prediction head (f32,
    # negligible cost, keeps the readout exact).
    hg = jnp.dot(meanw_ref[...], h, preferred_element_type=jnp.float32)   # [1, P]
    o_ref[...] = (jnp.dot(hg, pw_ref[...], preferred_element_type=jnp.float32)
                  + pb_ref[...])


# ---------------------------------------------------------------------------
# Wrapper
# ---------------------------------------------------------------------------
def gnn_forward(adj, fea, params):
    n, node_dim = fea.shape
    p = params["conv1_b"].shape[1]               # padded feature/hidden width
    n_pad = _round_up(n, LANE)                   # lane-dense propagation matmuls

    adj = adj.astype(jnp.float32)
    # DGL TAGConv norm: out-degree, clamp(min=1), ^-0.5 (applied in-kernel).
    deg = jnp.sum(adj, axis=1)
    norm = jnp.power(jnp.clip(deg, 1.0, None), -0.5)

    # Transposed, zero-padded adjacency in bf16 (exact for 0/1 entries);
    # halves the big DMA and VMEM footprint vs an f32 A_hat.
    adjt = jnp.zeros((n_pad, n_pad), jnp.bfloat16).at[:n, :n].set(
        adj.T.astype(jnp.bfloat16))
    norm_p = jnp.zeros((n_pad, 1), jnp.float32).at[:n, 0].set(norm)

    x = jnp.zeros((n_pad, p), jnp.float32).at[:n, :node_dim].set(
        fea.astype(jnp.float32))
    # mean_nodes weights: divide by the TRUE node count; padded rows masked out.
    meanw = jnp.zeros((1, n_pad), jnp.float32).at[:, :n].set(1.0 / n)

    weight_args = []
    for i in range(1, 6):
        weight_args += [params[f"conv{i}_w"].astype(jnp.bfloat16),   # MXU inputs
                        params[f"conv{i}_b"].astype(jnp.float32)]
    weight_args += [params["pred_w"].astype(jnp.float32),
                    params["pred_b"].astype(jnp.float32)]
    n_in = 4 + len(weight_args)

    operands = [adjt, norm_p, x, meanw] + weight_args
    op_bytes = sum(int(a.size) * a.dtype.itemsize for a in operands) + 4
    # Live in-kernel temporaries: a handful of [Np, P] f32 / bf16 blocks.
    tmp_bytes = 8 * n_pad * p * 4
    flops = (5 * K_HOPS * 2 * n_pad * n_pad * p          # propagation
             + 5 * (K_HOPS + 1) * 2 * n_pad * p * p      # hop transforms
             + 2 * n_pad * p + 2 * p)                    # pooling + head
    vmem_cap = _vmem_capacity_bytes()
    vmem_limit = int(min(max(op_bytes + tmp_bytes + (4 << 20), 16 << 20),
                         vmem_cap - (8 << 20)))

    return pl.pallas_call(
        _gnn_fused_kernel,
        out_shape=jax.ShapeDtypeStruct((1, 1), jnp.float32),
        in_specs=[_VMEM] * n_in,
        out_specs=_VMEM,
        compiler_params=pltpu.CompilerParams(vmem_limit_bytes=vmem_limit),
        cost_estimate=pl.CostEstimate(flops=int(flops), transcendentals=0,
                                      bytes_accessed=int(op_bytes)),
    )(*operands)


# ---------------------------------------------------------------------------
# Pure-JAX f32 reference (same math, no bf16 rounding) for validation.
# ---------------------------------------------------------------------------
def gnn_reference(adj, fea, params):
    n, node_dim = fea.shape
    p = params["conv1_b"].shape[1]
    adj = adj.astype(jnp.float32)
    deg = jnp.sum(adj, axis=1)
    norm = jnp.power(jnp.clip(deg, 1.0, None), -0.5)
    a_hat = norm[:, None] * adj.T * norm[None, :]
    h = jnp.zeros((n, p), jnp.float32).at[:, :node_dim].set(
        jnp.nan_to_num(fea.astype(jnp.float32)))
    for i in range(1, 6):
        w = params[f"conv{i}_w"]
        b = params[f"conv{i}_b"]
        feats, f = [h], h
        for _ in range(K_HOPS):
            f = a_hat @ f
            feats.append(f)
        h = jnp.maximum(jnp.concatenate(feats, axis=-1) @ w + b, 0.0)
    hg = jnp.mean(h, axis=0, keepdims=True)
    return hg @ params["pred_w"] + params["pred_b"]


# ---------------------------------------------------------------------------
# Deterministic parameter init (synthetic; mirrors module __init__ shapes,
# stored pre-stacked and lane-padded so no per-forward reshaping is needed).
# ---------------------------------------------------------------------------
def init_params(key, node_dim, hidden_dim):
    p = _round_up(max(node_dim, hidden_dim), LANE)
    params = {}
    dims_in = [node_dim, hidden_dim, hidden_dim, hidden_dim, hidden_dim]
    for i, din in enumerate(dims_in, start=1):
        key, *wkeys = jax.random.split(key, K_HOPS + 2)
        # TAGConv's internal Linear((K+1)*din, hidden), hop-stacked + zero-padded.
        w = jnp.zeros(((K_HOPS + 1) * p, p), dtype=jnp.float32)
        for k, wk in enumerate(wkeys):
            blk = 0.1 * jax.random.normal(wk, (din, hidden_dim),
                                          dtype=jnp.float32)
            w = w.at[k * p:k * p + din, :hidden_dim].set(blk)
        params[f"conv{i}_w"] = w
        params[f"conv{i}_b"] = jnp.zeros((1, p), dtype=jnp.float32)
    key, wk = jax.random.split(key)
    pw = jnp.zeros((p, 1), dtype=jnp.float32)
    pw = pw.at[:hidden_dim, :].set(
        0.1 * jax.random.normal(wk, (hidden_dim, 1), dtype=jnp.float32))
    params["pred_w"] = pw
    params["pred_b"] = jnp.zeros((1, 1), dtype=jnp.float32)
    return params


# ---------------------------------------------------------------------------
if __name__ == "__main__":
    N, NODE_DIM, HIDDEN = 8, 4, 32

    key = jax.random.PRNGKey(0)
    key, fkey = jax.random.split(key)

    # Node features with a NaN (exercises the nan_to_num path).
    fea = jax.random.normal(fkey, (N, NODE_DIM), dtype=jnp.float32)
    fea = fea.at[0, 1].set(jnp.nan)

    # Simple undirected ring graph, dense adjacency.
    idx = jnp.arange(N)
    adj = jnp.zeros((N, N), dtype=jnp.float32)
    adj = adj.at[idx, (idx + 1) % N].set(1.0)
    adj = adj.at[idx, (idx - 1) % N].set(1.0)

    params = init_params(key, NODE_DIM, HIDDEN)

    out = gnn_forward(adj, fea, params)
    jax.block_until_ready(out)
    ref = gnn_reference(adj, fea, params)

    assert out.shape == (1, 1) and out.dtype == jnp.float32
    assert bool(jnp.all(jnp.isfinite(out)))
    # bf16 matmul inputs / f32 accumulation vs pure-f32 reference.
    assert bool(jnp.all(jnp.abs(out - ref) <= 1e-2 + 0.1 * jnp.abs(ref))), (out, ref)
    print("KERNEL_OK")
</pallas_src>

<mosaic_0001>
module attributes {stable_mosaic.version = 11 : i64} {
  func.func @_gnn_fused_kernel(%arg0: memref<128x128xbf16, #tpu.memory_space<vmem>>, %arg1: memref<128x1xf32, #tpu.memory_space<vmem>>, %arg2: memref<128x128xf32, #tpu.memory_space<vmem>>, %arg3: memref<1x128xf32, #tpu.memory_space<vmem>>, %arg4: memref<512x128xbf16, #tpu.memory_space<vmem>>, %arg5: memref<1x128xf32, #tpu.memory_space<vmem>>, %arg6: memref<512x128xbf16, #tpu.memory_space<vmem>>, %arg7: memref<1x128xf32, #tpu.memory_space<vmem>>, %arg8: memref<512x128xbf16, #tpu.memory_space<vmem>>, %arg9: memref<1x128xf32, #tpu.memory_space<vmem>>, %arg10: memref<512x128xbf16, #tpu.memory_space<vmem>>, %arg11: memref<1x128xf32, #tpu.memory_space<vmem>>, %arg12: memref<512x128xbf16, #tpu.memory_space<vmem>>, %arg13: memref<1x128xf32, #tpu.memory_space<vmem>>, %arg14: memref<128x1xf32, #tpu.memory_space<vmem>>, %arg15: memref<1x1xf32, #tpu.memory_space<vmem>>, %arg16: memref<1x1xf32, #tpu.memory_space<vmem>>) attributes {dimension_semantics = [], scalar_prefetch = 0 : i64, scratch_operands = 0 : i64, tpu.core_type = #tpu.core_type<tc>} {
    %c0 = arith.constant 0 : index
    %c0_0 = arith.constant 0 : index
    %0 = vector.load %arg0[%c0, %c0_0] : memref<128x128xbf16, #tpu.memory_space<vmem>>, vector<128x128xbf16>
    %c0_1 = arith.constant 0 : index
    %c0_2 = arith.constant 0 : index
    %1 = vector.load %arg1[%c0_1, %c0_2] : memref<128x1xf32, #tpu.memory_space<vmem>>, vector<128x1xf32>
    %c0_3 = arith.constant 0 : index
    %c0_4 = arith.constant 0 : index
    %2 = vector.load %arg2[%c0_3, %c0_4] : memref<128x128xf32, #tpu.memory_space<vmem>>, vector<128x128xf32>
    %3 = arith.cmpf one, %2, %2 : vector<128x128xf32>
    %cst = arith.constant 0.000000e+00 : f32
    %4 = vector.broadcast %cst : f32 to vector<128x128xf32>
    %5 = arith.select %3, %4, %2 : vector<128x128xi1>, vector<128x128xf32>
    %cst_5 = arith.constant 0x7F800000 : f32
    %6 = vector.broadcast %cst_5 : f32 to vector<128x128xf32>
    %7 = arith.cmpf oeq, %5, %6 : vector<128x128xf32>
    %cst_6 = arith.constant 3.40282347E+38 : f32
    %8 = vector.broadcast %cst_6 : f32 to vector<128x128xf32>
    %9 = arith.select %7, %8, %5 : vector<128x128xi1>, vector<128x128xf32>
    %cst_7 = arith.constant 0xFF800000 : f32
    %10 = vector.broadcast %cst_7 : f32 to vector<128x128xf32>
    %11 = arith.cmpf oeq, %9, %10 : vector<128x128xf32>
    %cst_8 = arith.constant -3.40282347E+38 : f32
    %12 = vector.broadcast %cst_8 : f32 to vector<128x128xf32>
    %13 = arith.select %11, %12, %9 : vector<128x128xi1>, vector<128x128xf32>
    %14 = arith.truncf %13 : vector<128x128xf32> to vector<128x128xbf16>
    %c0_9 = arith.constant 0 : index
    %c0_10 = arith.constant 0 : index
    %15 = vector.load %arg4[%c0_9, %c0_10] : memref<512x128xbf16, #tpu.memory_space<vmem>>, vector<128x128xbf16>
    %cst_11 = arith.constant dense<0.000000e+00> : vector<128x128xf32>
    %16 = tpu.matmul %14, %15, %cst_11 {dimension_numbers = #tpu.dot_dimension_numbers<[1], [0], [0], [1], [0, 0, 1, 1], [], []>} : vector<128x128xbf16>, vector<128x128xbf16>, vector<128x128xf32> -> vector<128x128xf32>
    %17 = vector.broadcast %1 : vector<128x1xf32> to vector<128x128xf32>
    %18 = arith.mulf %17, %13 : vector<128x128xf32>
    %19 = arith.truncf %18 : vector<128x128xf32> to vector<128x128xbf16>
    %cst_12 = arith.constant dense<0.000000e+00> : vector<128x128xf32>
    %20 = tpu.matmul %0, %19, %cst_12 {dimension_numbers = #tpu.dot_dimension_numbers<[1], [0], [0], [1], [0, 0, 1, 1], [], []>} : vector<128x128xbf16>, vector<128x128xbf16>, vector<128x128xf32> -> vector<128x128xf32>
    %21 = vector.broadcast %1 : vector<128x1xf32> to vector<128x128xf32>
    %22 = arith.mulf %21, %20 : vector<128x128xf32>
    %23 = arith.truncf %22 : vector<128x128xf32> to vector<128x128xbf16>
    %c128 = arith.constant 128 : index
    %c0_13 = arith.constant 0 : index
    %24 = vector.load %arg4[%c128, %c0_13] : memref<512x128xbf16, #tpu.memory_space<vmem>>, vector<128x128xbf16>
    %cst_14 = arith.constant dense<0.000000e+00> : vector<128x128xf32>
    %25 = tpu.matmul %23, %24, %cst_14 {dimension_numbers = #tpu.dot_dimension_numbers<[1], [0], [0], [1], [0, 0, 1, 1], [], []>} : vector<128x128xbf16>, vector<128x128xbf16>, vector<128x128xf32> -> vector<128x128xf32>
    %26 = arith.addf %16, %25 : vector<128x128xf32>
    %27 = vector.broadcast %1 : vector<128x1xf32> to vector<128x128xf32>
    %28 = arith.mulf %27, %22 : vector<128x128xf32>
    %29 = arith.truncf %28 : vector<128x128xf32> to vector<128x128xbf16>
    %cst_15 = arith.constant dense<0.000000e+00> : vector<128x128xf32>
    %30 = tpu.matmul %0, %29, %cst_15 {dimension_numbers = #tpu.dot_dimension_numbers<[1], [0], [0], [1], [0, 0, 1, 1], [], []>} : vector<128x128xbf16>, vector<128x128xbf16>, vector<128x128xf32> -> vector<128x128xf32>
    %31 = vector.broadcast %1 : vector<128x1xf32> to vector<128x128xf32>
    %32 = arith.mulf %31, %30 : vector<128x128xf32>
    %33 = arith.truncf %32 : vector<128x128xf32> to vector<128x128xbf16>
    %c256 = arith.constant 256 : index
    %c0_16 = arith.constant 0 : index
    %34 = vector.load %arg4[%c256, %c0_16] : memref<512x128xbf16, #tpu.memory_space<vmem>>, vector<128x128xbf16>
    %cst_17 = arith.constant dense<0.000000e+00> : vector<128x128xf32>
    %35 = tpu.matmul %33, %34, %cst_17 {dimension_numbers = #tpu.dot_dimension_numbers<[1], [0], [0], [1], [0, 0, 1, 1], [], []>} : vector<128x128xbf16>, vector<128x128xbf16>, vector<128x128xf32> -> vector<128x128xf32>
    %36 = arith.addf %26, %35 : vector<128x128xf32>
    %37 = vector.broadcast %1 : vector<128x1xf32> to vector<128x128xf32>
    %38 = arith.mulf %37, %32 : vector<128x128xf32>
    %39 = arith.truncf %38 : vector<128x128xf32> to vector<128x128xbf16>
    %cst_18 = arith.constant dense<0.000000e+00> : vector<128x128xf32>
    %40 = tpu.matmul %0, %39, %cst_18 {dimension_numbers = #tpu.dot_dimension_numbers<[1], [0], [0], [1], [0, 0, 1, 1], [], []>} : vector<128x128xbf16>, vector<128x128xbf16>, vector<128x128xf32> -> vector<128x128xf32>
    %41 = vector.broadcast %1 : vector<128x1xf32> to vector<128x128xf32>
    %42 = arith.mulf %41, %40 : vector<128x128xf32>
    %43 = arith.truncf %42 : vector<128x128xf32> to vector<128x128xbf16>
    %c384 = arith.constant 384 : index
    %c0_19 = arith.constant 0 : index
    %44 = vector.load %arg4[%c384, %c0_19] : memref<512x128xbf16, #tpu.memory_space<vmem>>, vector<128x128xbf16>
    %cst_20 = arith.constant dense<0.000000e+00> : vector<128x128xf32>
    %45 = tpu.matmul %43, %44, %cst_20 {dimension_numbers = #tpu.dot_dimension_numbers<[1], [0], [0], [1], [0, 0, 1, 1], [], []>} : vector<128x128xbf16>, vector<128x128xbf16>, vector<128x128xf32> -> vector<128x128xf32>
    %46 = arith.addf %36, %45 : vector<128x128xf32>
    %c0_21 = arith.constant 0 : index
    %c0_22 = arith.constant 0 : index
    %47 = vector.load %arg5[%c0_21, %c0_22] : memref<1x128xf32, #tpu.memory_space<vmem>>, vector<1x128xf32>
    %48 = vector.broadcast %47 : vector<1x128xf32> to vector<128x128xf32>
    %49 = arith.addf %46, %48 : vector<128x128xf32>
    %cst_23 = arith.constant 0.000000e+00 : f32
    %50 = vector.broadcast %cst_23 : f32 to vector<128x128xf32>
    %51 = arith.maximumf %49, %50 : vector<128x128xf32>
    %52 = arith.truncf %51 : vector<128x128xf32> to vector<128x128xbf16>
    %c0_24 = arith.constant 0 : index
    %c0_25 = arith.constant 0 : index
    %53 = vector.load %arg6[%c0_24, %c0_25] : memref<512x128xbf16, #tpu.memory_space<vmem>>, vector<128x128xbf16>
    %cst_26 = arith.constant dense<0.000000e+00> : vector<128x128xf32>
    %54 = tpu.matmul %52, %53, %cst_26 {dimension_numbers = #tpu.dot_dimension_numbers<[1], [0], [0], [1], [0, 0, 1, 1], [], []>} : vector<128x128xbf16>, vector<128x128xbf16>, vector<128x128xf32> -> vector<128x128xf32>
    %55 = vector.broadcast %1 : vector<128x1xf32> to vector<128x128xf32>
    %56 = arith.mulf %55, %51 : vector<128x128xf32>
    %57 = arith.truncf %56 : vector<128x128xf32> to vector<128x128xbf16>
    %cst_27 = arith.constant dense<0.000000e+00> : vector<128x128xf32>
    %58 = tpu.matmul %0, %57, %cst_27 {dimension_numbers = #tpu.dot_dimension_numbers<[1], [0], [0], [1], [0, 0, 1, 1], [], []>} : vector<128x128xbf16>, vector<128x128xbf16>, vector<128x128xf32> -> vector<128x128xf32>
    %59 = vector.broadcast %1 : vector<128x1xf32> to vector<128x128xf32>
    %60 = arith.mulf %59, %58 : vector<128x128xf32>
    %61 = arith.truncf %60 : vector<128x128xf32> to vector<128x128xbf16>
    %c128_28 = arith.constant 128 : index
    %c0_29 = arith.constant 0 : index
    %62 = vector.load %arg6[%c128_28, %c0_29] : memref<512x128xbf16, #tpu.memory_space<vmem>>, vector<128x128xbf16>
    %cst_30 = arith.constant dense<0.000000e+00> : vector<128x128xf32>
    %63 = tpu.matmul %61, %62, %cst_30 {dimension_numbers = #tpu.dot_dimension_numbers<[1], [0], [0], [1], [0, 0, 1, 1], [], []>} : vector<128x128xbf16>, vector<128x128xbf16>, vector<128x128xf32> -> vector<128x128xf32>
    %64 = arith.addf %54, %63 : vector<128x128xf32>
    %65 = vector.broadcast %1 : vector<128x1xf32> to vector<128x128xf32>
    %66 = arith.mulf %65, %60 : vector<128x128xf32>
    %67 = arith.truncf %66 : vector<128x128xf32> to vector<128x128xbf16>
    %cst_31 = arith.constant dense<0.000000e+00> : vector<128x128xf32>
    %68 = tpu.matmul %0, %67, %cst_31 {dimension_numbers = #tpu.dot_dimension_numbers<[1], [0], [0], [1], [0, 0, 1, 1], [], []>} : vector<128x128xbf16>, vector<128x128xbf16>, vector<128x128xf32> -> vector<128x128xf32>
    %69 = vector.broadcast %1 : vector<128x1xf32> to vector<128x128xf32>
    %70 = arith.mulf %69, %68 : vector<128x128xf32>
    %71 = arith.truncf %70 : vector<128x128xf32> to vector<128x128xbf16>
    %c256_32 = arith.constant 256 : index
    %c0_33 = arith.constant 0 : index
    %72 = vector.load %arg6[%c256_32, %c0_33] : memref<512x128xbf16, #tpu.memory_space<vmem>>, vector<128x128xbf16>
    %cst_34 = arith.constant dense<0.000000e+00> : vector<128x128xf32>
    %73 = tpu.matmul %71, %72, %cst_34 {dimension_numbers = #tpu.dot_dimension_numbers<[1], [0], [0], [1], [0, 0, 1, 1], [], []>} : vector<128x128xbf16>, vector<128x128xbf16>, vector<128x128xf32> -> vector<128x128xf32>
    %74 = arith.addf %64, %73 : vector<128x128xf32>
    %75 = vector.broadcast %1 : vector<128x1xf32> to vector<128x128xf32>
    %76 = arith.mulf %75, %70 : vector<128x128xf32>
    %77 = arith.truncf %76 : vector<128x128xf32> to vector<128x128xbf16>
    %cst_35 = arith.constant dense<0.000000e+00> : vector<128x128xf32>
    %78 = tpu.matmul %0, %77, %cst_35 {dimension_numbers = #tpu.dot_dimension_numbers<[1], [0], [0], [1], [0, 0, 1, 1], [], []>} : vector<128x128xbf16>, vector<128x128xbf16>, vector<128x128xf32> -> vector<128x128xf32>
    %79 = vector.broadcast %1 : vector<128x1xf32> to vector<128x128xf32>
    %80 = arith.mulf %79, %78 : vector<128x128xf32>
    %81 = arith.truncf %80 : vector<128x128xf32> to vector<128x128xbf16>
    %c384_36 = arith.constant 384 : index
    %c0_37 = arith.constant 0 : index
    %82 = vector.load %arg6[%c384_36, %c0_37] : memref<512x128xbf16, #tpu.memory_space<vmem>>, vector<128x128xbf16>
    %cst_38 = arith.constant dense<0.000000e+00> : vector<128x128xf32>
    %83 = tpu.matmul %81, %82, %cst_38 {dimension_numbers = #tpu.dot_dimension_numbers<[1], [0], [0], [1], [0, 0, 1, 1], [], []>} : vector<128x128xbf16>, vector<128x128xbf16>, vector<128x128xf32> -> vector<128x128xf32>
    %84 = arith.addf %74, %83 : vector<128x128xf32>
    %c0_39 = arith.constant 0 : index
    %c0_40 = arith.constant 0 : index
    %85 = vector.load %arg7[%c0_39, %c0_40] : memref<1x128xf32, #tpu.memory_space<vmem>>, vector<1x128xf32>
    %86 = vector.broadcast %85 : vector<1x128xf32> to vector<128x128xf32>
    %87 = arith.addf %84, %86 : vector<128x128xf32>
    %cst_41 = arith.constant 0.000000e+00 : f32
    %88 = vector.broadcast %cst_41 : f32 to vector<128x128xf32>
    %89 = arith.maximumf %87, %88 : vector<128x128xf32>
    %90 = arith.truncf %89 : vector<128x128xf32> to vector<128x128xbf16>
    %c0_42 = arith.constant 0 : index
    %c0_43 = arith.constant 0 : index
    %91 = vector.load %arg8[%c0_42, %c0_43] : memref<512x128xbf16, #tpu.memory_space<vmem>>, vector<128x128xbf16>
    %cst_44 = arith.constant dense<0.000000e+00> : vector<128x128xf32>
    %92 = tpu.matmul %90, %91, %cst_44 {dimension_numbers = #tpu.dot_dimension_numbers<[1], [0], [0], [1], [0, 0, 1, 1], [], []>} : vector<128x128xbf16>, vector<128x128xbf16>, vector<128x128xf32> -> vector<128x128xf32>
    %93 = vector.broadcast %1 : vector<128x1xf32> to vector<128x128xf32>
    %94 = arith.mulf %93, %89 : vector<128x128xf32>
    %95 = arith.truncf %94 : vector<128x128xf32> to vector<128x128xbf16>
    %cst_45 = arith.constant dense<0.000000e+00> : vector<128x128xf32>
    %96 = tpu.matmul %0, %95, %cst_45 {dimension_numbers = #tpu.dot_dimension_numbers<[1], [0], [0], [1], [0, 0, 1, 1], [], []>} : vector<128x128xbf16>, vector<128x128xbf16>, vector<128x128xf32> -> vector<128x128xf32>
    %97 = vector.broadcast %1 : vector<128x1xf32> to vector<128x128xf32>
    %98 = arith.mulf %97, %96 : vector<128x128xf32>
    %99 = arith.truncf %98 : vector<128x128xf32> to vector<128x128xbf16>
    %c128_46 = arith.constant 128 : index
    %c0_47 = arith.constant 0 : index
    %100 = vector.load %arg8[%c128_46, %c0_47] : memref<512x128xbf16, #tpu.memory_space<vmem>>, vector<128x128xbf16>
    %cst_48 = arith.constant dense<0.000000e+00> : vector<128x128xf32>
    %101 = tpu.matmul %99, %100, %cst_48 {dimension_numbers = #tpu.dot_dimension_numbers<[1], [0], [0], [1], [0, 0, 1, 1], [], []>} : vector<128x128xbf16>, vector<128x128xbf16>, vector<128x128xf32> -> vector<128x128xf32>
    %102 = arith.addf %92, %101 : vector<128x128xf32>
    %103 = vector.broadcast %1 : vector<128x1xf32> to vector<128x128xf32>
    %104 = arith.mulf %103, %98 : vector<128x128xf32>
    %105 = arith.truncf %104 : vector<128x128xf32> to vector<128x128xbf16>
    %cst_49 = arith.constant dense<0.000000e+00> : vector<128x128xf32>
    %106 = tpu.matmul %0, %105, %cst_49 {dimension_numbers = #tpu.dot_dimension_numbers<[1], [0], [0], [1], [0, 0, 1, 1], [], []>} : vector<128x128xbf16>, vector<128x128xbf16>, vector<128x128xf32> -> vector<128x128xf32>
    %107 = vector.broadcast %1 : vector<128x1xf32> to vector<128x128xf32>
    %108 = arith.mulf %107, %106 : vector<128x128xf32>
    %109 = arith.truncf %108 : vector<128x128xf32> to vector<128x128xbf16>
    %c256_50 = arith.constant 256 : index
    %c0_51 = arith.constant 0 : index
    %110 = vector.load %arg8[%c256_50, %c0_51] : memref<512x128xbf16, #tpu.memory_space<vmem>>, vector<128x128xbf16>
    %cst_52 = arith.constant dense<0.000000e+00> : vector<128x128xf32>
    %111 = tpu.matmul %109, %110, %cst_52 {dimension_numbers = #tpu.dot_dimension_numbers<[1], [0], [0], [1], [0, 0, 1, 1], [], []>} : vector<128x128xbf16>, vector<128x128xbf16>, vector<128x128xf32> -> vector<128x128xf32>
    %112 = arith.addf %102, %111 : vector<128x128xf32>
    %113 = vector.broadcast %1 : vector<128x1xf32> to vector<128x128xf32>
    %114 = arith.mulf %113, %108 : vector<128x128xf32>
    %115 = arith.truncf %114 : vector<128x128xf32> to vector<128x128xbf16>
    %cst_53 = arith.constant dense<0.000000e+00> : vector<128x128xf32>
    %116 = tpu.matmul %0, %115, %cst_53 {dimension_numbers = #tpu.dot_dimension_numbers<[1], [0], [0], [1], [0, 0, 1, 1], [], []>} : vector<128x128xbf16>, vector<128x128xbf16>, vector<128x128xf32> -> vector<128x128xf32>
    %117 = vector.broadcast %1 : vector<128x1xf32> to vector<128x128xf32>
    %118 = arith.mulf %117, %116 : vector<128x128xf32>
    %119 = arith.truncf %118 : vector<128x128xf32> to vector<128x128xbf16>
    %c384_54 = arith.constant 384 : index
    %c0_55 = arith.constant 0 : index
    %120 = vector.load %arg8[%c384_54, %c0_55] : memref<512x128xbf16, #tpu.memory_space<vmem>>, vector<128x128xbf16>
    %cst_56 = arith.constant dense<0.000000e+00> : vector<128x128xf32>
    %121 = tpu.matmul %119, %120, %cst_56 {dimension_numbers = #tpu.dot_dimension_numbers<[1], [0], [0], [1], [0, 0, 1, 1], [], []>} : vector<128x128xbf16>, vector<128x128xbf16>, vector<128x128xf32> -> vector<128x128xf32>
    %122 = arith.addf %112, %121 : vector<128x128xf32>
    %c0_57 = arith.constant 0 : index
    %c0_58 = arith.constant 0 : index
    %123 = vector.load %arg9[%c0_57, %c0_58] : memref<1x128xf32, #tpu.memory_space<vmem>>, vector<1x128xf32>
    %124 = vector.broadcast %123 : vector<1x128xf32> to vector<128x128xf32>
    %125 = arith.addf %122, %124 : vector<128x128xf32>
    %cst_59 = arith.constant 0.000000e+00 : f32
    %126 = vector.broadcast %cst_59 : f32 to vector<128x128xf32>
    %127 = arith.maximumf %125, %126 : vector<128x128xf32>
    %128 = arith.truncf %127 : vector<128x128xf32> to vector<128x128xbf16>
    %c0_60 = arith.constant 0 : index
    %c0_61 = arith.constant 0 : index
    %129 = vector.load %arg10[%c0_60, %c0_61] : memref<512x128xbf16, #tpu.memory_space<vmem>>, vector<128x128xbf16>
    %cst_62 = arith.constant dense<0.000000e+00> : vector<128x128xf32>
    %130 = tpu.matmul %128, %129, %cst_62 {dimension_numbers = #tpu.dot_dimension_numbers<[1], [0], [0], [1], [0, 0, 1, 1], [], []>} : vector<128x128xbf16>, vector<128x128xbf16>, vector<128x128xf32> -> vector<128x128xf32>
    %131 = vector.broadcast %1 : vector<128x1xf32> to vector<128x128xf32>
    %132 = arith.mulf %131, %127 : vector<128x128xf32>
    %133 = arith.truncf %132 : vector<128x128xf32> to vector<128x128xbf16>
    %cst_63 = arith.constant dense<0.000000e+00> : vector<128x128xf32>
    %134 = tpu.matmul %0, %133, %cst_63 {dimension_numbers = #tpu.dot_dimension_numbers<[1], [0], [0], [1], [0, 0, 1, 1], [], []>} : vector<128x128xbf16>, vector<128x128xbf16>, vector<128x128xf32> -> vector<128x128xf32>
    %135 = vector.broadcast %1 : vector<128x1xf32> to vector<128x128xf32>
    %136 = arith.mulf %135, %134 : vector<128x128xf32>
    %137 = arith.truncf %136 : vector<128x128xf32> to vector<128x128xbf16>
    %c128_64 = arith.constant 128 : index
    %c0_65 = arith.constant 0 : index
    %138 = vector.load %arg10[%c128_64, %c0_65] : memref<512x128xbf16, #tpu.memory_space<vmem>>, vector<128x128xbf16>
    %cst_66 = arith.constant dense<0.000000e+00> : vector<128x128xf32>
    %139 = tpu.matmul %137, %138, %cst_66 {dimension_numbers = #tpu.dot_dimension_numbers<[1], [0], [0], [1], [0, 0, 1, 1], [], []>} : vector<128x128xbf16>, vector<128x128xbf16>, vector<128x128xf32> -> vector<128x128xf32>
    %140 = arith.addf %130, %139 : vector<128x128xf32>
    %141 = vector.broadcast %1 : vector<128x1xf32> to vector<128x128xf32>
    %142 = arith.mulf %141, %136 : vector<128x128xf32>
    %143 = arith.truncf %142 : vector<128x128xf32> to vector<128x128xbf16>
    %cst_67 = arith.constant dense<0.000000e+00> : vector<128x128xf32>
    %144 = tpu.matmul %0, %143, %cst_67 {dimension_numbers = #tpu.dot_dimension_numbers<[1], [0], [0], [1], [0, 0, 1, 1], [], []>} : vector<128x128xbf16>, vector<128x128xbf16>, vector<128x128xf32> -> vector<128x128xf32>
    %145 = vector.broadcast %1 : vector<128x1xf32> to vector<128x128xf32>
    %146 = arith.mulf %145, %144 : vector<128x128xf32>
    %147 = arith.truncf %146 : vector<128x128xf32> to vector<128x128xbf16>
    %c256_68 = arith.constant 256 : index
    %c0_69 = arith.constant 0 : index
    %148 = vector.load %arg10[%c256_68, %c0_69] : memref<512x128xbf16, #tpu.memory_space<vmem>>, vector<128x128xbf16>
    %cst_70 = arith.constant dense<0.000000e+00> : vector<128x128xf32>
    %149 = tpu.matmul %147, %148, %cst_70 {dimension_numbers = #tpu.dot_dimension_numbers<[1], [0], [0], [1], [0, 0, 1, 1], [], []>} : vector<128x128xbf16>, vector<128x128xbf16>, vector<128x128xf32> -> vector<128x128xf32>
    %150 = arith.addf %140, %149 : vector<128x128xf32>
    %151 = vector.broadcast %1 : vector<128x1xf32> to vector<128x128xf32>
    %152 = arith.mulf %151, %146 : vector<128x128xf32>
    %153 = arith.truncf %152 : vector<128x128xf32> to vector<128x128xbf16>
    %cst_71 = arith.constant dense<0.000000e+00> : vector<128x128xf32>
    %154 = tpu.matmul %0, %153, %cst_71 {dimension_numbers = #tpu.dot_dimension_numbers<[1], [0], [0], [1], [0, 0, 1, 1], [], []>} : vector<128x128xbf16>, vector<128x128xbf16>, vector<128x128xf32> -> vector<128x128xf32>
    %155 = vector.broadcast %1 : vector<128x1xf32> to vector<128x128xf32>
    %156 = arith.mulf %155, %154 : vector<128x128xf32>
    %157 = arith.truncf %156 : vector<128x128xf32> to vector<128x128xbf16>
    %c384_72 = arith.constant 384 : index
    %c0_73 = arith.constant 0 : index
    %158 = vector.load %arg10[%c384_72, %c0_73] : memref<512x128xbf16, #tpu.memory_space<vmem>>, vector<128x128xbf16>
    %cst_74 = arith.constant dense<0.000000e+00> : vector<128x128xf32>
    %159 = tpu.matmul %157, %158, %cst_74 {dimension_numbers = #tpu.dot_dimension_numbers<[1], [0], [0], [1], [0, 0, 1, 1], [], []>} : vector<128x128xbf16>, vector<128x128xbf16>, vector<128x128xf32> -> vector<128x128xf32>
    %160 = arith.addf %150, %159 : vector<128x128xf32>
    %c0_75 = arith.constant 0 : index
    %c0_76 = arith.constant 0 : index
    %161 = vector.load %arg11[%c0_75, %c0_76] : memref<1x128xf32, #tpu.memory_space<vmem>>, vector<1x128xf32>
    %162 = vector.broadcast %161 : vector<1x128xf32> to vector<128x128xf32>
    %163 = arith.addf %160, %162 : vector<128x128xf32>
    %cst_77 = arith.constant 0.000000e+00 : f32
    %164 = vector.broadcast %cst_77 : f32 to vector<128x128xf32>
    %165 = arith.maximumf %163, %164 : vector<128x128xf32>
    %166 = arith.truncf %165 : vector<128x128xf32> to vector<128x128xbf16>
    %c0_78 = arith.constant 0 : index
    %c0_79 = arith.constant 0 : index
    %167 = vector.load %arg12[%c0_78, %c0_79] : memref<512x128xbf16, #tpu.memory_space<vmem>>, vector<128x128xbf16>
    %cst_80 = arith.constant dense<0.000000e+00> : vector<128x128xf32>
    %168 = tpu.matmul %166, %167, %cst_80 {dimension_numbers = #tpu.dot_dimension_numbers<[1], [0], [0], [1], [0, 0, 1, 1], [], []>} : vector<128x128xbf16>, vector<128x128xbf16>, vector<128x128xf32> -> vector<128x128xf32>
    %169 = vector.broadcast %1 : vector<128x1xf32> to vector<128x128xf32>
    %170 = arith.mulf %169, %165 : vector<128x128xf32>
    %171 = arith.truncf %170 : vector<128x128xf32> to vector<128x128xbf16>
    %cst_81 = arith.constant dense<0.000000e+00> : vector<128x128xf32>
    %172 = tpu.matmul %0, %171, %cst_81 {dimension_numbers = #tpu.dot_dimension_numbers<[1], [0], [0], [1], [0, 0, 1, 1], [], []>} : vector<128x128xbf16>, vector<128x128xbf16>, vector<128x128xf32> -> vector<128x128xf32>
    %173 = vector.broadcast %1 : vector<128x1xf32> to vector<128x128xf32>
    %174 = arith.mulf %173, %172 : vector<128x128xf32>
    %175 = arith.truncf %174 : vector<128x128xf32> to vector<128x128xbf16>
    %c128_82 = arith.constant 128 : index
    %c0_83 = arith.constant 0 : index
    %176 = vector.load %arg12[%c128_82, %c0_83] : memref<512x128xbf16, #tpu.memory_space<vmem>>, vector<128x128xbf16>
    %cst_84 = arith.constant dense<0.000000e+00> : vector<128x128xf32>
    %177 = tpu.matmul %175, %176, %cst_84 {dimension_numbers = #tpu.dot_dimension_numbers<[1], [0], [0], [1], [0, 0, 1, 1], [], []>} : vector<128x128xbf16>, vector<128x128xbf16>, vector<128x128xf32> -> vector<128x128xf32>
    %178 = arith.addf %168, %177 : vector<128x128xf32>
    %179 = vector.broadcast %1 : vector<128x1xf32> to vector<128x128xf32>
    %180 = arith.mulf %179, %174 : vector<128x128xf32>
    %181 = arith.truncf %180 : vector<128x128xf32> to vector<128x128xbf16>
    %cst_85 = arith.constant dense<0.000000e+00> : vector<128x128xf32>
    %182 = tpu.matmul %0, %181, %cst_85 {dimension_numbers = #tpu.dot_dimension_numbers<[1], [0], [0], [1], [0, 0, 1, 1], [], []>} : vector<128x128xbf16>, vector<128x128xbf16>, vector<128x128xf32> -> vector<128x128xf32>
    %183 = vector.broadcast %1 : vector<128x1xf32> to vector<128x128xf32>
    %184 = arith.mulf %183, %182 : vector<128x128xf32>
    %185 = arith.truncf %184 : vector<128x128xf32> to vector<128x128xbf16>
    %c256_86 = arith.constant 256 : index
    %c0_87 = arith.constant 0 : index
    %186 = vector.load %arg12[%c256_86, %c0_87] : memref<512x128xbf16, #tpu.memory_space<vmem>>, vector<128x128xbf16>
    %cst_88 = arith.constant dense<0.000000e+00> : vector<128x128xf32>
    %187 = tpu.matmul %185, %186, %cst_88 {dimension_numbers = #tpu.dot_dimension_numbers<[1], [0], [0], [1], [0, 0, 1, 1], [], []>} : vector<128x128xbf16>, vector<128x128xbf16>, vector<128x128xf32> -> vector<128x128xf32>
    %188 = arith.addf %178, %187 : vector<128x128xf32>
    %189 = vector.broadcast %1 : vector<128x1xf32> to vector<128x128xf32>
    %190 = arith.mulf %189, %184 : vector<128x128xf32>
    %191 = arith.truncf %190 : vector<128x128xf32> to vector<128x128xbf16>
    %cst_89 = arith.constant dense<0.000000e+00> : vector<128x128xf32>
    %192 = tpu.matmul %0, %191, %cst_89 {dimension_numbers = #tpu.dot_dimension_numbers<[1], [0], [0], [1], [0, 0, 1, 1], [], []>} : vector<128x128xbf16>, vector<128x128xbf16>, vector<128x128xf32> -> vector<128x128xf32>
    %193 = vector.broadcast %1 : vector<128x1xf32> to vector<128x128xf32>
    %194 = arith.mulf %193, %192 : vector<128x128xf32>
    %195 = arith.truncf %194 : vector<128x128xf32> to vector<128x128xbf16>
    %c384_90 = arith.constant 384 : index
    %c0_91 = arith.constant 0 : index
    %196 = vector.load %arg12[%c384_90, %c0_91] : memref<512x128xbf16, #tpu.memory_space<vmem>>, vector<128x128xbf16>
    %cst_92 = arith.constant dense<0.000000e+00> : vector<128x128xf32>
    %197 = tpu.matmul %195, %196, %cst_92 {dimension_numbers = #tpu.dot_dimension_numbers<[1], [0], [0], [1], [0, 0, 1, 1], [], []>} : vector<128x128xbf16>, vector<128x128xbf16>, vector<128x128xf32> -> vector<128x128xf32>
    %198 = arith.addf %188, %197 : vector<128x128xf32>
    %c0_93 = arith.constant 0 : index
    %c0_94 = arith.constant 0 : index
    %199 = vector.load %arg13[%c0_93, %c0_94] : memref<1x128xf32, #tpu.memory_space<vmem>>, vector<1x128xf32>
    %200 = vector.broadcast %199 : vector<1x128xf32> to vector<128x128xf32>
    %201 = arith.addf %198, %200 : vector<128x128xf32>
    %cst_95 = arith.constant 0.000000e+00 : f32
    %202 = vector.broadcast %cst_95 : f32 to vector<128x128xf32>
    %203 = arith.maximumf %201, %202 : vector<128x128xf32>
    %c0_96 = arith.constant 0 : index
    %c0_97 = arith.constant 0 : index
    %204 = vector.load %arg3[%c0_96, %c0_97] : memref<1x128xf32, #tpu.memory_space<vmem>>, vector<1x128xf32>
    %cst_98 = arith.constant dense<0.000000e+00> : vector<1x128xf32>
    %205 = tpu.matmul %204, %203, %cst_98 {dimension_numbers = #tpu.dot_dimension_numbers<[1], [0], [0], [1], [0, 0, 1, 1], [], []>} : vector<1x128xf32>, vector<128x128xf32>, vector<1x128xf32> -> vector<1x128xf32>
    %c0_99 = arith.constant 0 : index
    %c0_100 = arith.constant 0 : index
    %206 = vector.load %arg14[%c0_99, %c0_100] : memref<128x1xf32, #tpu.memory_space<vmem>>, vector<128x1xf32>
    %cst_101 = arith.constant dense<0.000000e+00> : vector<1x1xf32>
    %207 = tpu.matmul %205, %206, %cst_101 {dimension_numbers = #tpu.dot_dimension_numbers<[1], [0], [0], [1], [0, 0, 1, 1], [], []>} : vector<1x128xf32>, vector<128x1xf32>, vector<1x1xf32> -> vector<1x1xf32>
    %c0_102 = arith.constant 0 : index
    %c0_103 = arith.constant 0 : index
    %208 = vector.load %arg15[%c0_102, %c0_103] : memref<1x1xf32, #tpu.memory_space<vmem>>, vector<1x1xf32>
    %209 = arith.addf %207, %208 : vector<1x1xf32>
    %c0_104 = arith.constant 0 : index
    %c0_105 = arith.constant 0 : index
    %210 = vector.load %arg16[%c0_104, %c0_105] : memref<1x1xf32, #tpu.memory_space<vmem>>, vector<1x1xf32>
    tpu.vector_store %arg16[%c0_104, %c0_105], %209 {strides = array<i32>} : memref<1x1xf32, #tpu.memory_space<vmem>>, vector<1x1xf32>,
    return
  }
}

</mosaic_0001>

<llo_original>
// kernel: tpu_custom_call.1
$region0: #{tpu_custom_call.1}
  #allocation0 [shape = 'u32[]', space=smem, size = 0x4, offset = 0x4, fixed_abs, tag = 'smem constant byte address 0x4 - core index']
  #allocation1 [shape = 'u32[72,128]{1,0:T(1,128)}', space=vmem, size = 0x9000, scoped, tag = 'internal scratch']
  #allocation2 [shape = 'f32[1,1]{1,0:T(1,128)S(1)}', space=vmem, size = 0x200, scoped, tag = 'scoped memory for tpu_custom_call.1']
  %s0 = inlined_call_operand.hbm [shape: bf16[128,128], index: 0, kind: input, shape index: {}]
  %s1 = inlined_call_operand.vmem [shape: f32[128,1], index: 1, kind: input, shape index: {}]
  %s2 = inlined_call_operand.hbm [shape: f32[128,128], index: 2, kind: input, shape index: {}]
  %s3 = inlined_call_operand.vmem [shape: f32[1,128], index: 3, kind: input, shape index: {}]
  %s4 = inlined_call_operand.vmem [shape: bf16[512,128], index: 4, kind: input, shape index: {}]
  %s5 = inlined_call_operand.vmem [shape: f32[1,128], index: 5, kind: input, shape index: {}]
  %s6 = inlined_call_operand.hbm [shape: bf16[512,128], index: 6, kind: input, shape index: {}]
  %s7 = inlined_call_operand.vmem [shape: f32[1,128], index: 7, kind: input, shape index: {}]
  %s8 = inlined_call_operand.hbm [shape: bf16[512,128], index: 8, kind: input, shape index: {}]
  %s9 = inlined_call_operand.vmem [shape: f32[1,128], index: 9, kind: input, shape index: {}]
  %s10 = inlined_call_operand.hbm [shape: bf16[512,128], index: 10, kind: input, shape index: {}]
  %s11 = inlined_call_operand.vmem [shape: f32[1,128], index: 11, kind: input, shape index: {}]
  %s12 = inlined_call_operand.hbm [shape: bf16[512,128], index: 12, kind: input, shape index: {}]
  %s13 = inlined_call_operand.vmem [shape: f32[1,128], index: 13, kind: input, shape index: {}]
  %s14 = inlined_call_operand.vmem [shape: f32[128,1], index: 14, kind: input, shape index: {}]
  %s15 = inlined_call_operand.<no memory space> [shape: f32[1,1], index: 15, kind: input, shape index: {}]
  %s16 = inlined_call_operand.hbm [shape: f32[1,1], index: 16, kind: output, shape index: {}]
  %s17 = sld [smem:[#allocation0]]
  $region98: #{tpu_custom_call.1} parent=0
    _
  %s19 = ssub.s32 1, %s17
  %s20 = scalar_select 0, %s19, %s17
  %v21 = vstv %s15
  %22 = vst [vmem:[#allocation2] sm:$0x1] %v21
  $region1: #{tpu_custom_call.1} parent=0
    #allocation3 [shape = 'u8[32768]{0}', space=vmem, size = 0x8000, scoped, tag = 'input window, operand 0, single buffered']
    #allocation4 [shape = 's32[1]{0}', space=sflag, size = 0x4, scoped, tag = 'scoped memory for tpu_custom_call.1']
    #allocation5 [shape = 's32[1]{0}', space=sflag, size = 0x4, scoped, tag = 'scoped memory for tpu_custom_call.1']
    #allocation6 [shape = 'u8[65536]{0}', space=vmem, size = 0x10000, scoped, tag = 'input window, operand 2, single buffered']
    #allocation7 [shape = 's32[1]{0}', space=sflag, size = 0x4, scoped, tag = 'scoped memory for tpu_custom_call.1']
    #allocation8 [shape = 'u8[131072]{0}', space=vmem, size = 0x20000, scoped, tag = 'input window, operand 6, single buffered']
    #allocation9 [shape = 'u8[131072]{0}', space=vmem, size = 0x20000, scoped, tag = 'input window, operand 8, single buffered']
    #allocation10 [shape = 's32[1]{0}', space=sflag, size = 0x4, scoped, tag = 'scoped memory for tpu_custom_call.1']
    #allocation11 [shape = 'u8[131072]{0}', space=vmem, size = 0x20000, scoped, tag = 'input window, operand 10, single buffered']
    #allocation12 [shape = 'u8[131072]{0}', space=vmem, size = 0x20000, scoped, tag = 'input window, operand 12, single buffered']
    #allocation13 [shape = 's32[1]{0}', space=sflag, size = 0x4, scoped, tag = 'scoped memory for tpu_custom_call.1']
    #allocation14 [shape = 'u8[512]{0}', space=vmem, size = 0x400, scoped, tag = 'output window, operand 0, single buffered']
    %23 = vsyncpa [#allocation4], 0
    %24 = vsyncpa [#allocation7], 0
    %25 = vsyncpa [#allocation10], 0
    %26 = vsyncpa [#allocation13], 0
    %27 = vsyncpa [#allocation5], 0
    // Predicated region
    $region2: #{tpu_custom_call.1} parent=1 // pred_check
      _
    $region3: #{tpu_custom_call.1} parent=1 // pred_check_branch
      %29 = sbr.rel (0) target = $region5
    $region4: #{tpu_custom_call.1} parent=1 // pred_region
      %31 = vsyncadd [#allocation4], 0
      %s32 = sshll.u32 %s0, 4
      %s33 = int_to_ptr.hbm [resolvable:$true] %s32
      %s34 = sshll.u32 [#allocation3], 4
      %s35 = int_to_ptr.vmem [resolvable:$true] %s34
      %40 = dma.hbm_to_vmem [thread:$0]  %s33, 1024, %s35, [#allocation4], 64, 64, 4
    $region5: #{tpu_custom_call.1} parent=1 // pred_fallthru
      _
    // Predicated region
    $region6: #{tpu_custom_call.1} parent=1 // pred_check
      _
    $region7: #{tpu_custom_call.1} parent=1 // pred_check_branch
      %42 = sbr.rel (0) target = $region9
    $region8: #{tpu_custom_call.1} parent=1 // pred_region
      _
    $region9: #{tpu_custom_call.1} parent=1 // pred_fallthru
      _
    // Predicated region
    $region10: #{tpu_custom_call.1} parent=1 // pred_check
      _
    $region11: #{tpu_custom_call.1} parent=1 // pred_check_branch
      %44 = sbr.rel (0) target = $region13
    $region12: #{tpu_custom_call.1} parent=1 // pred_region
      %46 = vsyncadd [#allocation7], 0
      %s47 = sshll.u32 %s2, 4
      %s48 = int_to_ptr.hbm [resolvable:$true] %s47
      %s49 = sshll.u32 [#allocation6], 4
      %s50 = int_to_ptr.vmem [resolvable:$true] %s49
      %55 = dma.hbm_to_vmem [thread:$0]  %s48, 2048, %s50, [#allocation7], 128, 128, 8
    $region13: #{tpu_custom_call.1} parent=1 // pred_fallthru
      _
    // Predicated region
    $region14: #{tpu_custom_call.1} parent=1 // pred_check
      _
    $region15: #{tpu_custom_call.1} parent=1 // pred_check_branch
      %57 = sbr.rel (0) target = $region17
    $region16: #{tpu_custom_call.1} parent=1 // pred_region
      _
    $region17: #{tpu_custom_call.1} parent=1 // pred_fallthru
      _
    // Predicated region
    $region18: #{tpu_custom_call.1} parent=1 // pred_check
      _
    $region19: #{tpu_custom_call.1} parent=1 // pred_check_branch
      %59 = sbr.rel (0) target = $region21
    $region20: #{tpu_custom_call.1} parent=1 // pred_region
      _
    $region21: #{tpu_custom_call.1} parent=1 // pred_fallthru
      _
    // Predicated region
    $region22: #{tpu_custom_call.1} parent=1 // pred_check
      _
    $region23: #{tpu_custom_call.1} parent=1 // pred_check_branch
      %61 = sbr.rel (0) target = $region25
    $region24: #{tpu_custom_call.1} parent=1 // pred_region
      _
    $region25: #{tpu_custom_call.1} parent=1 // pred_fallthru
      _
    // Predicated region
    $region26: #{tpu_custom_call.1} parent=1 // pred_check
      _
    $region27: #{tpu_custom_call.1} parent=1 // pred_check_branch
      %63 = sbr.rel (0) target = $region29
    $region28: #{tpu_custom_call.1} parent=1 // pred_region
      %65 = vsyncadd [#allocation7], 0
      %s66 = sshll.u32 %s6, 4
      %s67 = int_to_ptr.hbm [resolvable:$true] %s66
      %s68 = sshll.u32 [#allocation8], 4
      %s69 = int_to_ptr.vmem [resolvable:$true] %s68
      %74 = dma.hbm_to_vmem [thread:$0]  %s67, 4096, %s69, [#allocation7], 64, 64, 4
    $region29: #{tpu_custom_call.1} parent=1 // pred_fallthru
      _
    // Predicated region
    $region30: #{tpu_custom_call.1} parent=1 // pred_check
      _
    $region31: #{tpu_custom_call.1} parent=1 // pred_check_branch
      %76 = sbr.rel (0) target = $region33
    $region32: #{tpu_custom_call.1} parent=1 // pred_region
      _
    $region33: #{tpu_custom_call.1} parent=1 // pred_fallthru
      _
    // Predicated region
    $region34: #{tpu_custom_call.1} parent=1 // pred_check
      _
    $region35: #{tpu_custom_call.1} parent=1 // pred_check_branch
      %78 = sbr.rel (0) target = $region37
    $region36: #{tpu_custom_call.1} parent=1 // pred_region
      %80 = vsyncadd [#allocation10], 0
      %s81 = sshll.u32 %s8, 4
      %s82 = int_to_ptr.hbm [resolvable:$true] %s81
      %s83 = sshll.u32 [#allocation9], 4
      %s84 = int_to_ptr.vmem [resolvable:$true] %s83
      %89 = dma.hbm_to_vmem [thread:$0]  %s82, 4096, %s84, [#allocation10], 64, 64, 4
    $region37: #{tpu_custom_call.1} parent=1 // pred_fallthru
      _
    // Predicated region
    $region38: #{tpu_custom_call.1} parent=1 // pred_check
      _
    $region39: #{tpu_custom_call.1} parent=1 // pred_check_branch
      %91 = sbr.rel (0) target = $region41
    $region40: #{tpu_custom_call.1} parent=1 // pred_region
      _
    $region41: #{tpu_custom_call.1} parent=1 // pred_fallthru
      _
    // Predicated region
    $region42: #{tpu_custom_call.1} parent=1 // pred_check
      _
    $region43: #{tpu_custom_call.1} parent=1 // pred_check_branch
      %93 = sbr.rel (0) target = $region45
    $region44: #{tpu_custom_call.1} parent=1 // pred_region
      %95 = vsyncadd [#allocation10], 0
      %s96 = sshll.u32 %s10, 4
      %s97 = int_to_ptr.hbm [resolvable:$true] %s96
      %s98 = sshll.u32 [#allocation11], 4
      %s99 = int_to_ptr.vmem [resolvable:$true] %s98
      %104 = dma.hbm_to_vmem [thread:$0]  %s97, 4096, %s99, [#allocation10], 64, 64, 4
    $region45: #{tpu_custom_call.1} parent=1 // pred_fallthru
      _
    // Predicated region
    $region46: #{tpu_custom_call.1} parent=1 // pred_check
      _
    $region47: #{tpu_custom_call.1} parent=1 // pred_check_branch
      %106 = sbr.rel (0) target = $region49
    $region48: #{tpu_custom_call.1} parent=1 // pred_region
      _
    $region49: #{tpu_custom_call.1} parent=1 // pred_fallthru
      _
    // Predicated region
    $region50: #{tpu_custom_call.1} parent=1 // pred_check
      _
    $region51: #{tpu_custom_call.1} parent=1 // pred_check_branch
      %108 = sbr.rel (0) target = $region53
    $region52: #{tpu_custom_call.1} parent=1 // pred_region
      %110 = vsyncadd [#allocation13], 0
      %s111 = sshll.u32 %s12, 4
      %s112 = int_to_ptr.hbm [resolvable:$true] %s111
      %s113 = sshll.u32 [#allocation12], 4
      %s114 = int_to_ptr.vmem [resolvable:$true] %s113
      %119 = dma.hbm_to_vmem [thread:$0]  %s112, 4096, %s114, [#allocation13], 64, 64, 4
    $region53: #{tpu_custom_call.1} parent=1 // pred_fallthru
      _
    // Predicated region
    $region54: #{tpu_custom_call.1} parent=1 // pred_check
      _
    $region55: #{tpu_custom_call.1} parent=1 // pred_check_branch
      %121 = sbr.rel (0) target = $region57
    $region56: #{tpu_custom_call.1} parent=1 // pred_region
      _
    $region57: #{tpu_custom_call.1} parent=1 // pred_fallthru
      _
    // Predicated region
    $region58: #{tpu_custom_call.1} parent=1 // pred_check
      _
    $region59: #{tpu_custom_call.1} parent=1 // pred_check_branch
      %123 = sbr.rel (0) target = $region61
    $region60: #{tpu_custom_call.1} parent=1 // pred_region
      _
    $region61: #{tpu_custom_call.1} parent=1 // pred_fallthru
      _
    // Predicated region
    $region62: #{tpu_custom_call.1} parent=1 // pred_check
      _
    $region63: #{tpu_custom_call.1} parent=1 // pred_check_branch
      %125 = sbr.rel (0) target = $region65
    $region64: #{tpu_custom_call.1} parent=1 // pred_region
      _
    $region65: #{tpu_custom_call.1} parent=1 // pred_fallthru
      _
    // Predicated region
    $region66: #{tpu_custom_call.1} parent=1 // pred_check
      _
    $region67: #{tpu_custom_call.1} parent=1 // pred_check_branch
      %127 = sbr.rel (0) target = $region69
    $region68: #{tpu_custom_call.1} parent=1 // pred_region
      %129 = dma.done [#allocation4], 1024
    $region69: #{tpu_custom_call.1} parent=1 // pred_fallthru
      _
    // Predicated region
    $region70: #{tpu_custom_call.1} parent=1 // pred_check
      _
    $region71: #{tpu_custom_call.1} parent=1 // pred_check_branch
      %131 = sbr.rel (0) target = $region73
    $region72: #{tpu_custom_call.1} parent=1 // pred_region
      %133 = dma.done [#allocation7], 2048
    $region73: #{tpu_custom_call.1} parent=1 // pred_fallthru
      _
    // Predicated region
    $region74: #{tpu_custom_call.1} parent=1 // pred_check
      _
    $region75: #{tpu_custom_call.1} parent=1 // pred_check_branch
      %135 = sbr.rel (0) target = $region77
    $region76: #{tpu_custom_call.1} parent=1 // pred_region
      %137 = dma.done [#allocation7], 4096
    $region77: #{tpu_custom_call.1} parent=1 // pred_fallthru
      _
    // Predicated region
    $region78: #{tpu_custom_call.1} parent=1 // pred_check
      _
    $region79: #{tpu_custom_call.1} parent=1 // pred_check_branch
      %139 = sbr.rel (0) target = $region81
    $region80: #{tpu_custom_call.1} parent=1 // pred_region
      %141 = dma.done [#allocation10], 4096
    $region81: #{tpu_custom_call.1} parent=1 // pred_fallthru
      _
    // Predicated region
    $region82: #{tpu_custom_call.1} parent=1 // pred_check
      _
    $region83: #{tpu_custom_call.1} parent=1 // pred_check_branch
      %143 = sbr.rel (0) target = $region85
    $region84: #{tpu_custom_call.1} parent=1 // pred_region
      %145 = dma.done [#allocation10], 4096
    $region85: #{tpu_custom_call.1} parent=1 // pred_fallthru
      _
    // Predicated region
    $region86: #{tpu_custom_call.1} parent=1 // pred_check
      _
    $region87: #{tpu_custom_call.1} parent=1 // pred_check_branch
      %147 = sbr.rel (0) target = $region89
    $region88: #{tpu_custom_call.1} parent=1 // pred_region
      %149 = dma.done [#allocation13], 4096
    $region89: #{tpu_custom_call.1} parent=1 // pred_fallthru
      _
    %v150 = vld [vmem:[#allocation3] sm:$0xf]
    %v151 = vld [vmem:[#allocation3 + $0x4] sm:$0xf]
    %v152 = vld [vmem:[#allocation3 + $0x8] sm:$0xf]
    %v153 = vld [vmem:[#allocation3 + $0xc] sm:$0xf]
    %v154 = vld [vmem:[#allocation3 + $0x10] sm:$0xf]
    %v155 = vld [vmem:[#allocation3 + $0x14] sm:$0xf]
    %v156 = vld [vmem:[#allocation3 + $0x18] sm:$0xf]
    %v157 = vld [vmem:[#allocation3 + $0x1c] sm:$0xf]
    %v158 = vld [vmem:[#allocation3 + $0x20] sm:$0xf]
    %v159 = vld [vmem:[#allocation3 + $0x24] sm:$0xf]
    %v160 = vld [vmem:[#allocation3 + $0x28] sm:$0xf]
    %v161 = vld [vmem:[#allocation3 + $0x2c] sm:$0xf]
    %v162 = vld [vmem:[#allocation3 + $0x30] sm:$0xf]
    %v163 = vld [vmem:[#allocation3 + $0x34] sm:$0xf]
    %v164 = vld [vmem:[#allocation3 + $0x38] sm:$0xf]
    %v165 = vld [vmem:[#allocation3 + $0x3c] sm:$0xf]
    %v166 = vld [vmem:[%s1] sm:$0xff]
    %v167 = vld [vmem:[%s1 + $0x8] sm:$0xff]
    %v168 = vld [vmem:[%s1 + $0x10] sm:$0xff]
    %v169 = vld [vmem:[%s1 + $0x18] sm:$0xff]
    %v170 = vld [vmem:[%s1 + $0x20] sm:$0xff]
    %v171 = vld [vmem:[%s1 + $0x28] sm:$0xff]
    %v172 = vld [vmem:[%s1 + $0x30] sm:$0xff]
    %v173 = vld [vmem:[%s1 + $0x38] sm:$0xff]
    %v174 = vld [vmem:[%s1 + $0x40] sm:$0xff]
    %v175 = vld [vmem:[%s1 + $0x48] sm:$0xff]
    %v176 = vld [vmem:[%s1 + $0x50] sm:$0xff]
    %v177 = vld [vmem:[%s1 + $0x58] sm:$0xff]
    %v178 = vld [vmem:[%s1 + $0x60] sm:$0xff]
    %v179 = vld [vmem:[%s1 + $0x68] sm:$0xff]
    %v180 = vld [vmem:[%s1 + $0x70] sm:$0xff]
    %v181 = vld [vmem:[%s1 + $0x78] sm:$0xff]
    %v182 = vld [vmem:[#allocation6] sm:$0xff]
    %v183 = vld [vmem:[#allocation6 + $0x8] sm:$0xff]
    %v184 = vld [vmem:[#allocation6 + $0x10] sm:$0xff]
    %v185 = vld [vmem:[#allocation6 + $0x18] sm:$0xff]
    %v186 = vld [vmem:[#allocation6 + $0x20] sm:$0xff]
    %v187 = vld [vmem:[#allocation6 + $0x28] sm:$0xff]
    %v188 = vld [vmem:[#allocation6 + $0x30] sm:$0xff]
    %v189 = vld [vmem:[#allocation6 + $0x38] sm:$0xff]
    %v190 = vld [vmem:[#allocation6 + $0x40] sm:$0xff]
    %v191 = vld [vmem:[#allocation6 + $0x48] sm:$0xff]
    %v192 = vld [vmem:[#allocation6 + $0x50] sm:$0xff]
    %v193 = vld [vmem:[#allocation6 + $0x58] sm:$0xff]
    %v194 = vld [vmem:[#allocation6 + $0x60] sm:$0xff]
    %v195 = vld [vmem:[#allocation6 + $0x68] sm:$0xff]
    %v196 = vld [vmem:[#allocation6 + $0x70] sm:$0xff]
    %v197 = vld [vmem:[#allocation6 + $0x78] sm:$0xff]
    %vm198 = vcmp.ne.f32.partialorder %v182, %v182
    %vm199 = vcmp.ne.f32.partialorder %v183, %v183
    %vm200 = vcmp.ne.f32.partialorder %v184, %v184
    %vm201 = vcmp.ne.f32.partialorder %v185, %v185
    %vm202 = vcmp.ne.f32.partialorder %v186, %v186
    %vm203 = vcmp.ne.f32.partialorder %v187, %v187
    %vm204 = vcmp.ne.f32.partialorder %v188, %v188
    %vm205 = vcmp.ne.f32.partialorder %v189, %v189
    %vm206 = vcmp.ne.f32.partialorder %v190, %v190
    %vm207 = vcmp.ne.f32.partialorder %v191, %v191
    %vm208 = vcmp.ne.f32.partialorder %v192, %v192
    %vm209 = vcmp.ne.f32.partialorder %v193, %v193
    %vm210 = vcmp.ne.f32.partialorder %v194, %v194
    %vm211 = vcmp.ne.f32.partialorder %v195, %v195
    %vm212 = vcmp.ne.f32.partialorder %v196, %v196
    %vm213 = vcmp.ne.f32.partialorder %v197, %v197
    %v214 = vsel %vm198, 0.0, %v182
    %v215 = vsel %vm199, 0.0, %v183
    %v216 = vsel %vm200, 0.0, %v184
    %v217 = vsel %vm201, 0.0, %v185
    %v218 = vsel %vm202, 0.0, %v186
    %v219 = vsel %vm203, 0.0, %v187
    %v220 = vsel %vm204, 0.0, %v188
    %v221 = vsel %vm205, 0.0, %v189
    %v222 = vsel %vm206, 0.0, %v190
    %v223 = vsel %vm207, 0.0, %v191
    %v224 = vsel %vm208, 0.0, %v192
    %v225 = vsel %vm209, 0.0, %v193
    %v226 = vsel %vm210, 0.0, %v194
    %v227 = vsel %vm211, 0.0, %v195
    %v228 = vsel %vm212, 0.0, %v196
    %v229 = vsel %vm213, 0.0, %v197
    %vm230 = vcmp.eq.f32.partialorder %v214, inf
    %vm231 = vcmp.eq.f32.partialorder %v215, inf
    %vm232 = vcmp.eq.f32.partialorder %v216, inf
    %vm233 = vcmp.eq.f32.partialorder %v217, inf
    %vm234 = vcmp.eq.f32.partialorder %v218, inf
    %vm235 = vcmp.eq.f32.partialorder %v219, inf
    %vm236 = vcmp.eq.f32.partialorder %v220, inf
    %vm237 = vcmp.eq.f32.partialorder %v221, inf
    %vm238 = vcmp.eq.f32.partialorder %v222, inf
    %vm239 = vcmp.eq.f32.partialorder %v223, inf
    %vm240 = vcmp.eq.f32.partialorder %v224, inf
    %vm241 = vcmp.eq.f32.partialorder %v225, inf
    %vm242 = vcmp.eq.f32.partialorder %v226, inf
    %vm243 = vcmp.eq.f32.partialorder %v227, inf
    %vm244 = vcmp.eq.f32.partialorder %v228, inf
    %vm245 = vcmp.eq.f32.partialorder %v229, inf
    %v246 = vsel %vm230, 3.4028235e+38, %v214
    %v247 = vsel %vm231, 3.4028235e+38, %v215
    %v248 = vsel %vm232, 3.4028235e+38, %v216
    %v249 = vsel %vm233, 3.4028235e+38, %v217
    %v250 = vsel %vm234, 3.4028235e+38, %v218
    %v251 = vsel %vm235, 3.4028235e+38, %v219
    %v252 = vsel %vm236, 3.4028235e+38, %v220
    %v253 = vsel %vm237, 3.4028235e+38, %v221
    %v254 = vsel %vm238, 3.4028235e+38, %v222
    %v255 = vsel %vm239, 3.4028235e+38, %v223
    %v256 = vsel %vm240, 3.4028235e+38, %v224
    %v257 = vsel %vm241, 3.4028235e+38, %v225
    %v258 = vsel %vm242, 3.4028235e+38, %v226
    %v259 = vsel %vm243, 3.4028235e+38, %v227
    %v260 = vsel %vm244, 3.4028235e+38, %v228
    %v261 = vsel %vm245, 3.4028235e+38, %v229
    %vm262 = vcmp.eq.f32.partialorder %v246, -inf
    %vm263 = vcmp.eq.f32.partialorder %v247, -inf
    %vm264 = vcmp.eq.f32.partialorder %v248, -inf
    %vm265 = vcmp.eq.f32.partialorder %v249, -inf
    %vm266 = vcmp.eq.f32.partialorder %v250, -inf
    %vm267 = vcmp.eq.f32.partialorder %v251, -inf
    %vm268 = vcmp.eq.f32.partialorder %v252, -inf
    %vm269 = vcmp.eq.f32.partialorder %v253, -inf
    %vm270 = vcmp.eq.f32.partialorder %v254, -inf
    %vm271 = vcmp.eq.f32.partialorder %v255, -inf
    %vm272 = vcmp.eq.f32.partialorder %v256, -inf
    %vm273 = vcmp.eq.f32.partialorder %v257, -inf
    %vm274 = vcmp.eq.f32.partialorder %v258, -inf
    %vm275 = vcmp.eq.f32.partialorder %v259, -inf
    %vm276 = vcmp.eq.f32.partialorder %v260, -inf
    %vm277 = vcmp.eq.f32.partialorder %v261, -inf
    %v278 = vsel %vm262, -3.4028235e+38, %v246
    %v279 = vsel %vm263, -3.4028235e+38, %v247
    %v280 = vsel %vm264, -3.4028235e+38, %v248
    %v281 = vsel %vm265, -3.4028235e+38, %v249
    %v282 = vsel %vm266, -3.4028235e+38, %v250
    %v283 = vsel %vm267, -3.4028235e+38, %v251
    %v284 = vsel %vm268, -3.4028235e+38, %v252
    %v285 = vsel %vm269, -3.4028235e+38, %v253
    %v286 = vsel %vm270, -3.4028235e+38, %v254
    %v287 = vsel %vm271, -3.4028235e+38, %v255
    %v288 = vsel %vm272, -3.4028235e+38, %v256
    %v289 = vsel %vm273, -3.4028235e+38, %v257
    %v290 = vsel %vm274, -3.4028235e+38, %v258
    %v291 = vsel %vm275, -3.4028235e+38, %v259
    %v292 = vsel %vm276, -3.4028235e+38, %v260
    %v293 = vsel %vm277, -3.4028235e+38, %v261
    %v294 = vpack.c.bf16 %v279, %v278
    %v295 = vpack.c.bf16 %v281, %v280
    %v296 = vpack.c.bf16 %v283, %v282
    %v297 = vpack.c.bf16 %v285, %v284
    %v298 = vpack.c.bf16 %v287, %v286
    %v299 = vpack.c.bf16 %v289, %v288
    %v300 = vpack.c.bf16 %v291, %v290
    %v301 = vpack.c.bf16 %v293, %v292
    %v302 = vld [vmem:[%s4] sm:$0xf]
    %v303 = vld [vmem:[%s4 + $0x4] sm:$0xf]
    %v304 = vld [vmem:[%s4 + $0x8] sm:$0xf]
    %v305 = vld [vmem:[%s4 + $0xc] sm:$0xf]
    %v306 = vld [vmem:[%s4 + $0x10] sm:$0xf]
    %v307 = vld [vmem:[%s4 + $0x14] sm:$0xf]
    %v308 = vld [vmem:[%s4 + $0x18] sm:$0xf]
    %v309 = vld [vmem:[%s4 + $0x1c] sm:$0xf]
    %v310 = vld [vmem:[%s4 + $0x20] sm:$0xf]
    %v311 = vld [vmem:[%s4 + $0x24] sm:$0xf]
    %v312 = vld [vmem:[%s4 + $0x28] sm:$0xf]
    %v313 = vld [vmem:[%s4 + $0x2c] sm:$0xf]
    %v314 = vld [vmem:[%s4 + $0x30] sm:$0xf]
    %v315 = vld [vmem:[%s4 + $0x34] sm:$0xf]
    %v316 = vld [vmem:[%s4 + $0x38] sm:$0xf]
    %v317 = vld [vmem:[%s4 + $0x3c] sm:$0xf]
    %319 = vset.pattern.permute.xlu0 0
    %320 = vperm.xlu0 %319, %v166
    %v321 = vpop.permute.xlu0 %320
    %324 = vset.pattern.permute.xlu0 0
    %325 = vperm.xlu0 %324, %v167
    %v326 = vpop.permute.xlu0 %325
    %329 = vset.pattern.permute.xlu0 0
    %330 = vperm.xlu0 %329, %v168
    %v331 = vpop.permute.xlu0 %330
    %334 = vset.pattern.permute.xlu0 0
    %335 = vperm.xlu0 %334, %v169
    %v336 = vpop.permute.xlu0 %335
    %339 = vset.pattern.permute.xlu0 0
    %340 = vperm.xlu0 %339, %v170
    %v341 = vpop.permute.xlu0 %340
    %344 = vset.pattern.permute.xlu0 0
    %345 = vperm.xlu0 %344, %v171
    %v346 = vpop.permute.xlu0 %345
    %349 = vset.pattern.permute.xlu0 0
    %350 = vperm.xlu0 %349, %v172
    %v351 = vpop.permute.xlu0 %350
    %354 = vset.pattern.permute.xlu0 0
    %355 = vperm.xlu0 %354, %v173
    %v356 = vpop.permute.xlu0 %355
    %359 = vset.pattern.permute.xlu0 0
    %360 = vperm.xlu0 %359, %v174
    %v361 = vpop.permute.xlu0 %360
    %364 = vset.pattern.permute.xlu0 0
    %365 = vperm.xlu0 %364, %v175
    %v366 = vpop.permute.xlu0 %365
    %369 = vset.pattern.permute.xlu0 0
    %370 = vperm.xlu0 %369, %v176
    %v371 = vpop.permute.xlu0 %370
    %374 = vset.pattern.permute.xlu0 0
    %375 = vperm.xlu0 %374, %v177
    %v376 = vpop.permute.xlu0 %375
    %379 = vset.pattern.permute.xlu0 0
    %380 = vperm.xlu0 %379, %v178
    %v381 = vpop.permute.xlu0 %380
    %384 = vset.pattern.permute.xlu0 0
    %385 = vperm.xlu0 %384, %v179
    %v386 = vpop.permute.xlu0 %385
    %389 = vset.pattern.permute.xlu0 0
    %390 = vperm.xlu0 %389, %v180
    %v391 = vpop.permute.xlu0 %390
    %394 = vset.pattern.permute.xlu0 0
    %395 = vperm.xlu0 %394, %v181
    %v396 = vpop.permute.xlu0 %395
    %v398 = vmul.f32 %v321, %v278
    %v399 = vmul.f32 %v326, %v279
    %v400 = vmul.f32 %v331, %v280
    %v401 = vmul.f32 %v336, %v281
    %v402 = vmul.f32 %v341, %v282
    %v403 = vmul.f32 %v346, %v283
    %v404 = vmul.f32 %v351, %v284
    %v405 = vmul.f32 %v356, %v285
    %v406 = vmul.f32 %v361, %v286
    %v407 = vmul.f32 %v366, %v287
    %v408 = vmul.f32 %v371, %v288
    %v409 = vmul.f32 %v376, %v289
    %v410 = vmul.f32 %v381, %v290
    %v411 = vmul.f32 %v386, %v291
    %v412 = vmul.f32 %v391, %v292
    %v413 = vmul.f32 %v396, %v293
    %v414 = vpack.c.bf16 %v399, %v398
    %v415 = vpack.c.bf16 %v401, %v400
    %v416 = vpack.c.bf16 %v403, %v402
    %v417 = vpack.c.bf16 %v405, %v404
    %v418 = vpack.c.bf16 %v407, %v406
    %v419 = vpack.c.bf16 %v409, %v408
    %v420 = vpack.c.bf16 %v411, %v410
    %v421 = vpack.c.bf16 %v413, %v412
    %v438 = vunpack.c.l.b16 %v150
    %v439 = vunpack.c.l.b16 %v151
    %v440 = vunpack.c.l.b16 %v152
    %v441 = vunpack.c.l.b16 %v153
    %v442 = vunpack.c.l.b16 %v154
    %v443 = vunpack.c.l.b16 %v155
    %v444 = vunpack.c.l.b16 %v156
    %v445 = vunpack.c.l.b16 %v157
    %v446 = vunpack.c.l.b16 %v158
    %v447 = vunpack.c.l.b16 %v159
    %v448 = vunpack.c.l.b16 %v160
    %v449 = vunpack.c.l.b16 %v161
    %v450 = vunpack.c.l.b16 %v162
    %v451 = vunpack.c.l.b16 %v163
    %v452 = vunpack.c.l.b16 %v164
    %v453 = vunpack.c.l.b16 %v165
    %v454 = vpack.c.b16 %v439, %v438
    %v455 = vpack.c.b16 %v441, %v440
    %v456 = vpack.c.b16 %v443, %v442
    %v457 = vpack.c.b16 %v445, %v444
    %v458 = vpack.c.b16 %v447, %v446
    %v459 = vpack.c.b16 %v449, %v448
    %v460 = vpack.c.b16 %v451, %v450
    %v461 = vpack.c.b16 %v453, %v452
    %470 = vmatpush.bf16.msra.mxu0 %v421
    %471 = vmatpush.bf16.msra.mxu0 %v420
    %472 = vmatpush.bf16.msra.mxu0 %v419
    %473 = vmatpush.bf16.msra.mxu0 %v418
    %474 = vmatpush.bf16.msra.mxu0 %v417
    %475 = vmatpush.bf16.msra.mxu0 %v416
    %476 = vmatpush.bf16.msra.mxu0 %v415
    %477 = vmatpush.bf16.msra.mxu0 %v414
    %478 = vmatmul.bf16.gmra.mxu0 %v454
    %v479 = vpop.f32.mrf.mxu0
    %v480 = vadd.f32 0.0, %v479
    %v481 = vpop.f32.mrf.mxu0
    %v482 = vadd.f32 0.0, %v481
    %483 = vmatmul.bf16.gmra.mxu0 %v455
    %v484 = vpop.f32.mrf.mxu0
    %v485 = vadd.f32 0.0, %v484
    %v486 = vpop.f32.mrf.mxu0
    %v487 = vadd.f32 0.0, %v486
    %488 = vmatmul.bf16.gmra.mxu0 %v456
    %v489 = vpop.f32.mrf.mxu0
    %v490 = vadd.f32 0.0, %v489
    %v491 = vpop.f32.mrf.mxu0
    %v492 = vadd.f32 0.0, %v491
    %493 = vmatmul.bf16.gmra.mxu0 %v457
    %v494 = vpop.f32.mrf.mxu0
    %v495 = vadd.f32 0.0, %v494
    %v496 = vpop.f32.mrf.mxu0
    %v497 = vadd.f32 0.0, %v496
    %498 = vmatmul.bf16.gmra.mxu0 %v458
    %v499 = vpop.f32.mrf.mxu0
    %v500 = vadd.f32 0.0, %v499
    %v501 = vpop.f32.mrf.mxu0
    %v502 = vadd.f32 0.0, %v501
    %503 = vmatmul.bf16.gmra.mxu0 %v459
    %v504 = vpop.f32.mrf.mxu0
    %v505 = vadd.f32 0.0, %v504
    %v506 = vpop.f32.mrf.mxu0
    %v507 = vadd.f32 0.0, %v506
    %508 = vmatmul.bf16.gmra.mxu0 %v460
    %v509 = vpop.f32.mrf.mxu0
    %v510 = vadd.f32 0.0, %v509
    %v511 = vpop.f32.mrf.mxu0
    %v512 = vadd.f32 0.0, %v511
    %513 = vmatmul.bf16.gmra.mxu0 %v461
    %v514 = vpop.f32.mrf.mxu0
    %v515 = vadd.f32 0.0, %v514
    %v516 = vpop.f32.mrf.mxu0
    %v517 = vadd.f32 0.0, %v516
    %518 = vdwg.mxu0
    %v519 = vmul.f32 %v321, %v480
    %v520 = vmul.f32 %v326, %v482
    %v521 = vmul.f32 %v331, %v485
    %v522 = vmul.f32 %v336, %v487
    %v523 = vmul.f32 %v341, %v490
    %v524 = vmul.f32 %v346, %v492
    %v525 = vmul.f32 %v351, %v495
    %v526 = vmul.f32 %v356, %v497
    %v527 = vmul.f32 %v361, %v500
    %v528 = vmul.f32 %v366, %v502
    %v529 = vmul.f32 %v371, %v505
    %v530 = vmul.f32 %v376, %v507
    %v531 = vmul.f32 %v381, %v510
    %v532 = vmul.f32 %v386, %v512
    %v533 = vmul.f32 %v391, %v515
    %v534 = vmul.f32 %v396, %v517
    %v535 = vpack.c.bf16 %v520, %v519
    %v536 = vpack.c.bf16 %v522, %v521
    %v537 = vpack.c.bf16 %v524, %v523
    %v538 = vpack.c.bf16 %v526, %v525
    %v539 = vpack.c.bf16 %v528, %v527
    %v540 = vpack.c.bf16 %v530, %v529
    %v541 = vpack.c.bf16 %v532, %v531
    %v542 = vpack.c.bf16 %v534, %v533
    %v543 = vld [vmem:[%s4 + $0x40] sm:$0xf]
    %v544 = vld [vmem:[%s4 + $0x44] sm:$0xf]
    %v545 = vld [vmem:[%s4 + $0x48] sm:$0xf]
    %v546 = vld [vmem:[%s4 + $0x4c] sm:$0xf]
    %v547 = vld [vmem:[%s4 + $0x50] sm:$0xf]
    %v548 = vld [vmem:[%s4 + $0x54] sm:$0xf]
    %v549 = vld [vmem:[%s4 + $0x58] sm:$0xf]
    %v550 = vld [vmem:[%s4 + $0x5c] sm:$0xf]
    %v551 = vld [vmem:[%s4 + $0x60] sm:$0xf]
    %v552 = vld [vmem:[%s4 + $0x64] sm:$0xf]
    %v553 = vld [vmem:[%s4 + $0x68] sm:$0xf]
    %v554 = vld [vmem:[%s4 + $0x6c] sm:$0xf]
    %v555 = vld [vmem:[%s4 + $0x70] sm:$0xf]
    %v556 = vld [vmem:[%s4 + $0x74] sm:$0xf]
    %v557 = vld [vmem:[%s4 + $0x78] sm:$0xf]
    %v558 = vld [vmem:[%s4 + $0x7c] sm:$0xf]
    %v575 = vunpack.c.l.b16 %v543
    %v576 = vunpack.c.l.b16 %v544
    %v577 = vunpack.c.l.b16 %v545
    %v578 = vunpack.c.l.b16 %v546
    %v579 = vunpack.c.l.b16 %v547
    %v580 = vunpack.c.l.b16 %v548
    %v581 = vunpack.c.l.b16 %v549
    %v582 = vunpack.c.l.b16 %v550
    %v583 = vunpack.c.l.b16 %v551
    %v584 = vunpack.c.l.b16 %v552
    %v585 = vunpack.c.l.b16 %v553
    %v586 = vunpack.c.l.b16 %v554
    %v587 = vunpack.c.l.b16 %v555
    %v588 = vunpack.c.l.b16 %v556
    %v589 = vunpack.c.l.b16 %v557
    %v590 = vunpack.c.l.b16 %v558
    %v591 = vpack.c.b16 %v576, %v575
    %v592 = vpack.c.b16 %v578, %v577
    %v593 = vpack.c.b16 %v580, %v579
    %v594 = vpack.c.b16 %v582, %v581
    %v595 = vpack.c.b16 %v584, %v583
    %v596 = vpack.c.b16 %v586, %v585
    %v597 = vpack.c.b16 %v588, %v587
    %v598 = vpack.c.b16 %v590, %v589
    %607 = vmatpush.bf16.msra.mxu0 %v598
    %608 = vmatpush.bf16.msra.mxu0 %v597
    %609 = vmatpush.bf16.msra.mxu0 %v596
    %610 = vmatpush.bf16.msra.mxu0 %v595
    %611 = vmatpush.bf16.msra.mxu0 %v594
    %612 = vmatpush.bf16.msra.mxu0 %v593
    %613 = vmatpush.bf16.msra.mxu0 %v592
    %614 = vmatpush.bf16.msra.mxu0 %v591
    %615 = vmatmul.bf16.gmra.mxu0 %v535
    %v616 = vpop.f32.mrf.mxu0
    %v617 = vadd.f32 0.0, %v616
    %v618 = vpop.f32.mrf.mxu0
    %v619 = vadd.f32 0.0, %v618
    %620 = vmatmul.bf16.gmra.mxu0 %v536
    %v621 = vpop.f32.mrf.mxu0
    %v622 = vadd.f32 0.0, %v621
    %v623 = vpop.f32.mrf.mxu0
    %v624 = vadd.f32 0.0, %v623
    %625 = vmatmul.bf16.gmra.mxu0 %v537
    %v626 = vpop.f32.mrf.mxu0
    %v627 = vadd.f32 0.0, %v626
    %v628 = vpop.f32.mrf.mxu0
    %v629 = vadd.f32 0.0, %v628
    %630 = vmatmul.bf16.gmra.mxu0 %v538
    %v631 = vpop.f32.mrf.mxu0
    %v632 = vadd.f32 0.0, %v631
    %v633 = vpop.f32.mrf.mxu0
    %v634 = vadd.f32 0.0, %v633
    %635 = vmatmul.bf16.gmra.mxu0 %v539
    %v636 = vpop.f32.mrf.mxu0
    %v637 = vadd.f32 0.0, %v636
    %v638 = vpop.f32.mrf.mxu0
    %v639 = vadd.f32 0.0, %v638
    %640 = vmatmul.bf16.gmra.mxu0 %v540
    %v641 = vpop.f32.mrf.mxu0
    %v642 = vadd.f32 0.0, %v641
    %v643 = vpop.f32.mrf.mxu0
    %v644 = vadd.f32 0.0, %v643
    %645 = vmatmul.bf16.gmra.mxu0 %v541
    %v646 = vpop.f32.mrf.mxu0
    %v647 = vadd.f32 0.0, %v646
    %v648 = vpop.f32.mrf.mxu0
    %v649 = vadd.f32 0.0, %v648
    %650 = vmatmul.bf16.gmra.mxu0 %v542
    %v651 = vpop.f32.mrf.mxu0
    %v652 = vadd.f32 0.0, %v651
    %v653 = vpop.f32.mrf.mxu0
    %v654 = vadd.f32 0.0, %v653
    %655 = vdwg.mxu0
    %v672 = vunpack.c.l.b16 %v302
    %v673 = vunpack.c.l.b16 %v303
    %v674 = vunpack.c.l.b16 %v304
    %v675 = vunpack.c.l.b16 %v305
    %v676 = vunpack.c.l.b16 %v306
    %v677 = vunpack.c.l.b16 %v307
    %v678 = vunpack.c.l.b16 %v308
    %v679 = vunpack.c.l.b16 %v309
    %v680 = vunpack.c.l.b16 %v310
    %v681 = vunpack.c.l.b16 %v311
    %v682 = vunpack.c.l.b16 %v312
    %v683 = vunpack.c.l.b16 %v313
    %v684 = vunpack.c.l.b16 %v314
    %v685 = vunpack.c.l.b16 %v315
    %v686 = vunpack.c.l.b16 %v316
    %v687 = vunpack.c.l.b16 %v317
    %v688 = vpack.c.b16 %v673, %v672
    %v689 = vpack.c.b16 %v675, %v674
    %v690 = vpack.c.b16 %v677, %v676
    %v691 = vpack.c.b16 %v679, %v678
    %v692 = vpack.c.b16 %v681, %v680
    %v693 = vpack.c.b16 %v683, %v682
    %v694 = vpack.c.b16 %v685, %v684
    %v695 = vpack.c.b16 %v687, %v686
    %704 = vmatpush.bf16.msra.mxu0 %v695
    %705 = vmatpush.bf16.msra.mxu0 %v694
    %706 = vmatpush.bf16.msra.mxu0 %v693
    %707 = vmatpush.bf16.msra.mxu0 %v692
    %708 = vmatpush.bf16.msra.mxu0 %v691
    %709 = vmatpush.bf16.msra.mxu0 %v690
    %710 = vmatpush.bf16.msra.mxu0 %v689
    %711 = vmatpush.bf16.msra.mxu0 %v688
    %712 = vmatmul.bf16.gmra.mxu0 %v294
    %v713 = vpop.f32.mrf.mxu0
    %v714 = vadd.f32 %v617, %v713
    %v715 = vpop.f32.mrf.mxu0
    %v716 = vadd.f32 %v619, %v715
    %717 = vmatmul.bf16.gmra.mxu0 %v295
    %v718 = vpop.f32.mrf.mxu0
    %v719 = vadd.f32 %v622, %v718
    %v720 = vpop.f32.mrf.mxu0
    %v721 = vadd.f32 %v624, %v720
    %722 = vmatmul.bf16.gmra.mxu0 %v296
    %v723 = vpop.f32.mrf.mxu0
    %v724 = vadd.f32 %v627, %v723
    %v725 = vpop.f32.mrf.mxu0
    %v726 = vadd.f32 %v629, %v725
    %727 = vmatmul.bf16.gmra.mxu0 %v297
    %v728 = vpop.f32.mrf.mxu0
    %v729 = vadd.f32 %v632, %v728
    %v730 = vpop.f32.mrf.mxu0
    %v731 = vadd.f32 %v634, %v730
    %732 = vmatmul.bf16.gmra.mxu0 %v298
    %v733 = vpop.f32.mrf.mxu0
    %v734 = vadd.f32 %v637, %v733
    %v735 = vpop.f32.mrf.mxu0
    %v736 = vadd.f32 %v639, %v735
    %737 = vmatmul.bf16.gmra.mxu0 %v299
    %v738 = vpop.f32.mrf.mxu0
    %v739 = vadd.f32 %v642, %v738
    %v740 = vpop.f32.mrf.mxu0
    %v741 = vadd.f32 %v644, %v740
    %742 = vmatmul.bf16.gmra.mxu0 %v300
    %v743 = vpop.f32.mrf.mxu0
    %v744 = vadd.f32 %v647, %v743
    %v745 = vpop.f32.mrf.mxu0
    %v746 = vadd.f32 %v649, %v745
    %747 = vmatmul.bf16.gmra.mxu0 %v301
    %v748 = vpop.f32.mrf.mxu0
    %v749 = vadd.f32 %v652, %v748
    %v750 = vpop.f32.mrf.mxu0
    %v751 = vadd.f32 %v654, %v750
    %752 = vdwg.mxu0
    %v753 = vmul.f32 %v321, %v519
    %v754 = vmul.f32 %v326, %v520
    %v755 = vmul.f32 %v331, %v521
    %v756 = vmul.f32 %v336, %v522
    %v757 = vmul.f32 %v341, %v523
    %v758 = vmul.f32 %v346, %v524
    %v759 = vmul.f32 %v351, %v525
    %v760 = vmul.f32 %v356, %v526
    %v761 = vmul.f32 %v361, %v527
    %v762 = vmul.f32 %v366, %v528
    %v763 = vmul.f32 %v371, %v529
    %v764 = vmul.f32 %v376, %v530
    %v765 = vmul.f32 %v381, %v531
    %v766 = vmul.f32 %v386, %v532
    %v767 = vmul.f32 %v391, %v533
    %v768 = vmul.f32 %v396, %v534
    %v769 = vpack.c.bf16 %v754, %v753
    %v770 = vpack.c.bf16 %v756, %v755
    %v771 = vpack.c.bf16 %v758, %v757
    %v772 = vpack.c.bf16 %v760, %v759
    %v773 = vpack.c.bf16 %v762, %v761
    %v774 = vpack.c.bf16 %v764, %v763
    %v775 = vpack.c.bf16 %v766, %v765
    %v776 = vpack.c.bf16 %v768, %v767
    %777 = vmatpush.bf16.msra.mxu0 %v776
    %778 = vmatpush.bf16.msra.mxu0 %v775
    %779 = vmatpush.bf16.msra.mxu0 %v774
    %780 = vmatpush.bf16.msra.mxu0 %v773
    %781 = vmatpush.bf16.msra.mxu0 %v772
    %782 = vmatpush.bf16.msra.mxu0 %v771
    %783 = vmatpush.bf16.msra.mxu0 %v770
    %784 = vmatpush.bf16.msra.mxu0 %v769
    %785 = vmatmul.bf16.gmra.mxu0 %v454
    %v786 = vpop.f32.mrf.mxu0
    %v787 = vadd.f32 0.0, %v786
    %v788 = vpop.f32.mrf.mxu0
    %v789 = vadd.f32 0.0, %v788
    %790 = vmatmul.bf16.gmra.mxu0 %v455
    %v791 = vpop.f32.mrf.mxu0
    %v792 = vadd.f32 0.0, %v791
    %v793 = vpop.f32.mrf.mxu0
    %v794 = vadd.f32 0.0, %v793
    %795 = vmatmul.bf16.gmra.mxu0 %v456
    %v796 = vpop.f32.mrf.mxu0
    %v797 = vadd.f32 0.0, %v796
    %v798 = vpop.f32.mrf.mxu0
    %v799 = vadd.f32 0.0, %v798
    %800 = vmatmul.bf16.gmra.mxu0 %v457
    %v801 = vpop.f32.mrf.mxu0
    %v802 = vadd.f32 0.0, %v801
    %v803 = vpop.f32.mrf.mxu0
    %v804 = vadd.f32 0.0, %v803
    %805 = vmatmul.bf16.gmra.mxu0 %v458
    %v806 = vpop.f32.mrf.mxu0
    %v807 = vadd.f32 0.0, %v806
    %v808 = vpop.f32.mrf.mxu0
    %v809 = vadd.f32 0.0, %v808
    %810 = vmatmul.bf16.gmra.mxu0 %v459
    %v811 = vpop.f32.mrf.mxu0
    %v812 = vadd.f32 0.0, %v811
    %v813 = vpop.f32.mrf.mxu0
    %v814 = vadd.f32 0.0, %v813
    %815 = vmatmul.bf16.gmra.mxu0 %v460
    %v816 = vpop.f32.mrf.mxu0
    %v817 = vadd.f32 0.0, %v816
    %v818 = vpop.f32.mrf.mxu0
    %v819 = vadd.f32 0.0, %v818
    %820 = vmatmul.bf16.gmra.mxu0 %v461
    %v821 = vpop.f32.mrf.mxu0
    %v822 = vadd.f32 0.0, %v821
    %v823 = vpop.f32.mrf.mxu0
    %v824 = vadd.f32 0.0, %v823
    %825 = vdwg.mxu0
    %v826 = vmul.f32 %v321, %v787
    %v827 = vmul.f32 %v326, %v789
    %v828 = vmul.f32 %v331, %v792
    %v829 = vmul.f32 %v336, %v794
    %v830 = vmul.f32 %v341, %v797
    %v831 = vmul.f32 %v346, %v799
    %v832 = vmul.f32 %v351, %v802
    %v833 = vmul.f32 %v356, %v804
    %v834 = vmul.f32 %v361, %v807
    %v835 = vmul.f32 %v366, %v809
    %v836 = vmul.f32 %v371, %v812
    %v837 = vmul.f32 %v376, %v814
    %v838 = vmul.f32 %v381, %v817
    %v839 = vmul.f32 %v386, %v819
    %v840 = vmul.f32 %v391, %v822
    %v841 = vmul.f32 %v396, %v824
    %v842 = vpack.c.bf16 %v827, %v826
    %v843 = vpack.c.bf16 %v829, %v828
    %v844 = vpack.c.bf16 %v831, %v830
    %v845 = vpack.c.bf16 %v833, %v832
    %v846 = vpack.c.bf16 %v835, %v834
    %v847 = vpack.c.bf16 %v837, %v836
    %v848 = vpack.c.bf16 %v839, %v838
    %v849 = vpack.c.bf16 %v841, %v840
    %v850 = vld [vmem:[%s4 + $0x80] sm:$0xf]
    %v851 = vld [vmem:[%s4 + $0x84] sm:$0xf]
    %v852 = vld [vmem:[%s4 + $0x88] sm:$0xf]
    %v853 = vld [vmem:[%s4 + $0x8c] sm:$0xf]
    %v854 = vld [vmem:[%s4 + $0x90] sm:$0xf]
    %v855 = vld [vmem:[%s4 + $0x94] sm:$0xf]
    %v856 = vld [vmem:[%s4 + $0x98] sm:$0xf]
    %v857 = vld [vmem:[%s4 + $0x9c] sm:$0xf]
    %v858 = vld [vmem:[%s4 + $0xa0] sm:$0xf]
    %v859 = vld [vmem:[%s4 + $0xa4] sm:$0xf]
    %v860 = vld [vmem:[%s4 + $0xa8] sm:$0xf]
    %v861 = vld [vmem:[%s4 + $0xac] sm:$0xf]
    %v862 = vld [vmem:[%s4 + $0xb0] sm:$0xf]
    %v863 = vld [vmem:[%s4 + $0xb4] sm:$0xf]
    %v864 = vld [vmem:[%s4 + $0xb8] sm:$0xf]
    %v865 = vld [vmem:[%s4 + $0xbc] sm:$0xf]
    %v882 = vunpack.c.l.b16 %v850
    %v883 = vunpack.c.l.b16 %v851
    %v884 = vunpack.c.l.b16 %v852
    %v885 = vunpack.c.l.b16 %v853
    %v886 = vunpack.c.l.b16 %v854
    %v887 = vunpack.c.l.b16 %v855
    %v888 = vunpack.c.l.b16 %v856
    %v889 = vunpack.c.l.b16 %v857
    %v890 = vunpack.c.l.b16 %v858
    %v891 = vunpack.c.l.b16 %v859
    %v892 = vunpack.c.l.b16 %v860
    %v893 = vunpack.c.l.b16 %v861
    %v894 = vunpack.c.l.b16 %v862
    %v895 = vunpack.c.l.b16 %v863
    %v896 = vunpack.c.l.b16 %v864
    %v897 = vunpack.c.l.b16 %v865
    %v898 = vpack.c.b16 %v883, %v882
    %v899 = vpack.c.b16 %v885, %v884
    %v900 = vpack.c.b16 %v887, %v886
    %v901 = vpack.c.b16 %v889, %v888
    %v902 = vpack.c.b16 %v891, %v890
    %v903 = vpack.c.b16 %v893, %v892
    %v904 = vpack.c.b16 %v895, %v894
    %v905 = vpack.c.b16 %v897, %v896
    %914 = vmatpush.bf16.msra.mxu0 %v905
    %915 = vmatpush.bf16.msra.mxu0 %v904
    %916 = vmatpush.bf16.msra.mxu0 %v903
    %917 = vmatpush.bf16.msra.mxu0 %v902
    %918 = vmatpush.bf16.msra.mxu0 %v901
    %919 = vmatpush.bf16.msra.mxu0 %v900
    %920 = vmatpush.bf16.msra.mxu0 %v899
    %921 = vmatpush.bf16.msra.mxu0 %v898
    %922 = vmatmul.bf16.gmra.mxu0 %v842
    %v923 = vpop.f32.mrf.mxu0
    %v924 = vadd.f32 0.0, %v923
    %v925 = vpop.f32.mrf.mxu0
    %v926 = vadd.f32 0.0, %v925
    %927 = vmatmul.bf16.gmra.mxu0 %v843
    %v928 = vpop.f32.mrf.mxu0
    %v929 = vadd.f32 0.0, %v928
    %v930 = vpop.f32.mrf.mxu0
    %v931 = vadd.f32 0.0, %v930
    %932 = vmatmul.bf16.gmra.mxu0 %v844
    %v933 = vpop.f32.mrf.mxu0
    %v934 = vadd.f32 0.0, %v933
    %v935 = vpop.f32.mrf.mxu0
    %v936 = vadd.f32 0.0, %v935
    %937 = vmatmul.bf16.gmra.mxu0 %v845
    %v938 = vpop.f32.mrf.mxu0
    %v939 = vadd.f32 0.0, %v938
    %v940 = vpop.f32.mrf.mxu0
    %v941 = vadd.f32 0.0, %v940
    %942 = vmatmul.bf16.gmra.mxu0 %v846
    %v943 = vpop.f32.mrf.mxu0
    %v944 = vadd.f32 0.0, %v943
    %v945 = vpop.f32.mrf.mxu0
    %v946 = vadd.f32 0.0, %v945
    %947 = vmatmul.bf16.gmra.mxu0 %v847
    %v948 = vpop.f32.mrf.mxu0
    %v949 = vadd.f32 0.0, %v948
    %v950 = vpop.f32.mrf.mxu0
    %v951 = vadd.f32 0.0, %v950
    %952 = vmatmul.bf16.gmra.mxu0 %v848
    %v953 = vpop.f32.mrf.mxu0
    %v954 = vadd.f32 0.0, %v953
    %v955 = vpop.f32.mrf.mxu0
    %v956 = vadd.f32 0.0, %v955
    %957 = vmatmul.bf16.gmra.mxu0 %v849
    %v958 = vpop.f32.mrf.mxu0
    %v959 = vadd.f32 0.0, %v958
    %v960 = vpop.f32.mrf.mxu0
    %v961 = vadd.f32 0.0, %v960
    %962 = vdwg.mxu0
    %v963 = vadd.f32 %v714, %v924
    %v964 = vadd.f32 %v716, %v926
    %v965 = vadd.f32 %v719, %v929
    %v966 = vadd.f32 %v721, %v931
    %v967 = vadd.f32 %v724, %v934
    %v968 = vadd.f32 %v726, %v936
    %v969 = vadd.f32 %v729, %v939
    %v970 = vadd.f32 %v731, %v941
    %v971 = vadd.f32 %v734, %v944
    %v972 = vadd.f32 %v736, %v946
    %v973 = vadd.f32 %v739, %v949
    %v974 = vadd.f32 %v741, %v951
    %v975 = vadd.f32 %v744, %v954
    %v976 = vadd.f32 %v746, %v956
    %v977 = vadd.f32 %v749, %v959
    %v978 = vadd.f32 %v751, %v961
    %v979 = vmul.f32 %v321, %v826
    %v980 = vmul.f32 %v326, %v827
    %v981 = vmul.f32 %v331, %v828
    %v982 = vmul.f32 %v336, %v829
    %v983 = vmul.f32 %v341, %v830
    %v984 = vmul.f32 %v346, %v831
    %v985 = vmul.f32 %v351, %v832
    %v986 = vmul.f32 %v356, %v833
    %v987 = vmul.f32 %v361, %v834
    %v988 = vmul.f32 %v366, %v835
    %v989 = vmul.f32 %v371, %v836
    %v990 = vmul.f32 %v376, %v837
    %v991 = vmul.f32 %v381, %v838
    %v992 = vmul.f32 %v386, %v839
    %v993 = vmul.f32 %v391, %v840
    %v994 = vmul.f32 %v396, %v841
    %v995 = vpack.c.bf16 %v980, %v979
    %v996 = vpack.c.bf16 %v982, %v981
    %v997 = vpack.c.bf16 %v984, %v983
    %v998 = vpack.c.bf16 %v986, %v985
    %v999 = vpack.c.bf16 %v988, %v987
    %v1000 = vpack.c.bf16 %v990, %v989
    %v1001 = vpack.c.bf16 %v992, %v991
    %v1002 = vpack.c.bf16 %v994, %v993
    %1003 = vmatpush.bf16.msra.mxu0 %v1002
    %1004 = vmatpush.bf16.msra.mxu0 %v1001
    %1005 = vmatpush.bf16.msra.mxu0 %v1000
    %1006 = vmatpush.bf16.msra.mxu0 %v999
    %1007 = vmatpush.bf16.msra.mxu0 %v998
    %1008 = vmatpush.bf16.msra.mxu0 %v997
    %1009 = vmatpush.bf16.msra.mxu0 %v996
    %1010 = vmatpush.bf16.msra.mxu0 %v995
    %1011 = vmatmul.bf16.gmra.mxu0 %v454
    %v1012 = vpop.f32.mrf.mxu0
    %v1013 = vadd.f32 0.0, %v1012
    %v1014 = vpop.f32.mrf.mxu0
    %v1015 = vadd.f32 0.0, %v1014
    %1016 = vmatmul.bf16.gmra.mxu0 %v455
    %v1017 = vpop.f32.mrf.mxu0
    %v1018 = vadd.f32 0.0, %v1017
    %v1019 = vpop.f32.mrf.mxu0
    %v1020 = vadd.f32 0.0, %v1019
    %1021 = vmatmul.bf16.gmra.mxu0 %v456
    %v1022 = vpop.f32.mrf.mxu0
    %v1023 = vadd.f32 0.0, %v1022
    %v1024 = vpop.f32.mrf.mxu0
    %v1025 = vadd.f32 0.0, %v1024
    %1026 = vmatmul.bf16.gmra.mxu0 %v457
    %v1027 = vpop.f32.mrf.mxu0
    %v1028 = vadd.f32 0.0, %v1027
    %v1029 = vpop.f32.mrf.mxu0
    %v1030 = vadd.f32 0.0, %v1029
    %1031 = vmatmul.bf16.gmra.mxu0 %v458
    %v1032 = vpop.f32.mrf.mxu0
    %v1033 = vadd.f32 0.0, %v1032
    %v1034 = vpop.f32.mrf.mxu0
    %v1035 = vadd.f32 0.0, %v1034
    %1036 = vmatmul.bf16.gmra.mxu0 %v459
    %v1037 = vpop.f32.mrf.mxu0
    %v1038 = vadd.f32 0.0, %v1037
    %v1039 = vpop.f32.mrf.mxu0
    %v1040 = vadd.f32 0.0, %v1039
    %1041 = vmatmul.bf16.gmra.mxu0 %v460
    %v1042 = vpop.f32.mrf.mxu0
    %v1043 = vadd.f32 0.0, %v1042
    %v1044 = vpop.f32.mrf.mxu0
    %v1045 = vadd.f32 0.0, %v1044
    %1046 = vmatmul.bf16.gmra.mxu0 %v461
    %v1047 = vpop.f32.mrf.mxu0
    %v1048 = vadd.f32 0.0, %v1047
    %v1049 = vpop.f32.mrf.mxu0
    %v1050 = vadd.f32 0.0, %v1049
    %1051 = vdwg.mxu0
    %v1052 = vmul.f32 %v321, %v1013
    %v1053 = vmul.f32 %v326, %v1015
    %v1054 = vmul.f32 %v331, %v1018
    %v1055 = vmul.f32 %v336, %v1020
    %v1056 = vmul.f32 %v341, %v1023
    %v1057 = vmul.f32 %v346, %v1025
    %v1058 = vmul.f32 %v351, %v1028
    %v1059 = vmul.f32 %v356, %v1030
    %v1060 = vmul.f32 %v361, %v1033
    %v1061 = vmul.f32 %v366, %v1035
    %v1062 = vmul.f32 %v371, %v1038
    %v1063 = vmul.f32 %v376, %v1040
    %v1064 = vmul.f32 %v381, %v1043
    %v1065 = vmul.f32 %v386, %v1045
    %v1066 = vmul.f32 %v391, %v1048
    %v1067 = vmul.f32 %v396, %v1050
    %v1068 = vpack.c.bf16 %v1053, %v1052
    %v1069 = vpack.c.bf16 %v1055, %v1054
    %v1070 = vpack.c.bf16 %v1057, %v1056
    %v1071 = vpack.c.bf16 %v1059, %v1058
    %v1072 = vpack.c.bf16 %v1061, %v1060
    %v1073 = vpack.c.bf16 %v1063, %v1062
    %v1074 = vpack.c.bf16 %v1065, %v1064
    %v1075 = vpack.c.bf16 %v1067, %v1066
    %v1076 = vld [vmem:[%s4 + $0xc0] sm:$0xf]
    %v1077 = vld [vmem:[%s4 + $0xc4] sm:$0xf]
    %v1078 = vld [vmem:[%s4 + $0xc8] sm:$0xf]
    %v1079 = vld [vmem:[%s4 + $0xcc] sm:$0xf]
    %v1080 = vld [vmem:[%s4 + $0xd0] sm:$0xf]
    %v1081 = vld [vmem:[%s4 + $0xd4] sm:$0xf]
    %v1082 = vld [vmem:[%s4 + $0xd8] sm:$0xf]
    %v1083 = vld [vmem:[%s4 + $0xdc] sm:$0xf]
    %v1084 = vld [vmem:[%s4 + $0xe0] sm:$0xf]
    %v1085 = vld [vmem:[%s4 + $0xe4] sm:$0xf]
    %v1086 = vld [vmem:[%s4 + $0xe8] sm:$0xf]
    %v1087 = vld [vmem:[%s4 + $0xec] sm:$0xf]
    %v1088 = vld [vmem:[%s4 + $0xf0] sm:$0xf]
    %v1089 = vld [vmem:[%s4 + $0xf4] sm:$0xf]
    %v1090 = vld [vmem:[%s4 + $0xf8] sm:$0xf]
    %v1091 = vld [vmem:[%s4 + $0xfc] sm:$0xf]
    %v1108 = vunpack.c.l.b16 %v1076
    %v1109 = vunpack.c.l.b16 %v1077
    %v1110 = vunpack.c.l.b16 %v1078
    %v1111 = vunpack.c.l.b16 %v1079
    %v1112 = vunpack.c.l.b16 %v1080
    %v1113 = vunpack.c.l.b16 %v1081
    %v1114 = vunpack.c.l.b16 %v1082
    %v1115 = vunpack.c.l.b16 %v1083
    %v1116 = vunpack.c.l.b16 %v1084
    %v1117 = vunpack.c.l.b16 %v1085
    %v1118 = vunpack.c.l.b16 %v1086
    %v1119 = vunpack.c.l.b16 %v1087
    %v1120 = vunpack.c.l.b16 %v1088
    %v1121 = vunpack.c.l.b16 %v1089
    %v1122 = vunpack.c.l.b16 %v1090
    %v1123 = vunpack.c.l.b16 %v1091
    %v1124 = vpack.c.b16 %v1109, %v1108
    %v1125 = vpack.c.b16 %v1111, %v1110
    %v1126 = vpack.c.b16 %v1113, %v1112
    %v1127 = vpack.c.b16 %v1115, %v1114
    %v1128 = vpack.c.b16 %v1117, %v1116
    %v1129 = vpack.c.b16 %v1119, %v1118
    %v1130 = vpack.c.b16 %v1121, %v1120
    %v1131 = vpack.c.b16 %v1123, %v1122
    %1140 = vmatpush.bf16.msra.mxu0 %v1131
    %1141 = vmatpush.bf16.msra.mxu0 %v1130
    %1142 = vmatpush.bf16.msra.mxu0 %v1129
    %1143 = vmatpush.bf16.msra.mxu0 %v1128
    %1144 = vmatpush.bf16.msra.mxu0 %v1127
    %1145 = vmatpush.bf16.msra.mxu0 %v1126
    %1146 = vmatpush.bf16.msra.mxu0 %v1125
    %1147 = vmatpush.bf16.msra.mxu0 %v1124
    %1148 = vmatmul.bf16.gmra.mxu0 %v1068
    %v1149 = vpop.f32.mrf.mxu0
    %v1150 = vadd.f32 0.0, %v1149
    %v1151 = vpop.f32.mrf.mxu0
    %v1152 = vadd.f32 0.0, %v1151
    %1153 = vmatmul.bf16.gmra.mxu0 %v1069
    %v1154 = vpop.f32.mrf.mxu0
    %v1155 = vadd.f32 0.0, %v1154
    %v1156 = vpop.f32.mrf.mxu0
    %v1157 = vadd.f32 0.0, %v1156
    %1158 = vmatmul.bf16.gmra.mxu0 %v1070
    %v1159 = vpop.f32.mrf.mxu0
    %v1160 = vadd.f32 0.0, %v1159
    %v1161 = vpop.f32.mrf.mxu0
    %v1162 = vadd.f32 0.0, %v1161
    %1163 = vmatmul.bf16.gmra.mxu0 %v1071
    %v1164 = vpop.f32.mrf.mxu0
    %v1165 = vadd.f32 0.0, %v1164
    %v1166 = vpop.f32.mrf.mxu0
    %v1167 = vadd.f32 0.0, %v1166
    %1168 = vmatmul.bf16.gmra.mxu0 %v1072
    %v1169 = vpop.f32.mrf.mxu0
    %v1170 = vadd.f32 0.0, %v1169
    %v1171 = vpop.f32.mrf.mxu0
    %v1172 = vadd.f32 0.0, %v1171
    %1173 = vmatmul.bf16.gmra.mxu0 %v1073
    %v1174 = vpop.f32.mrf.mxu0
    %v1175 = vadd.f32 0.0, %v1174
    %v1176 = vpop.f32.mrf.mxu0
    %v1177 = vadd.f32 0.0, %v1176
    %1178 = vmatmul.bf16.gmra.mxu0 %v1074
    %v1179 = vpop.f32.mrf.mxu0
    %v1180 = vadd.f32 0.0, %v1179
    %v1181 = vpop.f32.mrf.mxu0
    %v1182 = vadd.f32 0.0, %v1181
    %1183 = vmatmul.bf16.gmra.mxu0 %v1075
    %v1184 = vpop.f32.mrf.mxu0
    %v1185 = vadd.f32 0.0, %v1184
    %v1186 = vpop.f32.mrf.mxu0
    %v1187 = vadd.f32 0.0, %v1186
    %1188 = vdwg.mxu0
    %v1189 = vadd.f32 %v963, %v1150
    %v1190 = vadd.f32 %v964, %v1152
    %v1191 = vadd.f32 %v965, %v1155
    %v1192 = vadd.f32 %v966, %v1157
    %v1193 = vadd.f32 %v967, %v1160
    %v1194 = vadd.f32 %v968, %v1162
    %v1195 = vadd.f32 %v969, %v1165
    %v1196 = vadd.f32 %v970, %v1167
    %v1197 = vadd.f32 %v971, %v1170
    %v1198 = vadd.f32 %v972, %v1172
    %v1199 = vadd.f32 %v973, %v1175
    %v1200 = vadd.f32 %v974, %v1177
    %v1201 = vadd.f32 %v975, %v1180
    %v1202 = vadd.f32 %v976, %v1182
    %v1203 = vadd.f32 %v977, %v1185
    %v1204 = vadd.f32 %v978, %v1187
    %v1205 = vld [vmem:[%s5] sm:$0x1]
    %v1207 = vperm.slane %v1205, 0
    %v1209 = vadd.f32 %v1189, %v1207
    %v1210 = vadd.f32 %v1190, %v1207
    %v1211 = vadd.f32 %v1191, %v1207
    %v1212 = vadd.f32 %v1192, %v1207
    %v1213 = vadd.f32 %v1193, %v1207
    %v1214 = vadd.f32 %v1194, %v1207
    %v1215 = vadd.f32 %v1195, %v1207
    %v1216 = vadd.f32 %v1196, %v1207
    %v1217 = vadd.f32 %v1197, %v1207
    %v1218 = vadd.f32 %v1198, %v1207
    %v1219 = vadd.f32 %v1199, %v1207
    %v1220 = vadd.f32 %v1200, %v1207
    %v1221 = vadd.f32 %v1201, %v1207
    %v1222 = vadd.f32 %v1202, %v1207
    %v1223 = vadd.f32 %v1203, %v1207
    %v1224 = vadd.f32 %v1204, %v1207
    %v1225 = vmax.f32 %v1209, 0.0
    %v1226 = vmax.f32 %v1210, 0.0
    %v1227 = vmax.f32 %v1211, 0.0
    %v1228 = vmax.f32 %v1212, 0.0
    %v1229 = vmax.f32 %v1213, 0.0
    %v1230 = vmax.f32 %v1214, 0.0
    %v1231 = vmax.f32 %v1215, 0.0
    %v1232 = vmax.f32 %v1216, 0.0
    %v1233 = vmax.f32 %v1217, 0.0
    %v1234 = vmax.f32 %v1218, 0.0
    %v1235 = vmax.f32 %v1219, 0.0
    %v1236 = vmax.f32 %v1220, 0.0
    %v1237 = vmax.f32 %v1221, 0.0
    %v1238 = vmax.f32 %v1222, 0.0
    %v1239 = vmax.f32 %v1223, 0.0
    %v1240 = vmax.f32 %v1224, 0.0
    %v1241 = vpack.c.bf16 %v1226, %v1225
    %v1242 = vpack.c.bf16 %v1228, %v1227
    %v1243 = vpack.c.bf16 %v1230, %v1229
    %v1244 = vpack.c.bf16 %v1232, %v1231
    %v1245 = vpack.c.bf16 %v1234, %v1233
    %v1246 = vpack.c.bf16 %v1236, %v1235
    %v1247 = vpack.c.bf16 %v1238, %v1237
    %v1248 = vpack.c.bf16 %v1240, %v1239
    %v1249 = vld [vmem:[#allocation8] sm:$0xf]
    %v1250 = vld [vmem:[#allocation8 + $0x4] sm:$0xf]
    %v1251 = vld [vmem:[#allocation8 + $0x8] sm:$0xf]
    %v1252 = vld [vmem:[#allocation8 + $0xc] sm:$0xf]
    %v1253 = vld [vmem:[#allocation8 + $0x10] sm:$0xf]
    %v1254 = vld [vmem:[#allocation8 + $0x14] sm:$0xf]
    %v1255 = vld [vmem:[#allocation8 + $0x18] sm:$0xf]
    %v1256 = vld [vmem:[#allocation8 + $0x1c] sm:$0xf]
    %v1257 = vld [vmem:[#allocation8 + $0x20] sm:$0xf]
    %v1258 = vld [vmem:[#allocation8 + $0x24] sm:$0xf]
    %v1259 = vld [vmem:[#allocation8 + $0x28] sm:$0xf]
    %v1260 = vld [vmem:[#allocation8 + $0x2c] sm:$0xf]
    %v1261 = vld [vmem:[#allocation8 + $0x30] sm:$0xf]
    %v1262 = vld [vmem:[#allocation8 + $0x34] sm:$0xf]
    %v1263 = vld [vmem:[#allocation8 + $0x38] sm:$0xf]
    %v1264 = vld [vmem:[#allocation8 + $0x3c] sm:$0xf]
    %v1265 = vmul.f32 %v321, %v1225
    %v1266 = vmul.f32 %v326, %v1226
    %v1267 = vmul.f32 %v331, %v1227
    %v1268 = vmul.f32 %v336, %v1228
    %v1269 = vmul.f32 %v341, %v1229
    %v1270 = vmul.f32 %v346, %v1230
    %v1271 = vmul.f32 %v351, %v1231
    %v1272 = vmul.f32 %v356, %v1232
    %v1273 = vmul.f32 %v361, %v1233
    %v1274 = vmul.f32 %v366, %v1234
    %v1275 = vmul.f32 %v371, %v1235
    %v1276 = vmul.f32 %v376, %v1236
    %v1277 = vmul.f32 %v381, %v1237
    %v1278 = vmul.f32 %v386, %v1238
    %v1279 = vmul.f32 %v391, %v1239
    %v1280 = vmul.f32 %v396, %v1240
    %v1281 = vpack.c.bf16 %v1266, %v1265
    %v1282 = vpack.c.bf16 %v1268, %v1267
    %v1283 = vpack.c.bf16 %v1270, %v1269
    %v1284 = vpack.c.bf16 %v1272, %v1271
    %v1285 = vpack.c.bf16 %v1274, %v1273
    %v1286 = vpack.c.bf16 %v1276, %v1275
    %v1287 = vpack.c.bf16 %v1278, %v1277
    %v1288 = vpack.c.bf16 %v1280, %v1279
    %1289 = vmatpush.bf16.msra.mxu0 %v1288
    %1290 = vmatpush.bf16.msra.mxu0 %v1287
    %1291 = vmatpush.bf16.msra.mxu0 %v1286
    %1292 = vmatpush.bf16.msra.mxu0 %v1285
    %1293 = vmatpush.bf16.msra.mxu0 %v1284
    %1294 = vmatpush.bf16.msra.mxu0 %v1283
    %1295 = vmatpush.bf16.msra.mxu0 %v1282
    %1296 = vmatpush.bf16.msra.mxu0 %v1281
    %1297 = vmatmul.bf16.gmra.mxu0 %v454
    %v1298 = vpop.f32.mrf.mxu0
    %v1299 = vadd.f32 0.0, %v1298
    %v1300 = vpop.f32.mrf.mxu0
    %v1301 = vadd.f32 0.0, %v1300
    %1302 = vmatmul.bf16.gmra.mxu0 %v455
    %v1303 = vpop.f32.mrf.mxu0
    %v1304 = vadd.f32 0.0, %v1303
    %v1305 = vpop.f32.mrf.mxu0
    %v1306 = vadd.f32 0.0, %v1305
    %1307 = vmatmul.bf16.gmra.mxu0 %v456
    %v1308 = vpop.f32.mrf.mxu0
    %v1309 = vadd.f32 0.0, %v1308
    %v1310 = vpop.f32.mrf.mxu0
    %v1311 = vadd.f32 0.0, %v1310
    %1312 = vmatmul.bf16.gmra.mxu0 %v457
    %v1313 = vpop.f32.mrf.mxu0
    %v1314 = vadd.f32 0.0, %v1313
    %v1315 = vpop.f32.mrf.mxu0
    %v1316 = vadd.f32 0.0, %v1315
    %1317 = vmatmul.bf16.gmra.mxu0 %v458
    %v1318 = vpop.f32.mrf.mxu0
    %v1319 = vadd.f32 0.0, %v1318
    %v1320 = vpop.f32.mrf.mxu0
    %v1321 = vadd.f32 0.0, %v1320
    %1322 = vmatmul.bf16.gmra.mxu0 %v459
    %v1323 = vpop.f32.mrf.mxu0
    %v1324 = vadd.f32 0.0, %v1323
    %v1325 = vpop.f32.mrf.mxu0
    %v1326 = vadd.f32 0.0, %v1325
    %1327 = vmatmul.bf16.gmra.mxu0 %v460
    %v1328 = vpop.f32.mrf.mxu0
    %v1329 = vadd.f32 0.0, %v1328
    %v1330 = vpop.f32.mrf.mxu0
    %v1331 = vadd.f32 0.0, %v1330
    %1332 = vmatmul.bf16.gmra.mxu0 %v461
    %v1333 = vpop.f32.mrf.mxu0
    %v1334 = vadd.f32 0.0, %v1333
    %v1335 = vpop.f32.mrf.mxu0
    %v1336 = vadd.f32 0.0, %v1335
    %1337 = vdwg.mxu0
    %v1338 = vmul.f32 %v321, %v1299
    %v1339 = vmul.f32 %v326, %v1301
    %v1340 = vmul.f32 %v331, %v1304
    %v1341 = vmul.f32 %v336, %v1306
    %v1342 = vmul.f32 %v341, %v1309
    %v1343 = vmul.f32 %v346, %v1311
    %v1344 = vmul.f32 %v351, %v1314
    %v1345 = vmul.f32 %v356, %v1316
    %v1346 = vmul.f32 %v361, %v1319
    %v1347 = vmul.f32 %v366, %v1321
    %v1348 = vmul.f32 %v371, %v1324
    %v1349 = vmul.f32 %v376, %v1326
    %v1350 = vmul.f32 %v381, %v1329
    %v1351 = vmul.f32 %v386, %v1331
    %v1352 = vmul.f32 %v391, %v1334
    %v1353 = vmul.f32 %v396, %v1336
    %v1354 = vpack.c.bf16 %v1339, %v1338
    %v1355 = vpack.c.bf16 %v1341, %v1340
    %v1356 = vpack.c.bf16 %v1343, %v1342
    %v1357 = vpack.c.bf16 %v1345, %v1344
    %v1358 = vpack.c.bf16 %v1347, %v1346
    %v1359 = vpack.c.bf16 %v1349, %v1348
    %v1360 = vpack.c.bf16 %v1351, %v1350
    %v1361 = vpack.c.bf16 %v1353, %v1352
    %v1362 = vld [vmem:[#allocation8 + $0x40] sm:$0xf]
    %v1363 = vld [vmem:[#allocation8 + $0x44] sm:$0xf]
    %v1364 = vld [vmem:[#allocation8 + $0x48] sm:$0xf]
    %v1365 = vld [vmem:[#allocation8 + $0x4c] sm:$0xf]
    %v1366 = vld [vmem:[#allocation8 + $0x50] sm:$0xf]
    %v1367 = vld [vmem:[#allocation8 + $0x54] sm:$0xf]
    %v1368 = vld [vmem:[#allocation8 + $0x58] sm:$0xf]
    %v1369 = vld [vmem:[#allocation8 + $0x5c] sm:$0xf]
    %v1370 = vld [vmem:[#allocation8 + $0x60] sm:$0xf]
    %v1371 = vld [vmem:[#allocation8 + $0x64] sm:$0xf]
    %v1372 = vld [vmem:[#allocation8 + $0x68] sm:$0xf]
    %v1373 = vld [vmem:[#allocation8 + $0x6c] sm:$0xf]
    %v1374 = vld [vmem:[#allocation8 + $0x70] sm:$0xf]
    %v1375 = vld [vmem:[#allocation8 + $0x74] sm:$0xf]
    %v1376 = vld [vmem:[#allocation8 + $0x78] sm:$0xf]
    %v1377 = vld [vmem:[#allocation8 + $0x7c] sm:$0xf]
    %v1394 = vunpack.c.l.b16 %v1362
    %v1395 = vunpack.c.l.b16 %v1363
    %v1396 = vunpack.c.l.b16 %v1364
    %v1397 = vunpack.c.l.b16 %v1365
    %v1398 = vunpack.c.l.b16 %v1366
    %v1399 = vunpack.c.l.b16 %v1367
    %v1400 = vunpack.c.l.b16 %v1368
    %v1401 = vunpack.c.l.b16 %v1369
    %v1402 = vunpack.c.l.b16 %v1370
    %v1403 = vunpack.c.l.b16 %v1371
    %v1404 = vunpack.c.l.b16 %v1372
    %v1405 = vunpack.c.l.b16 %v1373
    %v1406 = vunpack.c.l.b16 %v1374
    %v1407 = vunpack.c.l.b16 %v1375
    %v1408 = vunpack.c.l.b16 %v1376
    %v1409 = vunpack.c.l.b16 %v1377
    %v1410 = vpack.c.b16 %v1395, %v1394
    %v1411 = vpack.c.b16 %v1397, %v1396
    %v1412 = vpack.c.b16 %v1399, %v1398
    %v1413 = vpack.c.b16 %v1401, %v1400
    %v1414 = vpack.c.b16 %v1403, %v1402
    %v1415 = vpack.c.b16 %v1405, %v1404
    %v1416 = vpack.c.b16 %v1407, %v1406
    %v1417 = vpack.c.b16 %v1409, %v1408
    %1426 = vmatpush.bf16.msra.mxu0 %v1417
    %1427 = vmatpush.bf16.msra.mxu0 %v1416
    %1428 = vmatpush.bf16.msra.mxu0 %v1415
    %1429 = vmatpush.bf16.msra.mxu0 %v1414
    %1430 = vmatpush.bf16.msra.mxu0 %v1413
    %1431 = vmatpush.bf16.msra.mxu0 %v1412
    %1432 = vmatpush.bf16.msra.mxu0 %v1411
    %1433 = vmatpush.bf16.msra.mxu0 %v1410
    %1434 = vmatmul.bf16.gmra.mxu0 %v1354
    %v1435 = vpop.f32.mrf.mxu0
    %v1436 = vadd.f32 0.0, %v1435
    %v1437 = vpop.f32.mrf.mxu0
    %v1438 = vadd.f32 0.0, %v1437
    %1439 = vmatmul.bf16.gmra.mxu0 %v1355
    %v1440 = vpop.f32.mrf.mxu0
    %v1441 = vadd.f32 0.0, %v1440
    %v1442 = vpop.f32.mrf.mxu0
    %v1443 = vadd.f32 0.0, %v1442
    %1444 = vmatmul.bf16.gmra.mxu0 %v1356
    %v1445 = vpop.f32.mrf.mxu0
    %v1446 = vadd.f32 0.0, %v1445
    %v1447 = vpop.f32.mrf.mxu0
    %v1448 = vadd.f32 0.0, %v1447
    %1449 = vmatmul.bf16.gmra.mxu0 %v1357
    %v1450 = vpop.f32.mrf.mxu0
    %v1451 = vadd.f32 0.0, %v1450
    %v1452 = vpop.f32.mrf.mxu0
    %v1453 = vadd.f32 0.0, %v1452
    %1454 = vmatmul.bf16.gmra.mxu0 %v1358
    %v1455 = vpop.f32.mrf.mxu0
    %v1456 = vadd.f32 0.0, %v1455
    %v1457 = vpop.f32.mrf.mxu0
    %v1458 = vadd.f32 0.0, %v1457
    %1459 = vmatmul.bf16.gmra.mxu0 %v1359
    %v1460 = vpop.f32.mrf.mxu0
    %v1461 = vadd.f32 0.0, %v1460
    %v1462 = vpop.f32.mrf.mxu0
    %v1463 = vadd.f32 0.0, %v1462
    %1464 = vmatmul.bf16.gmra.mxu0 %v1360
    %v1465 = vpop.f32.mrf.mxu0
    %v1466 = vadd.f32 0.0, %v1465
    %v1467 = vpop.f32.mrf.mxu0
    %v1468 = vadd.f32 0.0, %v1467
    %1469 = vmatmul.bf16.gmra.mxu0 %v1361
    %v1470 = vpop.f32.mrf.mxu0
    %v1471 = vadd.f32 0.0, %v1470
    %v1472 = vpop.f32.mrf.mxu0
    %v1473 = vadd.f32 0.0, %v1472
    %1474 = vdwg.mxu0
    %v1491 = vunpack.c.l.b16 %v1249
    %v1492 = vunpack.c.l.b16 %v1250
    %v1493 = vunpack.c.l.b16 %v1251
    %v1494 = vunpack.c.l.b16 %v1252
    %v1495 = vunpack.c.l.b16 %v1253
    %v1496 = vunpack.c.l.b16 %v1254
    %v1497 = vunpack.c.l.b16 %v1255
    %v1498 = vunpack.c.l.b16 %v1256
    %v1499 = vunpack.c.l.b16 %v1257
    %v1500 = vunpack.c.l.b16 %v1258
    %v1501 = vunpack.c.l.b16 %v1259
    %v1502 = vunpack.c.l.b16 %v1260
    %v1503 = vunpack.c.l.b16 %v1261
    %v1504 = vunpack.c.l.b16 %v1262
    %v1505 = vunpack.c.l.b16 %v1263
    %v1506 = vunpack.c.l.b16 %v1264
    %v1507 = vpack.c.b16 %v1492, %v1491
    %v1508 = vpack.c.b16 %v1494, %v1493
    %v1509 = vpack.c.b16 %v1496, %v1495
    %v1510 = vpack.c.b16 %v1498, %v1497
    %v1511 = vpack.c.b16 %v1500, %v1499
    %v1512 = vpack.c.b16 %v1502, %v1501
    %v1513 = vpack.c.b16 %v1504, %v1503
    %v1514 = vpack.c.b16 %v1506, %v1505
    %1523 = vmatpush.bf16.msra.mxu0 %v1514
    %1524 = vmatpush.bf16.msra.mxu0 %v1513
    %1525 = vmatpush.bf16.msra.mxu0 %v1512
    %1526 = vmatpush.bf16.msra.mxu0 %v1511
    %1527 = vmatpush.bf16.msra.mxu0 %v1510
    %1528 = vmatpush.bf16.msra.mxu0 %v1509
    %1529 = vmatpush.bf16.msra.mxu0 %v1508
    %1530 = vmatpush.bf16.msra.mxu0 %v1507
    %1531 = vmatmul.bf16.gmra.mxu0 %v1241
    %v1532 = vpop.f32.mrf.mxu0
    %v1533 = vadd.f32 %v1436, %v1532
    %v1534 = vpop.f32.mrf.mxu0
    %v1535 = vadd.f32 %v1438, %v1534
    %1536 = vmatmul.bf16.gmra.mxu0 %v1242
    %v1537 = vpop.f32.mrf.mxu0
    %v1538 = vadd.f32 %v1441, %v1537
    %v1539 = vpop.f32.mrf.mxu0
    %v1540 = vadd.f32 %v1443, %v1539
    %1541 = vmatmul.bf16.gmra.mxu0 %v1243
    %v1542 = vpop.f32.mrf.mxu0
    %v1543 = vadd.f32 %v1446, %v1542
    %v1544 = vpop.f32.mrf.mxu0
    %v1545 = vadd.f32 %v1448, %v1544
    %1546 = vmatmul.bf16.gmra.mxu0 %v1244
    %v1547 = vpop.f32.mrf.mxu0
    %v1548 = vadd.f32 %v1451, %v1547
    %v1549 = vpop.f32.mrf.mxu0
    %v1550 = vadd.f32 %v1453, %v1549
    %1551 = vmatmul.bf16.gmra.mxu0 %v1245
    %v1552 = vpop.f32.mrf.mxu0
    %v1553 = vadd.f32 %v1456, %v1552
    %v1554 = vpop.f32.mrf.mxu0
    %v1555 = vadd.f32 %v1458, %v1554
    %1556 = vmatmul.bf16.gmra.mxu0 %v1246
    %v1557 = vpop.f32.mrf.mxu0
    %v1558 = vadd.f32 %v1461, %v1557
    %v1559 = vpop.f32.mrf.mxu0
    %v1560 = vadd.f32 %v1463, %v1559
    %1561 = vmatmul.bf16.gmra.mxu0 %v1247
    %v1562 = vpop.f32.mrf.mxu0
    %v1563 = vadd.f32 %v1466, %v1562
    %v1564 = vpop.f32.mrf.mxu0
    %v1565 = vadd.f32 %v1468, %v1564
    %1566 = vmatmul.bf16.gmra.mxu0 %v1248
    %v1567 = vpop.f32.mrf.mxu0
    %v1568 = vadd.f32 %v1471, %v1567
    %v1569 = vpop.f32.mrf.mxu0
    %v1570 = vadd.f32 %v1473, %v1569
    %1571 = vdwg.mxu0
    %v1572 = vmul.f32 %v321, %v1338
    %v1573 = vmul.f32 %v326, %v1339
    %v1574 = vmul.f32 %v331, %v1340
    %v1575 = vmul.f32 %v336, %v1341
    %v1576 = vmul.f32 %v341, %v1342
    %v1577 = vmul.f32 %v346, %v1343
    %v1578 = vmul.f32 %v351, %v1344
    %v1579 = vmul.f32 %v356, %v1345
    %v1580 = vmul.f32 %v361, %v1346
    %v1581 = vmul.f32 %v366, %v1347
    %v1582 = vmul.f32 %v371, %v1348
    %v1583 = vmul.f32 %v376, %v1349
    %v1584 = vmul.f32 %v381, %v1350
    %v1585 = vmul.f32 %v386, %v1351
    %v1586 = vmul.f32 %v391, %v1352
    %v1587 = vmul.f32 %v396, %v1353
    %v1588 = vpack.c.bf16 %v1573, %v1572
    %v1589 = vpack.c.bf16 %v1575, %v1574
    %v1590 = vpack.c.bf16 %v1577, %v1576
    %v1591 = vpack.c.bf16 %v1579, %v1578
    %v1592 = vpack.c.bf16 %v1581, %v1580
    %v1593 = vpack.c.bf16 %v1583, %v1582
    %v1594 = vpack.c.bf16 %v1585, %v1584
    %v1595 = vpack.c.bf16 %v1587, %v1586
    %1596 = vmatpush.bf16.msra.mxu0 %v1595
    %1597 = vmatpush.bf16.msra.mxu0 %v1594
    %1598 = vmatpush.bf16.msra.mxu0 %v1593
    %1599 = vmatpush.bf16.msra.mxu0 %v1592
    %1600 = vmatpush.bf16.msra.mxu0 %v1591
    %1601 = vmatpush.bf16.msra.mxu0 %v1590
    %1602 = vmatpush.bf16.msra.mxu0 %v1589
    %1603 = vmatpush.bf16.msra.mxu0 %v1588
    %1604 = vmatmul.bf16.gmra.mxu0 %v454
    %v1605 = vpop.f32.mrf.mxu0
    %v1606 = vadd.f32 0.0, %v1605
    %v1607 = vpop.f32.mrf.mxu0
    %v1608 = vadd.f32 0.0, %v1607
    %1609 = vmatmul.bf16.gmra.mxu0 %v455
    %v1610 = vpop.f32.mrf.mxu0
    %v1611 = vadd.f32 0.0, %v1610
    %v1612 = vpop.f32.mrf.mxu0
    %v1613 = vadd.f32 0.0, %v1612
    %1614 = vmatmul.bf16.gmra.mxu0 %v456
    %v1615 = vpop.f32.mrf.mxu0
    %v1616 = vadd.f32 0.0, %v1615
    %v1617 = vpop.f32.mrf.mxu0
    %v1618 = vadd.f32 0.0, %v1617
    %1619 = vmatmul.bf16.gmra.mxu0 %v457
    %v1620 = vpop.f32.mrf.mxu0
    %v1621 = vadd.f32 0.0, %v1620
    %v1622 = vpop.f32.mrf.mxu0
    %v1623 = vadd.f32 0.0, %v1622
    %1624 = vmatmul.bf16.gmra.mxu0 %v458
    %v1625 = vpop.f32.mrf.mxu0
    %v1626 = vadd.f32 0.0, %v1625
    %v1627 = vpop.f32.mrf.mxu0
    %v1628 = vadd.f32 0.0, %v1627
    %1629 = vmatmul.bf16.gmra.mxu0 %v459
    %v1630 = vpop.f32.mrf.mxu0
    %v1631 = vadd.f32 0.0, %v1630
    %v1632 = vpop.f32.mrf.mxu0
    %v1633 = vadd.f32 0.0, %v1632
    %1634 = vmatmul.bf16.gmra.mxu0 %v460
    %v1635 = vpop.f32.mrf.mxu0
    %v1636 = vadd.f32 0.0, %v1635
    %v1637 = vpop.f32.mrf.mxu0
    %v1638 = vadd.f32 0.0, %v1637
    %1639 = vmatmul.bf16.gmra.mxu0 %v461
    %v1640 = vpop.f32.mrf.mxu0
    %v1641 = vadd.f32 0.0, %v1640
    %v1642 = vpop.f32.mrf.mxu0
    %v1643 = vadd.f32 0.0, %v1642
    %1644 = vdwg.mxu0
    %v1645 = vmul.f32 %v321, %v1606
    %v1646 = vmul.f32 %v326, %v1608
    %v1647 = vmul.f32 %v331, %v1611
    %v1648 = vmul.f32 %v336, %v1613
    %v1649 = vmul.f32 %v341, %v1616
    %v1650 = vmul.f32 %v346, %v1618
    %v1651 = vmul.f32 %v351, %v1621
    %v1652 = vmul.f32 %v356, %v1623
    %v1653 = vmul.f32 %v361, %v1626
    %v1654 = vmul.f32 %v366, %v1628
    %v1655 = vmul.f32 %v371, %v1631
    %v1656 = vmul.f32 %v376, %v1633
    %v1657 = vmul.f32 %v381, %v1636
    %v1658 = vmul.f32 %v386, %v1638
    %v1659 = vmul.f32 %v391, %v1641
    %v1660 = vmul.f32 %v396, %v1643
    %v1661 = vpack.c.bf16 %v1646, %v1645
    %v1662 = vpack.c.bf16 %v1648, %v1647
    %v1663 = vpack.c.bf16 %v1650, %v1649
    %v1664 = vpack.c.bf16 %v1652, %v1651
    %v1665 = vpack.c.bf16 %v1654, %v1653
    %v1666 = vpack.c.bf16 %v1656, %v1655
    %v1667 = vpack.c.bf16 %v1658, %v1657
    %v1668 = vpack.c.bf16 %v1660, %v1659
    %v1669 = vld [vmem:[#allocation8 + $0x80] sm:$0xf]
    %v1670 = vld [vmem:[#allocation8 + $0x84] sm:$0xf]
    %v1671 = vld [vmem:[#allocation8 + $0x88] sm:$0xf]
    %v1672 = vld [vmem:[#allocation8 + $0x8c] sm:$0xf]
    %v1673 = vld [vmem:[#allocation8 + $0x90] sm:$0xf]
    %v1674 = vld [vmem:[#allocation8 + $0x94] sm:$0xf]
    %v1675 = vld [vmem:[#allocation8 + $0x98] sm:$0xf]
    %v1676 = vld [vmem:[#allocation8 + $0x9c] sm:$0xf]
    %v1677 = vld [vmem:[#allocation8 + $0xa0] sm:$0xf]
    %v1678 = vld [vmem:[#allocation8 + $0xa4] sm:$0xf]
    %v1679 = vld [vmem:[#allocation8 + $0xa8] sm:$0xf]
    %v1680 = vld [vmem:[#allocation8 + $0xac] sm:$0xf]
    %v1681 = vld [vmem:[#allocation8 + $0xb0] sm:$0xf]
    %v1682 = vld [vmem:[#allocation8 + $0xb4] sm:$0xf]
    %v1683 = vld [vmem:[#allocation8 + $0xb8] sm:$0xf]
    %v1684 = vld [vmem:[#allocation8 + $0xbc] sm:$0xf]
    %v1701 = vunpack.c.l.b16 %v1669
    %v1702 = vunpack.c.l.b16 %v1670
    %v1703 = vunpack.c.l.b16 %v1671
    %v1704 = vunpack.c.l.b16 %v1672
    %v1705 = vunpack.c.l.b16 %v1673
    %v1706 = vunpack.c.l.b16 %v1674
    %v1707 = vunpack.c.l.b16 %v1675
    %v1708 = vunpack.c.l.b16 %v1676
    %v1709 = vunpack.c.l.b16 %v1677
    %v1710 = vunpack.c.l.b16 %v1678
    %v1711 = vunpack.c.l.b16 %v1679
    %v1712 = vunpack.c.l.b16 %v1680
    %v1713 = vunpack.c.l.b16 %v1681
    %v1714 = vunpack.c.l.b16 %v1682
    %v1715 = vunpack.c.l.b16 %v1683
    %v1716 = vunpack.c.l.b16 %v1684
    %v1717 = vpack.c.b16 %v1702, %v1701
    %v1718 = vpack.c.b16 %v1704, %v1703
    %v1719 = vpack.c.b16 %v1706, %v1705
    %v1720 = vpack.c.b16 %v1708, %v1707
    %v1721 = vpack.c.b16 %v1710, %v1709
    %v1722 = vpack.c.b16 %v1712, %v1711
    %v1723 = vpack.c.b16 %v1714, %v1713
    %v1724 = vpack.c.b16 %v1716, %v1715
    %1733 = vmatpush.bf16.msra.mxu0 %v1724
    %1734 = vmatpush.bf16.msra.mxu0 %v1723
    %1735 = vmatpush.bf16.msra.mxu0 %v1722
    %1736 = vmatpush.bf16.msra.mxu0 %v1721
    %1737 = vmatpush.bf16.msra.mxu0 %v1720
    %1738 = vmatpush.bf16.msra.mxu0 %v1719
    %1739 = vmatpush.bf16.msra.mxu0 %v1718
    %1740 = vmatpush.bf16.msra.mxu0 %v1717
    %1741 = vmatmul.bf16.gmra.mxu0 %v1661
    %v1742 = vpop.f32.mrf.mxu0
    %v1743 = vadd.f32 0.0, %v1742
    %v1744 = vpop.f32.mrf.mxu0
    %v1745 = vadd.f32 0.0, %v1744
    %1746 = vmatmul.bf16.gmra.mxu0 %v1662
    %v1747 = vpop.f32.mrf.mxu0
    %v1748 = vadd.f32 0.0, %v1747
    %v1749 = vpop.f32.mrf.mxu0
    %v1750 = vadd.f32 0.0, %v1749
    %1751 = vmatmul.bf16.gmra.mxu0 %v1663
    %v1752 = vpop.f32.mrf.mxu0
    %v1753 = vadd.f32 0.0, %v1752
    %v1754 = vpop.f32.mrf.mxu0
    %v1755 = vadd.f32 0.0, %v1754
    %1756 = vmatmul.bf16.gmra.mxu0 %v1664
    %v1757 = vpop.f32.mrf.mxu0
    %v1758 = vadd.f32 0.0, %v1757
    %v1759 = vpop.f32.mrf.mxu0
    %v1760 = vadd.f32 0.0, %v1759
    %1761 = vmatmul.bf16.gmra.mxu0 %v1665
    %v1762 = vpop.f32.mrf.mxu0
    %v1763 = vadd.f32 0.0, %v1762
    %v1764 = vpop.f32.mrf.mxu0
    %v1765 = vadd.f32 0.0, %v1764
    %1766 = vmatmul.bf16.gmra.mxu0 %v1666
    %v1767 = vpop.f32.mrf.mxu0
    %v1768 = vadd.f32 0.0, %v1767
    %v1769 = vpop.f32.mrf.mxu0
    %v1770 = vadd.f32 0.0, %v1769
    %1771 = vmatmul.bf16.gmra.mxu0 %v1667
    %v1772 = vpop.f32.mrf.mxu0
    %v1773 = vadd.f32 0.0, %v1772
    %v1774 = vpop.f32.mrf.mxu0
    %v1775 = vadd.f32 0.0, %v1774
    %1776 = vmatmul.bf16.gmra.mxu0 %v1668
    %v1777 = vpop.f32.mrf.mxu0
    %v1778 = vadd.f32 0.0, %v1777
    %v1779 = vpop.f32.mrf.mxu0
    %v1780 = vadd.f32 0.0, %v1779
    %1781 = vdwg.mxu0
    %v1782 = vadd.f32 %v1533, %v1743
    %v1783 = vadd.f32 %v1535, %v1745
    %v1784 = vadd.f32 %v1538, %v1748
    %v1785 = vadd.f32 %v1540, %v1750
    %v1786 = vadd.f32 %v1543, %v1753
    %v1787 = vadd.f32 %v1545, %v1755
    %v1788 = vadd.f32 %v1548, %v1758
    %v1789 = vadd.f32 %v1550, %v1760
    %v1790 = vadd.f32 %v1553, %v1763
    %v1791 = vadd.f32 %v1555, %v1765
    %v1792 = vadd.f32 %v1558, %v1768
    %v1793 = vadd.f32 %v1560, %v1770
    %v1794 = vadd.f32 %v1563, %v1773
    %v1795 = vadd.f32 %v1565, %v1775
    %v1796 = vadd.f32 %v1568, %v1778
    %v1797 = vadd.f32 %v1570, %v1780
    %v1798 = vmul.f32 %v321, %v1645
    %v1799 = vmul.f32 %v326, %v1646
    %v1800 = vmul.f32 %v331, %v1647
    %v1801 = vmul.f32 %v336, %v1648
    %v1802 = vmul.f32 %v341, %v1649
    %v1803 = vmul.f32 %v346, %v1650
    %v1804 = vmul.f32 %v351, %v1651
    %v1805 = vmul.f32 %v356, %v1652
    %v1806 = vmul.f32 %v361, %v1653
    %v1807 = vmul.f32 %v366, %v1654
    %v1808 = vmul.f32 %v371, %v1655
    %v1809 = vmul.f32 %v376, %v1656
    %v1810 = vmul.f32 %v381, %v1657
    %v1811 = vmul.f32 %v386, %v1658
    %v1812 = vmul.f32 %v391, %v1659
    %v1813 = vmul.f32 %v396, %v1660
    %v1814 = vpack.c.bf16 %v1799, %v1798
    %v1815 = vpack.c.bf16 %v1801, %v1800
    %v1816 = vpack.c.bf16 %v1803, %v1802
    %v1817 = vpack.c.bf16 %v1805, %v1804
    %v1818 = vpack.c.bf16 %v1807, %v1806
    %v1819 = vpack.c.bf16 %v1809, %v1808
    %v1820 = vpack.c.bf16 %v1811, %v1810
    %v1821 = vpack.c.bf16 %v1813, %v1812
    %1822 = vmatpush.bf16.msra.mxu0 %v1821
    %1823 = vmatpush.bf16.msra.mxu0 %v1820
    %1824 = vmatpush.bf16.msra.mxu0 %v1819
    %1825 = vmatpush.bf16.msra.mxu0 %v1818
    %1826 = vmatpush.bf16.msra.mxu0 %v1817
    %1827 = vmatpush.bf16.msra.mxu0 %v1816
    %1828 = vmatpush.bf16.msra.mxu0 %v1815
    %1829 = vmatpush.bf16.msra.mxu0 %v1814
    %1830 = vmatmul.bf16.gmra.mxu0 %v454
    %v1831 = vpop.f32.mrf.mxu0
    %v1832 = vadd.f32 0.0, %v1831
    %v1833 = vpop.f32.mrf.mxu0
    %v1834 = vadd.f32 0.0, %v1833
    %1835 = vmatmul.bf16.gmra.mxu0 %v455
    %v1836 = vpop.f32.mrf.mxu0
    %v1837 = vadd.f32 0.0, %v1836
    %v1838 = vpop.f32.mrf.mxu0
    %v1839 = vadd.f32 0.0, %v1838
    %1840 = vmatmul.bf16.gmra.mxu0 %v456
    %v1841 = vpop.f32.mrf.mxu0
    %v1842 = vadd.f32 0.0, %v1841
    %v1843 = vpop.f32.mrf.mxu0
    %v1844 = vadd.f32 0.0, %v1843
    %1845 = vmatmul.bf16.gmra.mxu0 %v457
    %v1846 = vpop.f32.mrf.mxu0
    %v1847 = vadd.f32 0.0, %v1846
    %v1848 = vpop.f32.mrf.mxu0
    %v1849 = vadd.f32 0.0, %v1848
    %1850 = vmatmul.bf16.gmra.mxu0 %v458
    %v1851 = vpop.f32.mrf.mxu0
    %v1852 = vadd.f32 0.0, %v1851
    %v1853 = vpop.f32.mrf.mxu0
    %v1854 = vadd.f32 0.0, %v1853
    %1855 = vmatmul.bf16.gmra.mxu0 %v459
    %v1856 = vpop.f32.mrf.mxu0
    %v1857 = vadd.f32 0.0, %v1856
    %v1858 = vpop.f32.mrf.mxu0
    %v1859 = vadd.f32 0.0, %v1858
    %1860 = vmatmul.bf16.gmra.mxu0 %v460
    %v1861 = vpop.f32.mrf.mxu0
    %v1862 = vadd.f32 0.0, %v1861
    %v1863 = vpop.f32.mrf.mxu0
    %v1864 = vadd.f32 0.0, %v1863
    %1865 = vmatmul.bf16.gmra.mxu0 %v461
    %v1866 = vpop.f32.mrf.mxu0
    %v1867 = vadd.f32 0.0, %v1866
    %v1868 = vpop.f32.mrf.mxu0
    %v1869 = vadd.f32 0.0, %v1868
    %1870 = vdwg.mxu0
    %v1871 = vmul.f32 %v321, %v1832
    %v1872 = vmul.f32 %v326, %v1834
    %v1873 = vmul.f32 %v331, %v1837
    %v1874 = vmul.f32 %v336, %v1839
    %v1875 = vmul.f32 %v341, %v1842
    %v1876 = vmul.f32 %v346, %v1844
    %v1877 = vmul.f32 %v351, %v1847
    %v1878 = vmul.f32 %v356, %v1849
    %v1879 = vmul.f32 %v361, %v1852
    %v1880 = vmul.f32 %v366, %v1854
    %v1881 = vmul.f32 %v371, %v1857
    %v1882 = vmul.f32 %v376, %v1859
    %v1883 = vmul.f32 %v381, %v1862
    %v1884 = vmul.f32 %v386, %v1864
    %v1885 = vmul.f32 %v391, %v1867
    %v1886 = vmul.f32 %v396, %v1869
    %v1887 = vpack.c.bf16 %v1872, %v1871
    %v1888 = vpack.c.bf16 %v1874, %v1873
    %v1889 = vpack.c.bf16 %v1876, %v1875
    %v1890 = vpack.c.bf16 %v1878, %v1877
    %v1891 = vpack.c.bf16 %v1880, %v1879
    %v1892 = vpack.c.bf16 %v1882, %v1881
    %v1893 = vpack.c.bf16 %v1884, %v1883
    %v1894 = vpack.c.bf16 %v1886, %v1885
    %v1895 = vld [vmem:[#allocation8 + $0xc0] sm:$0xf]
    %v1896 = vld [vmem:[#allocation8 + $0xc4] sm:$0xf]
    %v1897 = vld [vmem:[#allocation8 + $0xc8] sm:$0xf]
    %v1898 = vld [vmem:[#allocation8 + $0xcc] sm:$0xf]
    %v1899 = vld [vmem:[#allocation8 + $0xd0] sm:$0xf]
    %v1900 = vld [vmem:[#allocation8 + $0xd4] sm:$0xf]
    %v1901 = vld [vmem:[#allocation8 + $0xd8] sm:$0xf]
    %v1902 = vld [vmem:[#allocation8 + $0xdc] sm:$0xf]
    %v1903 = vld [vmem:[#allocation8 + $0xe0] sm:$0xf]
    %v1904 = vld [vmem:[#allocation8 + $0xe4] sm:$0xf]
    %v1905 = vld [vmem:[#allocation8 + $0xe8] sm:$0xf]
    %v1906 = vld [vmem:[#allocation8 + $0xec] sm:$0xf]
    %v1907 = vld [vmem:[#allocation8 + $0xf0] sm:$0xf]
    %v1908 = vld [vmem:[#allocation8 + $0xf4] sm:$0xf]
    %v1909 = vld [vmem:[#allocation8 + $0xf8] sm:$0xf]
    %v1910 = vld [vmem:[#allocation8 + $0xfc] sm:$0xf]
    %v1927 = vunpack.c.l.b16 %v1895
    %v1928 = vunpack.c.l.b16 %v1896
    %v1929 = vunpack.c.l.b16 %v1897
    %v1930 = vunpack.c.l.b16 %v1898
    %v1931 = vunpack.c.l.b16 %v1899
    %v1932 = vunpack.c.l.b16 %v1900
    %v1933 = vunpack.c.l.b16 %v1901
    %v1934 = vunpack.c.l.b16 %v1902
    %v1935 = vunpack.c.l.b16 %v1903
    %v1936 = vunpack.c.l.b16 %v1904
    %v1937 = vunpack.c.l.b16 %v1905
    %v1938 = vunpack.c.l.b16 %v1906
    %v1939 = vunpack.c.l.b16 %v1907
    %v1940 = vunpack.c.l.b16 %v1908
    %v1941 = vunpack.c.l.b16 %v1909
    %v1942 = vunpack.c.l.b16 %v1910
    %v1943 = vpack.c.b16 %v1928, %v1927
    %v1944 = vpack.c.b16 %v1930, %v1929
    %v1945 = vpack.c.b16 %v1932, %v1931
    %v1946 = vpack.c.b16 %v1934, %v1933
    %v1947 = vpack.c.b16 %v1936, %v1935
    %v1948 = vpack.c.b16 %v1938, %v1937
    %v1949 = vpack.c.b16 %v1940, %v1939
    %v1950 = vpack.c.b16 %v1942, %v1941
    %1959 = vmatpush.bf16.msra.mxu0 %v1950
    %1960 = vmatpush.bf16.msra.mxu0 %v1949
    %1961 = vmatpush.bf16.msra.mxu0 %v1948
    %1962 = vmatpush.bf16.msra.mxu0 %v1947
    %1963 = vmatpush.bf16.msra.mxu0 %v1946
    %1964 = vmatpush.bf16.msra.mxu0 %v1945
    %1965 = vmatpush.bf16.msra.mxu0 %v1944
    %1966 = vmatpush.bf16.msra.mxu0 %v1943
    %1967 = vmatmul.bf16.gmra.mxu0 %v1887
    %v1968 = vpop.f32.mrf.mxu0
    %v1969 = vadd.f32 0.0, %v1968
    %v1970 = vpop.f32.mrf.mxu0
    %v1971 = vadd.f32 0.0, %v1970
    %1972 = vmatmul.bf16.gmra.mxu0 %v1888
    %v1973 = vpop.f32.mrf.mxu0
    %v1974 = vadd.f32 0.0, %v1973
    %v1975 = vpop.f32.mrf.mxu0
    %v1976 = vadd.f32 0.0, %v1975
    %1977 = vmatmul.bf16.gmra.mxu0 %v1889
    %v1978 = vpop.f32.mrf.mxu0
    %v1979 = vadd.f32 0.0, %v1978
    %v1980 = vpop.f32.mrf.mxu0
    %v1981 = vadd.f32 0.0, %v1980
    %1982 = vmatmul.bf16.gmra.mxu0 %v1890
    %v1983 = vpop.f32.mrf.mxu0
    %v1984 = vadd.f32 0.0, %v1983
    %v1985 = vpop.f32.mrf.mxu0
    %v1986 = vadd.f32 0.0, %v1985
    %1987 = vmatmul.bf16.gmra.mxu0 %v1891
    %v1988 = vpop.f32.mrf.mxu0
    %v1989 = vadd.f32 0.0, %v1988
    %v1990 = vpop.f32.mrf.mxu0
    %v1991 = vadd.f32 0.0, %v1990
    %1992 = vmatmul.bf16.gmra.mxu0 %v1892
    %v1993 = vpop.f32.mrf.mxu0
    %v1994 = vadd.f32 0.0, %v1993
    %v1995 = vpop.f32.mrf.mxu0
    %v1996 = vadd.f32 0.0, %v1995
    %1997 = vmatmul.bf16.gmra.mxu0 %v1893
    %v1998 = vpop.f32.mrf.mxu0
    %v1999 = vadd.f32 0.0, %v1998
    %v2000 = vpop.f32.mrf.mxu0
    %v2001 = vadd.f32 0.0, %v2000
    %2002 = vmatmul.bf16.gmra.mxu0 %v1894
    %v2003 = vpop.f32.mrf.mxu0
    %v2004 = vadd.f32 0.0, %v2003
    %v2005 = vpop.f32.mrf.mxu0
    %v2006 = vadd.f32 0.0, %v2005
    %2007 = vdwg.mxu0
    %v2008 = vadd.f32 %v1782, %v1969
    %v2009 = vadd.f32 %v1783, %v1971
    %v2010 = vadd.f32 %v1784, %v1974
    %v2011 = vadd.f32 %v1785, %v1976
    %v2012 = vadd.f32 %v1786, %v1979
    %v2013 = vadd.f32 %v1787, %v1981
    %v2014 = vadd.f32 %v1788, %v1984
    %v2015 = vadd.f32 %v1789, %v1986
    %v2016 = vadd.f32 %v1790, %v1989
    %v2017 = vadd.f32 %v1791, %v1991
    %v2018 = vadd.f32 %v1792, %v1994
    %v2019 = vadd.f32 %v1793, %v1996
    %v2020 = vadd.f32 %v1794, %v1999
    %v2021 = vadd.f32 %v1795, %v2001
    %v2022 = vadd.f32 %v1796, %v2004
    %v2023 = vadd.f32 %v1797, %v2006
    %v2024 = vld [vmem:[%s7] sm:$0x1]
    %v2026 = vperm.slane %v2024, 0
    %v2028 = vadd.f32 %v2008, %v2026
    %v2029 = vadd.f32 %v2009, %v2026
    %v2030 = vadd.f32 %v2010, %v2026
    %v2031 = vadd.f32 %v2011, %v2026
    %v2032 = vadd.f32 %v2012, %v2026
    %v2033 = vadd.f32 %v2013, %v2026
    %v2034 = vadd.f32 %v2014, %v2026
    %v2035 = vadd.f32 %v2015, %v2026
    %v2036 = vadd.f32 %v2016, %v2026
    %v2037 = vadd.f32 %v2017, %v2026
    %v2038 = vadd.f32 %v2018, %v2026
    %v2039 = vadd.f32 %v2019, %v2026
    %v2040 = vadd.f32 %v2020, %v2026
    %v2041 = vadd.f32 %v2021, %v2026
    %v2042 = vadd.f32 %v2022, %v2026
    %v2043 = vadd.f32 %v2023, %v2026
    %v2044 = vmax.f32 %v2028, 0.0
    %v2045 = vmax.f32 %v2029, 0.0
    %v2046 = vmax.f32 %v2030, 0.0
    %v2047 = vmax.f32 %v2031, 0.0
    %v2048 = vmax.f32 %v2032, 0.0
    %v2049 = vmax.f32 %v2033, 0.0
    %v2050 = vmax.f32 %v2034, 0.0
    %v2051 = vmax.f32 %v2035, 0.0
    %v2052 = vmax.f32 %v2036, 0.0
    %v2053 = vmax.f32 %v2037, 0.0
    %v2054 = vmax.f32 %v2038, 0.0
    %v2055 = vmax.f32 %v2039, 0.0
    %v2056 = vmax.f32 %v2040, 0.0
    %v2057 = vmax.f32 %v2041, 0.0
    %v2058 = vmax.f32 %v2042, 0.0
    %v2059 = vmax.f32 %v2043, 0.0
    %v2060 = vpack.c.bf16 %v2045, %v2044
    %v2061 = vpack.c.bf16 %v2047, %v2046
    %v2062 = vpack.c.bf16 %v2049, %v2048
    %v2063 = vpack.c.bf16 %v2051, %v2050
    %v2064 = vpack.c.bf16 %v2053, %v2052
    %v2065 = vpack.c.bf16 %v2055, %v2054
    %v2066 = vpack.c.bf16 %v2057, %v2056
    %v2067 = vpack.c.bf16 %v2059, %v2058
    %v2068 = vld [vmem:[#allocation9] sm:$0xf]
    %v2069 = vld [vmem:[#allocation9 + $0x4] sm:$0xf]
    %v2070 = vld [vmem:[#allocation9 + $0x8] sm:$0xf]
    %v2071 = vld [vmem:[#allocation9 + $0xc] sm:$0xf]
    %v2072 = vld [vmem:[#allocation9 + $0x10] sm:$0xf]
    %v2073 = vld [vmem:[#allocation9 + $0x14] sm:$0xf]
    %v2074 = vld [vmem:[#allocation9 + $0x18] sm:$0xf]
    %v2075 = vld [vmem:[#allocation9 + $0x1c] sm:$0xf]
    %v2076 = vld [vmem:[#allocation9 + $0x20] sm:$0xf]
    %v2077 = vld [vmem:[#allocation9 + $0x24] sm:$0xf]
    %v2078 = vld [vmem:[#allocation9 + $0x28] sm:$0xf]
    %v2079 = vld [vmem:[#allocation9 + $0x2c] sm:$0xf]
    %v2080 = vld [vmem:[#allocation9 + $0x30] sm:$0xf]
    %v2081 = vld [vmem:[#allocation9 + $0x34] sm:$0xf]
    %v2082 = vld [vmem:[#allocation9 + $0x38] sm:$0xf]
    %v2083 = vld [vmem:[#allocation9 + $0x3c] sm:$0xf]
    %v2084 = vmul.f32 %v321, %v2044
    %v2085 = vmul.f32 %v326, %v2045
    %v2086 = vmul.f32 %v331, %v2046
    %v2087 = vmul.f32 %v336, %v2047
    %v2088 = vmul.f32 %v341, %v2048
    %v2089 = vmul.f32 %v346, %v2049
    %v2090 = vmul.f32 %v351, %v2050
    %v2091 = vmul.f32 %v356, %v2051
    %v2092 = vmul.f32 %v361, %v2052
    %v2093 = vmul.f32 %v366, %v2053
    %v2094 = vmul.f32 %v371, %v2054
    %v2095 = vmul.f32 %v376, %v2055
    %v2096 = vmul.f32 %v381, %v2056
    %v2097 = vmul.f32 %v386, %v2057
    %v2098 = vmul.f32 %v391, %v2058
    %v2099 = vmul.f32 %v396, %v2059
    %v2100 = vpack.c.bf16 %v2085, %v2084
    %v2101 = vpack.c.bf16 %v2087, %v2086
    %v2102 = vpack.c.bf16 %v2089, %v2088
    %v2103 = vpack.c.bf16 %v2091, %v2090
    %v2104 = vpack.c.bf16 %v2093, %v2092
    %v2105 = vpack.c.bf16 %v2095, %v2094
    %v2106 = vpack.c.bf16 %v2097, %v2096
    %v2107 = vpack.c.bf16 %v2099, %v2098
    %2108 = vmatpush.bf16.msra.mxu0 %v2107
    %2109 = vmatpush.bf16.msra.mxu0 %v2106
    %2110 = vmatpush.bf16.msra.mxu0 %v2105
    %2111 = vmatpush.bf16.msra.mxu0 %v2104
    %2112 = vmatpush.bf16.msra.mxu0 %v2103
    %2113 = vmatpush.bf16.msra.mxu0 %v2102
    %2114 = vmatpush.bf16.msra.mxu0 %v2101
    %2115 = vmatpush.bf16.msra.mxu0 %v2100
    %2116 = vmatmul.bf16.gmra.mxu0 %v454
    %v2117 = vpop.f32.mrf.mxu0
    %v2118 = vadd.f32 0.0, %v2117
    %v2119 = vpop.f32.mrf.mxu0
    %v2120 = vadd.f32 0.0, %v2119
    %2121 = vmatmul.bf16.gmra.mxu0 %v455
    %v2122 = vpop.f32.mrf.mxu0
    %v2123 = vadd.f32 0.0, %v2122
    %v2124 = vpop.f32.mrf.mxu0
    %v2125 = vadd.f32 0.0, %v2124
    %2126 = vmatmul.bf16.gmra.mxu0 %v456
    %v2127 = vpop.f32.mrf.mxu0
    %v2128 = vadd.f32 0.0, %v2127
    %v2129 = vpop.f32.mrf.mxu0
    %v2130 = vadd.f32 0.0, %v2129
    %2131 = vmatmul.bf16.gmra.mxu0 %v457
    %v2132 = vpop.f32.mrf.mxu0
    %v2133 = vadd.f32 0.0, %v2132
    %v2134 = vpop.f32.mrf.mxu0
    %v2135 = vadd.f32 0.0, %v2134
    %2136 = vmatmul.bf16.gmra.mxu0 %v458
    %v2137 = vpop.f32.mrf.mxu0
    %v2138 = vadd.f32 0.0, %v2137
    %v2139 = vpop.f32.mrf.mxu0
    %v2140 = vadd.f32 0.0, %v2139
    %2141 = vmatmul.bf16.gmra.mxu0 %v459
    %v2142 = vpop.f32.mrf.mxu0
    %v2143 = vadd.f32 0.0, %v2142
    %v2144 = vpop.f32.mrf.mxu0
    %v2145 = vadd.f32 0.0, %v2144
    %2146 = vmatmul.bf16.gmra.mxu0 %v460
    %v2147 = vpop.f32.mrf.mxu0
    %v2148 = vadd.f32 0.0, %v2147
    %v2149 = vpop.f32.mrf.mxu0
    %v2150 = vadd.f32 0.0, %v2149
    %2151 = vmatmul.bf16.gmra.mxu0 %v461
    %v2152 = vpop.f32.mrf.mxu0
    %v2153 = vadd.f32 0.0, %v2152
    %v2154 = vpop.f32.mrf.mxu0
    %v2155 = vadd.f32 0.0, %v2154
    %2156 = vdwg.mxu0
    %v2157 = vmul.f32 %v321, %v2118
    %v2158 = vmul.f32 %v326, %v2120
    %v2159 = vmul.f32 %v331, %v2123
    %v2160 = vmul.f32 %v336, %v2125
    %v2161 = vmul.f32 %v341, %v2128
    %v2162 = vmul.f32 %v346, %v2130
    %v2163 = vmul.f32 %v351, %v2133
    %v2164 = vmul.f32 %v356, %v2135
    %v2165 = vmul.f32 %v361, %v2138
    %v2166 = vmul.f32 %v366, %v2140
    %v2167 = vmul.f32 %v371, %v2143
    %v2168 = vmul.f32 %v376, %v2145
    %v2169 = vmul.f32 %v381, %v2148
    %v2170 = vmul.f32 %v386, %v2150
    %v2171 = vmul.f32 %v391, %v2153
    %v2172 = vmul.f32 %v396, %v2155
    %v2173 = vpack.c.bf16 %v2158, %v2157
    %v2174 = vpack.c.bf16 %v2160, %v2159
    %v2175 = vpack.c.bf16 %v2162, %v2161
    %v2176 = vpack.c.bf16 %v2164, %v2163
    %v2177 = vpack.c.bf16 %v2166, %v2165
    %v2178 = vpack.c.bf16 %v2168, %v2167
    %v2179 = vpack.c.bf16 %v2170, %v2169
    %v2180 = vpack.c.bf16 %v2172, %v2171
    %v2181 = vld [vmem:[#allocation9 + $0x40] sm:$0xf]
    %v2182 = vld [vmem:[#allocation9 + $0x44] sm:$0xf]
    %v2183 = vld [vmem:[#allocation9 + $0x48] sm:$0xf]
    %v2184 = vld [vmem:[#allocation9 + $0x4c] sm:$0xf]
    %v2185 = vld [vmem:[#allocation9 + $0x50] sm:$0xf]
    %v2186 = vld [vmem:[#allocation9 + $0x54] sm:$0xf]
    %v2187 = vld [vmem:[#allocation9 + $0x58] sm:$0xf]
    %v2188 = vld [vmem:[#allocation9 + $0x5c] sm:$0xf]
    %v2189 = vld [vmem:[#allocation9 + $0x60] sm:$0xf]
    %v2190 = vld [vmem:[#allocation9 + $0x64] sm:$0xf]
    %v2191 = vld [vmem:[#allocation9 + $0x68] sm:$0xf]
    %v2192 = vld [vmem:[#allocation9 + $0x6c] sm:$0xf]
    %v2193 = vld [vmem:[#allocation9 + $0x70] sm:$0xf]
    %v2194 = vld [vmem:[#allocation9 + $0x74] sm:$0xf]
    %v2195 = vld [vmem:[#allocation9 + $0x78] sm:$0xf]
    %v2196 = vld [vmem:[#allocation9 + $0x7c] sm:$0xf]
    %v2213 = vunpack.c.l.b16 %v2181
    %v2214 = vunpack.c.l.b16 %v2182
    %v2215 = vunpack.c.l.b16 %v2183
    %v2216 = vunpack.c.l.b16 %v2184
    %v2217 = vunpack.c.l.b16 %v2185
    %v2218 = vunpack.c.l.b16 %v2186
    %v2219 = vunpack.c.l.b16 %v2187
    %v2220 = vunpack.c.l.b16 %v2188
    %v2221 = vunpack.c.l.b16 %v2189
    %v2222 = vunpack.c.l.b16 %v2190
    %v2223 = vunpack.c.l.b16 %v2191
    %v2224 = vunpack.c.l.b16 %v2192
    %v2225 = vunpack.c.l.b16 %v2193
    %v2226 = vunpack.c.l.b16 %v2194
    %v2227 = vunpack.c.l.b16 %v2195
    %v2228 = vunpack.c.l.b16 %v2196
    %v2229 = vpack.c.b16 %v2214, %v2213
    %v2230 = vpack.c.b16 %v2216, %v2215
    %v2231 = vpack.c.b16 %v2218, %v2217
    %v2232 = vpack.c.b16 %v2220, %v2219
    %v2233 = vpack.c.b16 %v2222, %v2221
    %v2234 = vpack.c.b16 %v2224, %v2223
    %v2235 = vpack.c.b16 %v2226, %v2225
    %v2236 = vpack.c.b16 %v2228, %v2227
    %2245 = vmatpush.bf16.msra.mxu0 %v2236
    %2246 = vmatpush.bf16.msra.mxu0 %v2235
    %2247 = vmatpush.bf16.msra.mxu0 %v2234
    %2248 = vmatpush.bf16.msra.mxu0 %v2233
    %2249 = vmatpush.bf16.msra.mxu0 %v2232
    %2250 = vmatpush.bf16.msra.mxu0 %v2231
    %2251 = vmatpush.bf16.msra.mxu0 %v2230
    %2252 = vmatpush.bf16.msra.mxu0 %v2229
    %2253 = vmatmul.bf16.gmra.mxu0 %v2173
    %v2254 = vpop.f32.mrf.mxu0
    %v2255 = vadd.f32 0.0, %v2254
    %v2256 = vpop.f32.mrf.mxu0
    %v2257 = vadd.f32 0.0, %v2256
    %2258 = vmatmul.bf16.gmra.mxu0 %v2174
    %v2259 = vpop.f32.mrf.mxu0
    %v2260 = vadd.f32 0.0, %v2259
    %v2261 = vpop.f32.mrf.mxu0
    %v2262 = vadd.f32 0.0, %v2261
    %2263 = vmatmul.bf16.gmra.mxu0 %v2175
    %v2264 = vpop.f32.mrf.mxu0
    %v2265 = vadd.f32 0.0, %v2264
    %v2266 = vpop.f32.mrf.mxu0
    %v2267 = vadd.f32 0.0, %v2266
    %2268 = vmatmul.bf16.gmra.mxu0 %v2176
    %v2269 = vpop.f32.mrf.mxu0
    %v2270 = vadd.f32 0.0, %v2269
    %v2271 = vpop.f32.mrf.mxu0
    %v2272 = vadd.f32 0.0, %v2271
    %2273 = vmatmul.bf16.gmra.mxu0 %v2177
    %v2274 = vpop.f32.mrf.mxu0
    %v2275 = vadd.f32 0.0, %v2274
    %v2276 = vpop.f32.mrf.mxu0
    %v2277 = vadd.f32 0.0, %v2276
    %2278 = vmatmul.bf16.gmra.mxu0 %v2178
    %v2279 = vpop.f32.mrf.mxu0
    %v2280 = vadd.f32 0.0, %v2279
    %v2281 = vpop.f32.mrf.mxu0
    %v2282 = vadd.f32 0.0, %v2281
    %2283 = vmatmul.bf16.gmra.mxu0 %v2179
    %v2284 = vpop.f32.mrf.mxu0
    %v2285 = vadd.f32 0.0, %v2284
    %v2286 = vpop.f32.mrf.mxu0
    %v2287 = vadd.f32 0.0, %v2286
    %2288 = vmatmul.bf16.gmra.mxu0 %v2180
    %v2289 = vpop.f32.mrf.mxu0
    %v2290 = vadd.f32 0.0, %v2289
    %v2291 = vpop.f32.mrf.mxu0
    %v2292 = vadd.f32 0.0, %v2291
    %2293 = vdwg.mxu0
    %v2310 = vunpack.c.l.b16 %v2068
    %v2311 = vunpack.c.l.b16 %v2069
    %v2312 = vunpack.c.l.b16 %v2070
    %v2313 = vunpack.c.l.b16 %v2071
    %v2314 = vunpack.c.l.b16 %v2072
    %v2315 = vunpack.c.l.b16 %v2073
    %v2316 = vunpack.c.l.b16 %v2074
    %v2317 = vunpack.c.l.b16 %v2075
    %v2318 = vunpack.c.l.b16 %v2076
    %v2319 = vunpack.c.l.b16 %v2077
    %v2320 = vunpack.c.l.b16 %v2078
    %v2321 = vunpack.c.l.b16 %v2079
    %v2322 = vunpack.c.l.b16 %v2080
    %v2323 = vunpack.c.l.b16 %v2081
    %v2324 = vunpack.c.l.b16 %v2082
    %v2325 = vunpack.c.l.b16 %v2083
    %v2326 = vpack.c.b16 %v2311, %v2310
    %v2327 = vpack.c.b16 %v2313, %v2312
    %v2328 = vpack.c.b16 %v2315, %v2314
    %v2329 = vpack.c.b16 %v2317, %v2316
    %v2330 = vpack.c.b16 %v2319, %v2318
    %v2331 = vpack.c.b16 %v2321, %v2320
    %v2332 = vpack.c.b16 %v2323, %v2322
    %v2333 = vpack.c.b16 %v2325, %v2324
    %2342 = vmatpush.bf16.msra.mxu0 %v2333
    %2343 = vmatpush.bf16.msra.mxu0 %v2332
    %2344 = vmatpush.bf16.msra.mxu0 %v2331
    %2345 = vmatpush.bf16.msra.mxu0 %v2330
    %2346 = vmatpush.bf16.msra.mxu0 %v2329
    %2347 = vmatpush.bf16.msra.mxu0 %v2328
    %2348 = vmatpush.bf16.msra.mxu0 %v2327
    %2349 = vmatpush.bf16.msra.mxu0 %v2326
    %2350 = vmatmul.bf16.gmra.mxu0 %v2060
    %v2351 = vpop.f32.mrf.mxu0
    %v2352 = vadd.f32 %v2255, %v2351
    %v2353 = vpop.f32.mrf.mxu0
    %v2354 = vadd.f32 %v2257, %v2353
    %2355 = vmatmul.bf16.gmra.mxu0 %v2061
    %v2356 = vpop.f32.mrf.mxu0
    %v2357 = vadd.f32 %v2260, %v2356
    %v2358 = vpop.f32.mrf.mxu0
    %v2359 = vadd.f32 %v2262, %v2358
    %2360 = vmatmul.bf16.gmra.mxu0 %v2062
    %v2361 = vpop.f32.mrf.mxu0
    %v2362 = vadd.f32 %v2265, %v2361
    %v2363 = vpop.f32.mrf.mxu0
    %v2364 = vadd.f32 %v2267, %v2363
    %2365 = vmatmul.bf16.gmra.mxu0 %v2063
    %v2366 = vpop.f32.mrf.mxu0
    %v2367 = vadd.f32 %v2270, %v2366
    %v2368 = vpop.f32.mrf.mxu0
    %v2369 = vadd.f32 %v2272, %v2368
    %2370 = vmatmul.bf16.gmra.mxu0 %v2064
    %v2371 = vpop.f32.mrf.mxu0
    %v2372 = vadd.f32 %v2275, %v2371
    %v2373 = vpop.f32.mrf.mxu0
    %v2374 = vadd.f32 %v2277, %v2373
    %2375 = vmatmul.bf16.gmra.mxu0 %v2065
    %v2376 = vpop.f32.mrf.mxu0
    %v2377 = vadd.f32 %v2280, %v2376
    %v2378 = vpop.f32.mrf.mxu0
    %v2379 = vadd.f32 %v2282, %v2378
    %2380 = vmatmul.bf16.gmra.mxu0 %v2066
    %v2381 = vpop.f32.mrf.mxu0
    %v2382 = vadd.f32 %v2285, %v2381
    %v2383 = vpop.f32.mrf.mxu0
    %v2384 = vadd.f32 %v2287, %v2383
    %2385 = vmatmul.bf16.gmra.mxu0 %v2067
    %v2386 = vpop.f32.mrf.mxu0
    %v2387 = vadd.f32 %v2290, %v2386
    %v2388 = vpop.f32.mrf.mxu0
    %v2389 = vadd.f32 %v2292, %v2388
    %2390 = vdwg.mxu0
    %v2391 = vmul.f32 %v321, %v2157
    %v2392 = vmul.f32 %v326, %v2158
    %v2393 = vmul.f32 %v331, %v2159
    %v2394 = vmul.f32 %v336, %v2160
    %v2395 = vmul.f32 %v341, %v2161
    %v2396 = vmul.f32 %v346, %v2162
    %v2397 = vmul.f32 %v351, %v2163
    %v2398 = vmul.f32 %v356, %v2164
    %v2399 = vmul.f32 %v361, %v2165
    %v2400 = vmul.f32 %v366, %v2166
    %v2401 = vmul.f32 %v371, %v2167
    %v2402 = vmul.f32 %v376, %v2168
    %v2403 = vmul.f32 %v381, %v2169
    %v2404 = vmul.f32 %v386, %v2170
    %v2405 = vmul.f32 %v391, %v2171
    %v2406 = vmul.f32 %v396, %v2172
    %v2407 = vpack.c.bf16 %v2392, %v2391
    %v2408 = vpack.c.bf16 %v2394, %v2393
    %v2409 = vpack.c.bf16 %v2396, %v2395
    %v2410 = vpack.c.bf16 %v2398, %v2397
    %v2411 = vpack.c.bf16 %v2400, %v2399
    %v2412 = vpack.c.bf16 %v2402, %v2401
    %v2413 = vpack.c.bf16 %v2404, %v2403
    %v2414 = vpack.c.bf16 %v2406, %v2405
    %2415 = vmatpush.bf16.msra.mxu0 %v2414
    %2416 = vmatpush.bf16.msra.mxu0 %v2413
    %2417 = vmatpush.bf16.msra.mxu0 %v2412
    %2418 = vmatpush.bf16.msra.mxu0 %v2411
    %2419 = vmatpush.bf16.msra.mxu0 %v2410
    %2420 = vmatpush.bf16.msra.mxu0 %v2409
    %2421 = vmatpush.bf16.msra.mxu0 %v2408
    %2422 = vmatpush.bf16.msra.mxu0 %v2407
    %2423 = vmatmul.bf16.gmra.mxu0 %v454
    %v2424 = vpop.f32.mrf.mxu0
    %v2425 = vadd.f32 0.0, %v2424
    %v2426 = vpop.f32.mrf.mxu0
    %v2427 = vadd.f32 0.0, %v2426
    %2428 = vmatmul.bf16.gmra.mxu0 %v455
    %v2429 = vpop.f32.mrf.mxu0
    %v2430 = vadd.f32 0.0, %v2429
    %v2431 = vpop.f32.mrf.mxu0
    %v2432 = vadd.f32 0.0, %v2431
    %2433 = vmatmul.bf16.gmra.mxu0 %v456
    %v2434 = vpop.f32.mrf.mxu0
    %v2435 = vadd.f32 0.0, %v2434
    %v2436 = vpop.f32.mrf.mxu0
    %v2437 = vadd.f32 0.0, %v2436
    %2438 = vmatmul.bf16.gmra.mxu0 %v457
    %v2439 = vpop.f32.mrf.mxu0
    %v2440 = vadd.f32 0.0, %v2439
    %v2441 = vpop.f32.mrf.mxu0
    %v2442 = vadd.f32 0.0, %v2441
    %2443 = vmatmul.bf16.gmra.mxu0 %v458
    %v2444 = vpop.f32.mrf.mxu0
    %v2445 = vadd.f32 0.0, %v2444
    %v2446 = vpop.f32.mrf.mxu0
    %v2447 = vadd.f32 0.0, %v2446
    %2448 = vmatmul.bf16.gmra.mxu0 %v459
    %v2449 = vpop.f32.mrf.mxu0
    %v2450 = vadd.f32 0.0, %v2449
    %v2451 = vpop.f32.mrf.mxu0
    %v2452 = vadd.f32 0.0, %v2451
    %2453 = vmatmul.bf16.gmra.mxu0 %v460
    %v2454 = vpop.f32.mrf.mxu0
    %v2455 = vadd.f32 0.0, %v2454
    %v2456 = vpop.f32.mrf.mxu0
    %v2457 = vadd.f32 0.0, %v2456
    %2458 = vmatmul.bf16.gmra.mxu0 %v461
    %v2459 = vpop.f32.mrf.mxu0
    %v2460 = vadd.f32 0.0, %v2459
    %v2461 = vpop.f32.mrf.mxu0
    %v2462 = vadd.f32 0.0, %v2461
    %2463 = vdwg.mxu0
    %v2464 = vmul.f32 %v321, %v2425
    %v2465 = vmul.f32 %v326, %v2427
    %v2466 = vmul.f32 %v331, %v2430
    %v2467 = vmul.f32 %v336, %v2432
    %v2468 = vmul.f32 %v341, %v2435
    %v2469 = vmul.f32 %v346, %v2437
    %v2470 = vmul.f32 %v351, %v2440
    %v2471 = vmul.f32 %v356, %v2442
    %v2472 = vmul.f32 %v361, %v2445
    %v2473 = vmul.f32 %v366, %v2447
    %v2474 = vmul.f32 %v371, %v2450
    %v2475 = vmul.f32 %v376, %v2452
    %v2476 = vmul.f32 %v381, %v2455
    %v2477 = vmul.f32 %v386, %v2457
    %v2478 = vmul.f32 %v391, %v2460
    %v2479 = vmul.f32 %v396, %v2462
    %v2480 = vpack.c.bf16 %v2465, %v2464
    %v2481 = vpack.c.bf16 %v2467, %v2466
    %v2482 = vpack.c.bf16 %v2469, %v2468
    %v2483 = vpack.c.bf16 %v2471, %v2470
    %v2484 = vpack.c.bf16 %v2473, %v2472
    %v2485 = vpack.c.bf16 %v2475, %v2474
    %v2486 = vpack.c.bf16 %v2477, %v2476
    %v2487 = vpack.c.bf16 %v2479, %v2478
    %v2488 = vld [vmem:[#allocation9 + $0x80] sm:$0xf]
    %v2489 = vld [vmem:[#allocation9 + $0x84] sm:$0xf]
    %v2490 = vld [vmem:[#allocation9 + $0x88] sm:$0xf]
    %v2491 = vld [vmem:[#allocation9 + $0x8c] sm:$0xf]
    %v2492 = vld [vmem:[#allocation9 + $0x90] sm:$0xf]
    %v2493 = vld [vmem:[#allocation9 + $0x94] sm:$0xf]
    %v2494 = vld [vmem:[#allocation9 + $0x98] sm:$0xf]
    %v2495 = vld [vmem:[#allocation9 + $0x9c] sm:$0xf]
    %v2496 = vld [vmem:[#allocation9 + $0xa0] sm:$0xf]
    %v2497 = vld [vmem:[#allocation9 + $0xa4] sm:$0xf]
    %v2498 = vld [vmem:[#allocation9 + $0xa8] sm:$0xf]
    %v2499 = vld [vmem:[#allocation9 + $0xac] sm:$0xf]
    %v2500 = vld [vmem:[#allocation9 + $0xb0] sm:$0xf]
    %v2501 = vld [vmem:[#allocation9 + $0xb4] sm:$0xf]
    %v2502 = vld [vmem:[#allocation9 + $0xb8] sm:$0xf]
    %v2503 = vld [vmem:[#allocation9 + $0xbc] sm:$0xf]
    %v2520 = vunpack.c.l.b16 %v2488
    %v2521 = vunpack.c.l.b16 %v2489
    %v2522 = vunpack.c.l.b16 %v2490
    %v2523 = vunpack.c.l.b16 %v2491
    %v2524 = vunpack.c.l.b16 %v2492
    %v2525 = vunpack.c.l.b16 %v2493
    %v2526 = vunpack.c.l.b16 %v2494
    %v2527 = vunpack.c.l.b16 %v2495
    %v2528 = vunpack.c.l.b16 %v2496
    %v2529 = vunpack.c.l.b16 %v2497
    %v2530 = vunpack.c.l.b16 %v2498
    %v2531 = vunpack.c.l.b16 %v2499
    %v2532 = vunpack.c.l.b16 %v2500
    %v2533 = vunpack.c.l.b16 %v2501
    %v2534 = vunpack.c.l.b16 %v2502
    %v2535 = vunpack.c.l.b16 %v2503
    %v2536 = vpack.c.b16 %v2521, %v2520
    %v2537 = vpack.c.b16 %v2523, %v2522
    %v2538 = vpack.c.b16 %v2525, %v2524
    %v2539 = vpack.c.b16 %v2527, %v2526
    %v2540 = vpack.c.b16 %v2529, %v2528
    %v2541 = vpack.c.b16 %v2531, %v2530
    %v2542 = vpack.c.b16 %v2533, %v2532
    %v2543 = vpack.c.b16 %v2535, %v2534
    %2552 = vmatpush.bf16.msra.mxu0 %v2543
    %2553 = vmatpush.bf16.msra.mxu0 %v2542
    %2554 = vmatpush.bf16.msra.mxu0 %v2541
    %2555 = vmatpush.bf16.msra.mxu0 %v2540
    %2556 = vmatpush.bf16.msra.mxu0 %v2539
    %2557 = vmatpush.bf16.msra.mxu0 %v2538
    %2558 = vmatpush.bf16.msra.mxu0 %v2537
    %2559 = vmatpush.bf16.msra.mxu0 %v2536
    %2560 = vmatmul.bf16.gmra.mxu0 %v2480
    %v2561 = vpop.f32.mrf.mxu0
    %v2562 = vadd.f32 0.0, %v2561
    %v2563 = vpop.f32.mrf.mxu0
    %v2564 = vadd.f32 0.0, %v2563
    %2565 = vmatmul.bf16.gmra.mxu0 %v2481
    %v2566 = vpop.f32.mrf.mxu0
    %v2567 = vadd.f32 0.0, %v2566
    %v2568 = vpop.f32.mrf.mxu0
    %v2569 = vadd.f32 0.0, %v2568
    %2570 = vmatmul.bf16.gmra.mxu0 %v2482
    %v2571 = vpop.f32.mrf.mxu0
    %v2572 = vadd.f32 0.0, %v2571
    %v2573 = vpop.f32.mrf.mxu0
    %v2574 = vadd.f32 0.0, %v2573
    %2575 = vmatmul.bf16.gmra.mxu0 %v2483
    %v2576 = vpop.f32.mrf.mxu0
    %v2577 = vadd.f32 0.0, %v2576
    %v2578 = vpop.f32.mrf.mxu0
    %v2579 = vadd.f32 0.0, %v2578
    %2580 = vmatmul.bf16.gmra.mxu0 %v2484
    %v2581 = vpop.f32.mrf.mxu0
    %v2582 = vadd.f32 0.0, %v2581
    %v2583 = vpop.f32.mrf.mxu0
    %v2584 = vadd.f32 0.0, %v2583
    %2585 = vmatmul.bf16.gmra.mxu0 %v2485
    %v2586 = vpop.f32.mrf.mxu0
    %v2587 = vadd.f32 0.0, %v2586
    %v2588 = vpop.f32.mrf.mxu0
    %v2589 = vadd.f32 0.0, %v2588
    %2590 = vmatmul.bf16.gmra.mxu0 %v2486
    %v2591 = vpop.f32.mrf.mxu0
    %v2592 = vadd.f32 0.0, %v2591
    %v2593 = vpop.f32.mrf.mxu0
    %v2594 = vadd.f32 0.0, %v2593
    %2595 = vmatmul.bf16.gmra.mxu0 %v2487
    %v2596 = vpop.f32.mrf.mxu0
    %v2597 = vadd.f32 0.0, %v2596
    %v2598 = vpop.f32.mrf.mxu0
    %v2599 = vadd.f32 0.0, %v2598
    %2600 = vdwg.mxu0
    %v2601 = vadd.f32 %v2352, %v2562
    %v2602 = vadd.f32 %v2354, %v2564
    %v2603 = vadd.f32 %v2357, %v2567
    %v2604 = vadd.f32 %v2359, %v2569
    %v2605 = vadd.f32 %v2362, %v2572
    %v2606 = vadd.f32 %v2364, %v2574
    %v2607 = vadd.f32 %v2367, %v2577
    %v2608 = vadd.f32 %v2369, %v2579
    %v2609 = vadd.f32 %v2372, %v2582
    %v2610 = vadd.f32 %v2374, %v2584
    %v2611 = vadd.f32 %v2377, %v2587
    %v2612 = vadd.f32 %v2379, %v2589
    %v2613 = vadd.f32 %v2382, %v2592
    %v2614 = vadd.f32 %v2384, %v2594
    %v2615 = vadd.f32 %v2387, %v2597
    %v2616 = vadd.f32 %v2389, %v2599
    %v2617 = vmul.f32 %v321, %v2464
    %v2618 = vmul.f32 %v326, %v2465
    %v2619 = vmul.f32 %v331, %v2466
    %v2620 = vmul.f32 %v336, %v2467
    %v2621 = vmul.f32 %v341, %v2468
    %v2622 = vmul.f32 %v346, %v2469
    %v2623 = vmul.f32 %v351, %v2470
    %v2624 = vmul.f32 %v356, %v2471
    %v2625 = vmul.f32 %v361, %v2472
    %v2626 = vmul.f32 %v366, %v2473
    %v2627 = vmul.f32 %v371, %v2474
    %v2628 = vmul.f32 %v376, %v2475
    %v2629 = vmul.f32 %v381, %v2476
    %v2630 = vmul.f32 %v386, %v2477
    %v2631 = vmul.f32 %v391, %v2478
    %v2632 = vmul.f32 %v396, %v2479
    %v2633 = vpack.c.bf16 %v2618, %v2617
    %v2634 = vpack.c.bf16 %v2620, %v2619
    %v2635 = vpack.c.bf16 %v2622, %v2621
    %v2636 = vpack.c.bf16 %v2624, %v2623
    %v2637 = vpack.c.bf16 %v2626, %v2625
    %v2638 = vpack.c.bf16 %v2628, %v2627
    %v2639 = vpack.c.bf16 %v2630, %v2629
    %v2640 = vpack.c.bf16 %v2632, %v2631
    %2641 = vmatpush.bf16.msra.mxu0 %v2640
    %2642 = vmatpush.bf16.msra.mxu0 %v2639
    %2643 = vmatpush.bf16.msra.mxu0 %v2638
    %2644 = vmatpush.bf16.msra.mxu0 %v2637
    %2645 = vmatpush.bf16.msra.mxu0 %v2636
    %2646 = vmatpush.bf16.msra.mxu0 %v2635
    %2647 = vmatpush.bf16.msra.mxu0 %v2634
    %2648 = vmatpush.bf16.msra.mxu0 %v2633
    %2649 = vmatmul.bf16.gmra.mxu0 %v454
    %v2650 = vpop.f32.mrf.mxu0
    %v2651 = vadd.f32 0.0, %v2650
    %v2652 = vpop.f32.mrf.mxu0
    %v2653 = vadd.f32 0.0, %v2652
    %2654 = vmatmul.bf16.gmra.mxu0 %v455
    %v2655 = vpop.f32.mrf.mxu0
    %v2656 = vadd.f32 0.0, %v2655
    %v2657 = vpop.f32.mrf.mxu0
    %v2658 = vadd.f32 0.0, %v2657
    %2659 = vmatmul.bf16.gmra.mxu0 %v456
    %v2660 = vpop.f32.mrf.mxu0
    %v2661 = vadd.f32 0.0, %v2660
    %v2662 = vpop.f32.mrf.mxu0
    %v2663 = vadd.f32 0.0, %v2662
    %2664 = vmatmul.bf16.gmra.mxu0 %v457
    %v2665 = vpop.f32.mrf.mxu0
    %v2666 = vadd.f32 0.0, %v2665
    %v2667 = vpop.f32.mrf.mxu0
    %v2668 = vadd.f32 0.0, %v2667
    %2669 = vmatmul.bf16.gmra.mxu0 %v458
    %v2670 = vpop.f32.mrf.mxu0
    %v2671 = vadd.f32 0.0, %v2670
    %v2672 = vpop.f32.mrf.mxu0
    %v2673 = vadd.f32 0.0, %v2672
    %2674 = vmatmul.bf16.gmra.mxu0 %v459
    %v2675 = vpop.f32.mrf.mxu0
    %v2676 = vadd.f32 0.0, %v2675
    %v2677 = vpop.f32.mrf.mxu0
    %v2678 = vadd.f32 0.0, %v2677
    %2679 = vmatmul.bf16.gmra.mxu0 %v460
    %v2680 = vpop.f32.mrf.mxu0
    %v2681 = vadd.f32 0.0, %v2680
    %v2682 = vpop.f32.mrf.mxu0
    %v2683 = vadd.f32 0.0, %v2682
    %2684 = vmatmul.bf16.gmra.mxu0 %v461
    %v2685 = vpop.f32.mrf.mxu0
    %v2686 = vadd.f32 0.0, %v2685
    %v2687 = vpop.f32.mrf.mxu0
    %v2688 = vadd.f32 0.0, %v2687
    %2689 = vdwg.mxu0
    %v2690 = vmul.f32 %v321, %v2651
    %v2691 = vmul.f32 %v326, %v2653
    %v2692 = vmul.f32 %v331, %v2656
    %v2693 = vmul.f32 %v336, %v2658
    %v2694 = vmul.f32 %v341, %v2661
    %v2695 = vmul.f32 %v346, %v2663
    %v2696 = vmul.f32 %v351, %v2666
    %v2697 = vmul.f32 %v356, %v2668
    %v2698 = vmul.f32 %v361, %v2671
    %v2699 = vmul.f32 %v366, %v2673
    %v2700 = vmul.f32 %v371, %v2676
    %v2701 = vmul.f32 %v376, %v2678
    %v2702 = vmul.f32 %v381, %v2681
    %v2703 = vmul.f32 %v386, %v2683
    %v2704 = vmul.f32 %v391, %v2686
    %v2705 = vmul.f32 %v396, %v2688
    %v2706 = vpack.c.bf16 %v2691, %v2690
    %v2707 = vpack.c.bf16 %v2693, %v2692
    %v2708 = vpack.c.bf16 %v2695, %v2694
    %v2709 = vpack.c.bf16 %v2697, %v2696
    %v2710 = vpack.c.bf16 %v2699, %v2698
    %v2711 = vpack.c.bf16 %v2701, %v2700
    %v2712 = vpack.c.bf16 %v2703, %v2702
    %v2713 = vpack.c.bf16 %v2705, %v2704
    %v2714 = vld [vmem:[#allocation9 + $0xc0] sm:$0xf]
    %v2715 = vld [vmem:[#allocation9 + $0xc4] sm:$0xf]
    %v2716 = vld [vmem:[#allocation9 + $0xc8] sm:$0xf]
    %v2717 = vld [vmem:[#allocation9 + $0xcc] sm:$0xf]
    %v2718 = vld [vmem:[#allocation9 + $0xd0] sm:$0xf]
    %v2719 = vld [vmem:[#allocation9 + $0xd4] sm:$0xf]
    %v2720 = vld [vmem:[#allocation9 + $0xd8] sm:$0xf]
    %v2721 = vld [vmem:[#allocation9 + $0xdc] sm:$0xf]
    %v2722 = vld [vmem:[#allocation9 + $0xe0] sm:$0xf]
    %v2723 = vld [vmem:[#allocation9 + $0xe4] sm:$0xf]
    %v2724 = vld [vmem:[#allocation9 + $0xe8] sm:$0xf]
    %v2725 = vld [vmem:[#allocation9 + $0xec] sm:$0xf]
    %v2726 = vld [vmem:[#allocation9 + $0xf0] sm:$0xf]
    %v2727 = vld [vmem:[#allocation9 + $0xf4] sm:$0xf]
    %v2728 = vld [vmem:[#allocation9 + $0xf8] sm:$0xf]
    %v2729 = vld [vmem:[#allocation9 + $0xfc] sm:$0xf]
    %v2746 = vunpack.c.l.b16 %v2714
    %v2747 = vunpack.c.l.b16 %v2715
    %v2748 = vunpack.c.l.b16 %v2716
    %v2749 = vunpack.c.l.b16 %v2717
    %v2750 = vunpack.c.l.b16 %v2718
    %v2751 = vunpack.c.l.b16 %v2719
    %v2752 = vunpack.c.l.b16 %v2720
    %v2753 = vunpack.c.l.b16 %v2721
    %v2754 = vunpack.c.l.b16 %v2722
    %v2755 = vunpack.c.l.b16 %v2723
    %v2756 = vunpack.c.l.b16 %v2724
    %v2757 = vunpack.c.l.b16 %v2725
    %v2758 = vunpack.c.l.b16 %v2726
    %v2759 = vunpack.c.l.b16 %v2727
    %v2760 = vunpack.c.l.b16 %v2728
    %v2761 = vunpack.c.l.b16 %v2729
    %v2762 = vpack.c.b16 %v2747, %v2746
    %v2763 = vpack.c.b16 %v2749, %v2748
    %v2764 = vpack.c.b16 %v2751, %v2750
    %v2765 = vpack.c.b16 %v2753, %v2752
    %v2766 = vpack.c.b16 %v2755, %v2754
    %v2767 = vpack.c.b16 %v2757, %v2756
    %v2768 = vpack.c.b16 %v2759, %v2758
    %v2769 = vpack.c.b16 %v2761, %v2760
    %2778 = vmatpush.bf16.msra.mxu0 %v2769
    %2779 = vmatpush.bf16.msra.mxu0 %v2768
    %2780 = vmatpush.bf16.msra.mxu0 %v2767
    %2781 = vmatpush.bf16.msra.mxu0 %v2766
    %2782 = vmatpush.bf16.msra.mxu0 %v2765
    %2783 = vmatpush.bf16.msra.mxu0 %v2764
    %2784 = vmatpush.bf16.msra.mxu0 %v2763
    %2785 = vmatpush.bf16.msra.mxu0 %v2762
    %2786 = vmatmul.bf16.gmra.mxu0 %v2706
    %v2787 = vpop.f32.mrf.mxu0
    %v2788 = vadd.f32 0.0, %v2787
    %v2789 = vpop.f32.mrf.mxu0
    %v2790 = vadd.f32 0.0, %v2789
    %2791 = vmatmul.bf16.gmra.mxu0 %v2707
    %v2792 = vpop.f32.mrf.mxu0
    %v2793 = vadd.f32 0.0, %v2792
    %v2794 = vpop.f32.mrf.mxu0
    %v2795 = vadd.f32 0.0, %v2794
    %2796 = vmatmul.bf16.gmra.mxu0 %v2708
    %v2797 = vpop.f32.mrf.mxu0
    %v2798 = vadd.f32 0.0, %v2797
    %v2799 = vpop.f32.mrf.mxu0
    %v2800 = vadd.f32 0.0, %v2799
    %2801 = vmatmul.bf16.gmra.mxu0 %v2709
    %v2802 = vpop.f32.mrf.mxu0
    %v2803 = vadd.f32 0.0, %v2802
    %v2804 = vpop.f32.mrf.mxu0
    %v2805 = vadd.f32 0.0, %v2804
    %2806 = vmatmul.bf16.gmra.mxu0 %v2710
    %v2807 = vpop.f32.mrf.mxu0
    %v2808 = vadd.f32 0.0, %v2807
    %v2809 = vpop.f32.mrf.mxu0
    %v2810 = vadd.f32 0.0, %v2809
    %2811 = vmatmul.bf16.gmra.mxu0 %v2711
    %v2812 = vpop.f32.mrf.mxu0
    %v2813 = vadd.f32 0.0, %v2812
    %v2814 = vpop.f32.mrf.mxu0
    %v2815 = vadd.f32 0.0, %v2814
    %2816 = vmatmul.bf16.gmra.mxu0 %v2712
    %v2817 = vpop.f32.mrf.mxu0
    %v2818 = vadd.f32 0.0, %v2817
    %v2819 = vpop.f32.mrf.mxu0
    %v2820 = vadd.f32 0.0, %v2819
    %2821 = vmatmul.bf16.gmra.mxu0 %v2713
    %v2822 = vpop.f32.mrf.mxu0
    %v2823 = vadd.f32 0.0, %v2822
    %v2824 = vpop.f32.mrf.mxu0
    %v2825 = vadd.f32 0.0, %v2824
    %2826 = vdwg.mxu0
    %v2827 = vadd.f32 %v2601, %v2788
    %v2828 = vadd.f32 %v2602, %v2790
    %v2829 = vadd.f32 %v2603, %v2793
    %v2830 = vadd.f32 %v2604, %v2795
    %v2831 = vadd.f32 %v2605, %v2798
    %v2832 = vadd.f32 %v2606, %v2800
    %v2833 = vadd.f32 %v2607, %v2803
    %v2834 = vadd.f32 %v2608, %v2805
    %v2835 = vadd.f32 %v2609, %v2808
    %v2836 = vadd.f32 %v2610, %v2810
    %v2837 = vadd.f32 %v2611, %v2813
    %v2838 = vadd.f32 %v2612, %v2815
    %v2839 = vadd.f32 %v2613, %v2818
    %v2840 = vadd.f32 %v2614, %v2820
    %v2841 = vadd.f32 %v2615, %v2823
    %v2842 = vadd.f32 %v2616, %v2825
    %v2843 = vld [vmem:[%s9] sm:$0x1]
    %v2845 = vperm.slane %v2843, 0
    %v2847 = vadd.f32 %v2827, %v2845
    %v2848 = vadd.f32 %v2828, %v2845
    %v2849 = vadd.f32 %v2829, %v2845
    %v2850 = vadd.f32 %v2830, %v2845
    %v2851 = vadd.f32 %v2831, %v2845
    %v2852 = vadd.f32 %v2832, %v2845
    %v2853 = vadd.f32 %v2833, %v2845
    %v2854 = vadd.f32 %v2834, %v2845
    %v2855 = vadd.f32 %v2835, %v2845
    %v2856 = vadd.f32 %v2836, %v2845
    %v2857 = vadd.f32 %v2837, %v2845
    %v2858 = vadd.f32 %v2838, %v2845
    %v2859 = vadd.f32 %v2839, %v2845
    %v2860 = vadd.f32 %v2840, %v2845
    %v2861 = vadd.f32 %v2841, %v2845
    %v2862 = vadd.f32 %v2842, %v2845
    %v2863 = vmax.f32 %v2847, 0.0
    %v2864 = vmax.f32 %v2848, 0.0
    %v2865 = vmax.f32 %v2849, 0.0
    %v2866 = vmax.f32 %v2850, 0.0
    %v2867 = vmax.f32 %v2851, 0.0
    %v2868 = vmax.f32 %v2852, 0.0
    %v2869 = vmax.f32 %v2853, 0.0
    %v2870 = vmax.f32 %v2854, 0.0
    %v2871 = vmax.f32 %v2855, 0.0
    %v2872 = vmax.f32 %v2856, 0.0
    %v2873 = vmax.f32 %v2857, 0.0
    %v2874 = vmax.f32 %v2858, 0.0
    %v2875 = vmax.f32 %v2859, 0.0
    %v2876 = vmax.f32 %v2860, 0.0
    %v2877 = vmax.f32 %v2861, 0.0
    %v2878 = vmax.f32 %v2862, 0.0
    %v2879 = vpack.c.bf16 %v2864, %v2863
    %v2880 = vpack.c.bf16 %v2866, %v2865
    %v2881 = vpack.c.bf16 %v2868, %v2867
    %v2882 = vpack.c.bf16 %v2870, %v2869
    %v2883 = vpack.c.bf16 %v2872, %v2871
    %v2884 = vpack.c.bf16 %v2874, %v2873
    %v2885 = vpack.c.bf16 %v2876, %v2875
    %v2886 = vpack.c.bf16 %v2878, %v2877
    %v2887 = vld [vmem:[#allocation11] sm:$0xf]
    %v2888 = vld [vmem:[#allocation11 + $0x4] sm:$0xf]
    %v2889 = vld [vmem:[#allocation11 + $0x8] sm:$0xf]
    %v2890 = vld [vmem:[#allocation11 + $0xc] sm:$0xf]
    %v2891 = vld [vmem:[#allocation11 + $0x10] sm:$0xf]
    %v2892 = vld [vmem:[#allocation11 + $0x14] sm:$0xf]
    %v2893 = vld [vmem:[#allocation11 + $0x18] sm:$0xf]
    %v2894 = vld [vmem:[#allocation11 + $0x1c] sm:$0xf]
    %v2895 = vld [vmem:[#allocation11 + $0x20] sm:$0xf]
    %v2896 = vld [vmem:[#allocation11 + $0x24] sm:$0xf]
    %v2897 = vld [vmem:[#allocation11 + $0x28] sm:$0xf]
    %v2898 = vld [vmem:[#allocation11 + $0x2c] sm:$0xf]
    %v2899 = vld [vmem:[#allocation11 + $0x30] sm:$0xf]
    %v2900 = vld [vmem:[#allocation11 + $0x34] sm:$0xf]
    %v2901 = vld [vmem:[#allocation11 + $0x38] sm:$0xf]
    %v2902 = vld [vmem:[#allocation11 + $0x3c] sm:$0xf]
    %v2903 = vmul.f32 %v321, %v2863
    %v2904 = vmul.f32 %v326, %v2864
    %v2905 = vmul.f32 %v331, %v2865
    %v2906 = vmul.f32 %v336, %v2866
    %v2907 = vmul.f32 %v341, %v2867
    %v2908 = vmul.f32 %v346, %v2868
    %v2909 = vmul.f32 %v351, %v2869
    %v2910 = vmul.f32 %v356, %v2870
    %v2911 = vmul.f32 %v361, %v2871
    %v2912 = vmul.f32 %v366, %v2872
    %v2913 = vmul.f32 %v371, %v2873
    %v2914 = vmul.f32 %v376, %v2874
    %v2915 = vmul.f32 %v381, %v2875
    %v2916 = vmul.f32 %v386, %v2876
    %v2917 = vmul.f32 %v391, %v2877
    %v2918 = vmul.f32 %v396, %v2878
    %v2919 = vpack.c.bf16 %v2904, %v2903
    %v2920 = vpack.c.bf16 %v2906, %v2905
    %v2921 = vpack.c.bf16 %v2908, %v2907
    %v2922 = vpack.c.bf16 %v2910, %v2909
    %v2923 = vpack.c.bf16 %v2912, %v2911
    %v2924 = vpack.c.bf16 %v2914, %v2913
    %v2925 = vpack.c.bf16 %v2916, %v2915
    %v2926 = vpack.c.bf16 %v2918, %v2917
    %2927 = vmatpush.bf16.msra.mxu0 %v2926
    %2928 = vmatpush.bf16.msra.mxu0 %v2925
    %2929 = vmatpush.bf16.msra.mxu0 %v2924
    %2930 = vmatpush.bf16.msra.mxu0 %v2923
    %2931 = vmatpush.bf16.msra.mxu0 %v2922
    %2932 = vmatpush.bf16.msra.mxu0 %v2921
    %2933 = vmatpush.bf16.msra.mxu0 %v2920
    %2934 = vmatpush.bf16.msra.mxu0 %v2919
    %2935 = vmatmul.bf16.gmra.mxu0 %v454
    %v2936 = vpop.f32.mrf.mxu0
    %v2937 = vadd.f32 0.0, %v2936
    %v2938 = vpop.f32.mrf.mxu0
    %v2939 = vadd.f32 0.0, %v2938
    %2940 = vmatmul.bf16.gmra.mxu0 %v455
    %v2941 = vpop.f32.mrf.mxu0
    %v2942 = vadd.f32 0.0, %v2941
    %v2943 = vpop.f32.mrf.mxu0
    %v2944 = vadd.f32 0.0, %v2943
    %2945 = vmatmul.bf16.gmra.mxu0 %v456
    %v2946 = vpop.f32.mrf.mxu0
    %v2947 = vadd.f32 0.0, %v2946
    %v2948 = vpop.f32.mrf.mxu0
    %v2949 = vadd.f32 0.0, %v2948
    %2950 = vmatmul.bf16.gmra.mxu0 %v457
    %v2951 = vpop.f32.mrf.mxu0
    %v2952 = vadd.f32 0.0, %v2951
    %v2953 = vpop.f32.mrf.mxu0
    %v2954 = vadd.f32 0.0, %v2953
    %2955 = vmatmul.bf16.gmra.mxu0 %v458
    %v2956 = vpop.f32.mrf.mxu0
    %v2957 = vadd.f32 0.0, %v2956
    %v2958 = vpop.f32.mrf.mxu0
    %v2959 = vadd.f32 0.0, %v2958
    %2960 = vmatmul.bf16.gmra.mxu0 %v459
    %v2961 = vpop.f32.mrf.mxu0
    %v2962 = vadd.f32 0.0, %v2961
    %v2963 = vpop.f32.mrf.mxu0
    %v2964 = vadd.f32 0.0, %v2963
    %2965 = vmatmul.bf16.gmra.mxu0 %v460
    %v2966 = vpop.f32.mrf.mxu0
    %v2967 = vadd.f32 0.0, %v2966
    %v2968 = vpop.f32.mrf.mxu0
    %v2969 = vadd.f32 0.0, %v2968
    %2970 = vmatmul.bf16.gmra.mxu0 %v461
    %v2971 = vpop.f32.mrf.mxu0
    %v2972 = vadd.f32 0.0, %v2971
    %v2973 = vpop.f32.mrf.mxu0
    %v2974 = vadd.f32 0.0, %v2973
    %2975 = vdwg.mxu0
    %v2976 = vmul.f32 %v321, %v2937
    %v2977 = vmul.f32 %v326, %v2939
    %v2978 = vmul.f32 %v331, %v2942
    %v2979 = vmul.f32 %v336, %v2944
    %v2980 = vmul.f32 %v341, %v2947
    %v2981 = vmul.f32 %v346, %v2949
    %v2982 = vmul.f32 %v351, %v2952
    %v2983 = vmul.f32 %v356, %v2954
    %v2984 = vmul.f32 %v361, %v2957
    %v2985 = vmul.f32 %v366, %v2959
    %v2986 = vmul.f32 %v371, %v2962
    %v2987 = vmul.f32 %v376, %v2964
    %v2988 = vmul.f32 %v381, %v2967
    %v2989 = vmul.f32 %v386, %v2969
    %v2990 = vmul.f32 %v391, %v2972
    %v2991 = vmul.f32 %v396, %v2974
    %v2992 = vpack.c.bf16 %v2977, %v2976
    %v2993 = vpack.c.bf16 %v2979, %v2978
    %v2994 = vpack.c.bf16 %v2981, %v2980
    %v2995 = vpack.c.bf16 %v2983, %v2982
    %v2996 = vpack.c.bf16 %v2985, %v2984
    %v2997 = vpack.c.bf16 %v2987, %v2986
    %v2998 = vpack.c.bf16 %v2989, %v2988
    %v2999 = vpack.c.bf16 %v2991, %v2990
    %v3000 = vld [vmem:[#allocation11 + $0x40] sm:$0xf]
    %v3001 = vld [vmem:[#allocation11 + $0x44] sm:$0xf]
    %v3002 = vld [vmem:[#allocation11 + $0x48] sm:$0xf]
    %v3003 = vld [vmem:[#allocation11 + $0x4c] sm:$0xf]
    %v3004 = vld [vmem:[#allocation11 + $0x50] sm:$0xf]
    %v3005 = vld [vmem:[#allocation11 + $0x54] sm:$0xf]
    %v3006 = vld [vmem:[#allocation11 + $0x58] sm:$0xf]
    %v3007 = vld [vmem:[#allocation11 + $0x5c] sm:$0xf]
    %v3008 = vld [vmem:[#allocation11 + $0x60] sm:$0xf]
    %v3009 = vld [vmem:[#allocation11 + $0x64] sm:$0xf]
    %v3010 = vld [vmem:[#allocation11 + $0x68] sm:$0xf]
    %v3011 = vld [vmem:[#allocation11 + $0x6c] sm:$0xf]
    %v3012 = vld [vmem:[#allocation11 + $0x70] sm:$0xf]
    %v3013 = vld [vmem:[#allocation11 + $0x74] sm:$0xf]
    %v3014 = vld [vmem:[#allocation11 + $0x78] sm:$0xf]
    %v3015 = vld [vmem:[#allocation11 + $0x7c] sm:$0xf]
    %v3032 = vunpack.c.l.b16 %v3000
    %v3033 = vunpack.c.l.b16 %v3001
    %v3034 = vunpack.c.l.b16 %v3002
    %v3035 = vunpack.c.l.b16 %v3003
    %v3036 = vunpack.c.l.b16 %v3004
    %v3037 = vunpack.c.l.b16 %v3005
    %v3038 = vunpack.c.l.b16 %v3006
    %v3039 = vunpack.c.l.b16 %v3007
    %v3040 = vunpack.c.l.b16 %v3008
    %v3041 = vunpack.c.l.b16 %v3009
    %v3042 = vunpack.c.l.b16 %v3010
    %v3043 = vunpack.c.l.b16 %v3011
    %v3044 = vunpack.c.l.b16 %v3012
    %v3045 = vunpack.c.l.b16 %v3013
    %v3046 = vunpack.c.l.b16 %v3014
    %v3047 = vunpack.c.l.b16 %v3015
    %v3048 = vpack.c.b16 %v3033, %v3032
    %v3049 = vpack.c.b16 %v3035, %v3034
    %v3050 = vpack.c.b16 %v3037, %v3036
    %v3051 = vpack.c.b16 %v3039, %v3038
    %v3052 = vpack.c.b16 %v3041, %v3040
    %v3053 = vpack.c.b16 %v3043, %v3042
    %v3054 = vpack.c.b16 %v3045, %v3044
    %v3055 = vpack.c.b16 %v3047, %v3046
    %3064 = vmatpush.bf16.msra.mxu0 %v3055
    %3065 = vmatpush.bf16.msra.mxu0 %v3054
    %3066 = vmatpush.bf16.msra.mxu0 %v3053
    %3067 = vmatpush.bf16.msra.mxu0 %v3052
    %3068 = vmatpush.bf16.msra.mxu0 %v3051
    %3069 = vmatpush.bf16.msra.mxu0 %v3050
    %3070 = vmatpush.bf16.msra.mxu0 %v3049
    %3071 = vmatpush.bf16.msra.mxu0 %v3048
    %3072 = vmatmul.bf16.gmra.mxu0 %v2992
    %v3073 = vpop.f32.mrf.mxu0
    %v3074 = vadd.f32 0.0, %v3073
    %v3075 = vpop.f32.mrf.mxu0
    %v3076 = vadd.f32 0.0, %v3075
    %3077 = vmatmul.bf16.gmra.mxu0 %v2993
    %v3078 = vpop.f32.mrf.mxu0
    %v3079 = vadd.f32 0.0, %v3078
    %v3080 = vpop.f32.mrf.mxu0
    %v3081 = vadd.f32 0.0, %v3080
    %3082 = vmatmul.bf16.gmra.mxu0 %v2994
    %v3083 = vpop.f32.mrf.mxu0
    %v3084 = vadd.f32 0.0, %v3083
    %v3085 = vpop.f32.mrf.mxu0
    %v3086 = vadd.f32 0.0, %v3085
    %3087 = vmatmul.bf16.gmra.mxu0 %v2995
    %v3088 = vpop.f32.mrf.mxu0
    %v3089 = vadd.f32 0.0, %v3088
    %v3090 = vpop.f32.mrf.mxu0
    %v3091 = vadd.f32 0.0, %v3090
    %3092 = vmatmul.bf16.gmra.mxu0 %v2996
    %v3093 = vpop.f32.mrf.mxu0
    %v3094 = vadd.f32 0.0, %v3093
    %v3095 = vpop.f32.mrf.mxu0
    %v3096 = vadd.f32 0.0, %v3095
    %3097 = vmatmul.bf16.gmra.mxu0 %v2997
    %v3098 = vpop.f32.mrf.mxu0
    %v3099 = vadd.f32 0.0, %v3098
    %v3100 = vpop.f32.mrf.mxu0
    %v3101 = vadd.f32 0.0, %v3100
    %3102 = vmatmul.bf16.gmra.mxu0 %v2998
    %v3103 = vpop.f32.mrf.mxu0
    %v3104 = vadd.f32 0.0, %v3103
    %v3105 = vpop.f32.mrf.mxu0
    %v3106 = vadd.f32 0.0, %v3105
    %3107 = vmatmul.bf16.gmra.mxu0 %v2999
    %v3108 = vpop.f32.mrf.mxu0
    %v3109 = vadd.f32 0.0, %v3108
    %v3110 = vpop.f32.mrf.mxu0
    %v3111 = vadd.f32 0.0, %v3110
    %3112 = vdwg.mxu0
    %v3129 = vunpack.c.l.b16 %v2887
    %v3130 = vunpack.c.l.b16 %v2888
    %v3131 = vunpack.c.l.b16 %v2889
    %v3132 = vunpack.c.l.b16 %v2890
    %v3133 = vunpack.c.l.b16 %v2891
    %v3134 = vunpack.c.l.b16 %v2892
    %v3135 = vunpack.c.l.b16 %v2893
    %v3136 = vunpack.c.l.b16 %v2894
    %v3137 = vunpack.c.l.b16 %v2895
    %v3138 = vunpack.c.l.b16 %v2896
    %v3139 = vunpack.c.l.b16 %v2897
    %v3140 = vunpack.c.l.b16 %v2898
    %v3141 = vunpack.c.l.b16 %v2899
    %v3142 = vunpack.c.l.b16 %v2900
    %v3143 = vunpack.c.l.b16 %v2901
    %v3144 = vunpack.c.l.b16 %v2902
    %v3145 = vpack.c.b16 %v3130, %v3129
    %v3146 = vpack.c.b16 %v3132, %v3131
    %v3147 = vpack.c.b16 %v3134, %v3133
    %v3148 = vpack.c.b16 %v3136, %v3135
    %v3149 = vpack.c.b16 %v3138, %v3137
    %v3150 = vpack.c.b16 %v3140, %v3139
    %v3151 = vpack.c.b16 %v3142, %v3141
    %v3152 = vpack.c.b16 %v3144, %v3143
    %3161 = vmatpush.bf16.msra.mxu0 %v3152
    %3162 = vmatpush.bf16.msra.mxu0 %v3151
    %3163 = vmatpush.bf16.msra.mxu0 %v3150
    %3164 = vmatpush.bf16.msra.mxu0 %v3149
    %3165 = vmatpush.bf16.msra.mxu0 %v3148
    %3166 = vmatpush.bf16.msra.mxu0 %v3147
    %3167 = vmatpush.bf16.msra.mxu0 %v3146
    %3168 = vmatpush.bf16.msra.mxu0 %v3145
    %3169 = vmatmul.bf16.gmra.mxu0 %v2879
    %v3170 = vpop.f32.mrf.mxu0
    %v3171 = vadd.f32 %v3074, %v3170
    %v3172 = vpop.f32.mrf.mxu0
    %v3173 = vadd.f32 %v3076, %v3172
    %3174 = vmatmul.bf16.gmra.mxu0 %v2880
    %v3175 = vpop.f32.mrf.mxu0
    %v3176 = vadd.f32 %v3079, %v3175
    %v3177 = vpop.f32.mrf.mxu0
    %v3178 = vadd.f32 %v3081, %v3177
    %3179 = vmatmul.bf16.gmra.mxu0 %v2881
    %v3180 = vpop.f32.mrf.mxu0
    %v3181 = vadd.f32 %v3084, %v3180
    %v3182 = vpop.f32.mrf.mxu0
    %v3183 = vadd.f32 %v3086, %v3182
    %3184 = vmatmul.bf16.gmra.mxu0 %v2882
    %v3185 = vpop.f32.mrf.mxu0
    %v3186 = vadd.f32 %v3089, %v3185
    %v3187 = vpop.f32.mrf.mxu0
    %v3188 = vadd.f32 %v3091, %v3187
    %3189 = vmatmul.bf16.gmra.mxu0 %v2883
    %v3190 = vpop.f32.mrf.mxu0
    %v3191 = vadd.f32 %v3094, %v3190
    %v3192 = vpop.f32.mrf.mxu0
    %v3193 = vadd.f32 %v3096, %v3192
    %3194 = vmatmul.bf16.gmra.mxu0 %v2884
    %v3195 = vpop.f32.mrf.mxu0
    %v3196 = vadd.f32 %v3099, %v3195
    %v3197 = vpop.f32.mrf.mxu0
    %v3198 = vadd.f32 %v3101, %v3197
    %3199 = vmatmul.bf16.gmra.mxu0 %v2885
    %v3200 = vpop.f32.mrf.mxu0
    %v3201 = vadd.f32 %v3104, %v3200
    %v3202 = vpop.f32.mrf.mxu0
    %v3203 = vadd.f32 %v3106, %v3202
    %3204 = vmatmul.bf16.gmra.mxu0 %v2886
    %v3205 = vpop.f32.mrf.mxu0
    %v3206 = vadd.f32 %v3109, %v3205
    %v3207 = vpop.f32.mrf.mxu0
    %v3208 = vadd.f32 %v3111, %v3207
    %3209 = vdwg.mxu0
    %v3210 = vmul.f32 %v321, %v2976
    %v3211 = vmul.f32 %v326, %v2977
    %v3212 = vmul.f32 %v331, %v2978
    %v3213 = vmul.f32 %v336, %v2979
    %v3214 = vmul.f32 %v341, %v2980
    %v3215 = vmul.f32 %v346, %v2981
    %v3216 = vmul.f32 %v351, %v2982
    %v3217 = vmul.f32 %v356, %v2983
    %v3218 = vmul.f32 %v361, %v2984
    %v3219 = vmul.f32 %v366, %v2985
    %v3220 = vmul.f32 %v371, %v2986
    %v3221 = vmul.f32 %v376, %v2987
    %v3222 = vmul.f32 %v381, %v2988
    %v3223 = vmul.f32 %v386, %v2989
    %v3224 = vmul.f32 %v391, %v2990
    %v3225 = vmul.f32 %v396, %v2991
    %v3226 = vpack.c.bf16 %v3211, %v3210
    %v3227 = vpack.c.bf16 %v3213, %v3212
    %v3228 = vpack.c.bf16 %v3215, %v3214
    %v3229 = vpack.c.bf16 %v3217, %v3216
    %v3230 = vpack.c.bf16 %v3219, %v3218
    %v3231 = vpack.c.bf16 %v3221, %v3220
    %v3232 = vpack.c.bf16 %v3223, %v3222
    %v3233 = vpack.c.bf16 %v3225, %v3224
    %3234 = vmatpush.bf16.msra.mxu0 %v3233
    %3235 = vmatpush.bf16.msra.mxu0 %v3232
    %3236 = vmatpush.bf16.msra.mxu0 %v3231
    %3237 = vmatpush.bf16.msra.mxu0 %v3230
    %3238 = vmatpush.bf16.msra.mxu0 %v3229
    %3239 = vmatpush.bf16.msra.mxu0 %v3228
    %3240 = vmatpush.bf16.msra.mxu0 %v3227
    %3241 = vmatpush.bf16.msra.mxu0 %v3226
    %3242 = vmatmul.bf16.gmra.mxu0 %v454
    %v3243 = vpop.f32.mrf.mxu0
    %v3244 = vadd.f32 0.0, %v3243
    %v3245 = vpop.f32.mrf.mxu0
    %v3246 = vadd.f32 0.0, %v3245
    %3247 = vmatmul.bf16.gmra.mxu0 %v455
    %v3248 = vpop.f32.mrf.mxu0
    %v3249 = vadd.f32 0.0, %v3248
    %v3250 = vpop.f32.mrf.mxu0
    %v3251 = vadd.f32 0.0, %v3250
    %3252 = vmatmul.bf16.gmra.mxu0 %v456
    %v3253 = vpop.f32.mrf.mxu0
    %v3254 = vadd.f32 0.0, %v3253
    %v3255 = vpop.f32.mrf.mxu0
    %v3256 = vadd.f32 0.0, %v3255
    %3257 = vmatmul.bf16.gmra.mxu0 %v457
    %v3258 = vpop.f32.mrf.mxu0
    %v3259 = vadd.f32 0.0, %v3258
    %v3260 = vpop.f32.mrf.mxu0
    %v3261 = vadd.f32 0.0, %v3260
    %3262 = vmatmul.bf16.gmra.mxu0 %v458
    %v3263 = vpop.f32.mrf.mxu0
    %v3264 = vadd.f32 0.0, %v3263
    %v3265 = vpop.f32.mrf.mxu0
    %v3266 = vadd.f32 0.0, %v3265
    %3267 = vmatmul.bf16.gmra.mxu0 %v459
    %v3268 = vpop.f32.mrf.mxu0
    %v3269 = vadd.f32 0.0, %v3268
    %v3270 = vpop.f32.mrf.mxu0
    %v3271 = vadd.f32 0.0, %v3270
    %3272 = vmatmul.bf16.gmra.mxu0 %v460
    %v3273 = vpop.f32.mrf.mxu0
    %v3274 = vadd.f32 0.0, %v3273
    %v3275 = vpop.f32.mrf.mxu0
    %v3276 = vadd.f32 0.0, %v3275
    %3277 = vmatmul.bf16.gmra.mxu0 %v461
    %v3278 = vpop.f32.mrf.mxu0
    %v3279 = vadd.f32 0.0, %v3278
    %v3280 = vpop.f32.mrf.mxu0
    %v3281 = vadd.f32 0.0, %v3280
    %3282 = vdwg.mxu0
    %v3283 = vmul.f32 %v321, %v3244
    %v3284 = vmul.f32 %v326, %v3246
    %v3285 = vmul.f32 %v331, %v3249
    %v3286 = vmul.f32 %v336, %v3251
    %v3287 = vmul.f32 %v341, %v3254
    %v3288 = vmul.f32 %v346, %v3256
    %v3289 = vmul.f32 %v351, %v3259
    %v3290 = vmul.f32 %v356, %v3261
    %v3291 = vmul.f32 %v361, %v3264
    %v3292 = vmul.f32 %v366, %v3266
    %v3293 = vmul.f32 %v371, %v3269
    %v3294 = vmul.f32 %v376, %v3271
    %v3295 = vmul.f32 %v381, %v3274
    %v3296 = vmul.f32 %v386, %v3276
    %v3297 = vmul.f32 %v391, %v3279
    %v3298 = vmul.f32 %v396, %v3281
    %v3299 = vpack.c.bf16 %v3284, %v3283
    %v3300 = vpack.c.bf16 %v3286, %v3285
    %v3301 = vpack.c.bf16 %v3288, %v3287
    %v3302 = vpack.c.bf16 %v3290, %v3289
    %v3303 = vpack.c.bf16 %v3292, %v3291
    %v3304 = vpack.c.bf16 %v3294, %v3293
    %v3305 = vpack.c.bf16 %v3296, %v3295
    %v3306 = vpack.c.bf16 %v3298, %v3297
    %v3307 = vld [vmem:[#allocation11 + $0x80] sm:$0xf]
    %v3308 = vld [vmem:[#allocation11 + $0x84] sm:$0xf]
    %v3309 = vld [vmem:[#allocation11 + $0x88] sm:$0xf]
    %v3310 = vld [vmem:[#allocation11 + $0x8c] sm:$0xf]
    %v3311 = vld [vmem:[#allocation11 + $0x90] sm:$0xf]
    %v3312 = vld [vmem:[#allocation11 + $0x94] sm:$0xf]
    %v3313 = vld [vmem:[#allocation11 + $0x98] sm:$0xf]
    %v3314 = vld [vmem:[#allocation11 + $0x9c] sm:$0xf]
    %v3315 = vld [vmem:[#allocation11 + $0xa0] sm:$0xf]
    %v3316 = vld [vmem:[#allocation11 + $0xa4] sm:$0xf]
    %v3317 = vld [vmem:[#allocation11 + $0xa8] sm:$0xf]
    %v3318 = vld [vmem:[#allocation11 + $0xac] sm:$0xf]
    %v3319 = vld [vmem:[#allocation11 + $0xb0] sm:$0xf]
    %v3320 = vld [vmem:[#allocation11 + $0xb4] sm:$0xf]
    %v3321 = vld [vmem:[#allocation11 + $0xb8] sm:$0xf]
    %v3322 = vld [vmem:[#allocation11 + $0xbc] sm:$0xf]
    %v3339 = vunpack.c.l.b16 %v3307
    %v3340 = vunpack.c.l.b16 %v3308
    %v3341 = vunpack.c.l.b16 %v3309
    %v3342 = vunpack.c.l.b16 %v3310
    %v3343 = vunpack.c.l.b16 %v3311
    %v3344 = vunpack.c.l.b16 %v3312
    %v3345 = vunpack.c.l.b16 %v3313
    %v3346 = vunpack.c.l.b16 %v3314
    %v3347 = vunpack.c.l.b16 %v3315
    %v3348 = vunpack.c.l.b16 %v3316
    %v3349 = vunpack.c.l.b16 %v3317
    %v3350 = vunpack.c.l.b16 %v3318
    %v3351 = vunpack.c.l.b16 %v3319
    %v3352 = vunpack.c.l.b16 %v3320
    %v3353 = vunpack.c.l.b16 %v3321
    %v3354 = vunpack.c.l.b16 %v3322
    %v3355 = vpack.c.b16 %v3340, %v3339
    %v3356 = vpack.c.b16 %v3342, %v3341
    %v3357 = vpack.c.b16 %v3344, %v3343
    %v3358 = vpack.c.b16 %v3346, %v3345
    %v3359 = vpack.c.b16 %v3348, %v3347
    %v3360 = vpack.c.b16 %v3350, %v3349
    %v3361 = vpack.c.b16 %v3352, %v3351
    %v3362 = vpack.c.b16 %v3354, %v3353
    %3371 = vmatpush.bf16.msra.mxu0 %v3362
    %3372 = vmatpush.bf16.msra.mxu0 %v3361
    %3373 = vmatpush.bf16.msra.mxu0 %v3360
    %3374 = vmatpush.bf16.msra.mxu0 %v3359
    %3375 = vmatpush.bf16.msra.mxu0 %v3358
    %3376 = vmatpush.bf16.msra.mxu0 %v3357
    %3377 = vmatpush.bf16.msra.mxu0 %v3356
    %3378 = vmatpush.bf16.msra.mxu0 %v3355
    %3379 = vmatmul.bf16.gmra.mxu0 %v3299
    %v3380 = vpop.f32.mrf.mxu0
    %v3381 = vadd.f32 0.0, %v3380
    %v3382 = vpop.f32.mrf.mxu0
    %v3383 = vadd.f32 0.0, %v3382
    %3384 = vmatmul.bf16.gmra.mxu0 %v3300
    %v3385 = vpop.f32.mrf.mxu0
    %v3386 = vadd.f32 0.0, %v3385
    %v3387 = vpop.f32.mrf.mxu0
    %v3388 = vadd.f32 0.0, %v3387
    %3389 = vmatmul.bf16.gmra.mxu0 %v3301
    %v3390 = vpop.f32.mrf.mxu0
    %v3391 = vadd.f32 0.0, %v3390
    %v3392 = vpop.f32.mrf.mxu0
    %v3393 = vadd.f32 0.0, %v3392
    %3394 = vmatmul.bf16.gmra.mxu0 %v3302
    %v3395 = vpop.f32.mrf.mxu0
    %v3396 = vadd.f32 0.0, %v3395
    %v3397 = vpop.f32.mrf.mxu0
    %v3398 = vadd.f32 0.0, %v3397
    %3399 = vmatmul.bf16.gmra.mxu0 %v3303
    %v3400 = vpop.f32.mrf.mxu0
    %v3401 = vadd.f32 0.0, %v3400
    %v3402 = vpop.f32.mrf.mxu0
    %v3403 = vadd.f32 0.0, %v3402
    %3404 = vmatmul.bf16.gmra.mxu0 %v3304
    %v3405 = vpop.f32.mrf.mxu0
    %v3406 = vadd.f32 0.0, %v3405
    %v3407 = vpop.f32.mrf.mxu0
    %v3408 = vadd.f32 0.0, %v3407
    %3409 = vmatmul.bf16.gmra.mxu0 %v3305
    %v3410 = vpop.f32.mrf.mxu0
    %v3411 = vadd.f32 0.0, %v3410
    %v3412 = vpop.f32.mrf.mxu0
    %v3413 = vadd.f32 0.0, %v3412
    %3414 = vmatmul.bf16.gmra.mxu0 %v3306
    %v3415 = vpop.f32.mrf.mxu0
    %v3416 = vadd.f32 0.0, %v3415
    %v3417 = vpop.f32.mrf.mxu0
    %v3418 = vadd.f32 0.0, %v3417
    %3419 = vdwg.mxu0
    %v3420 = vadd.f32 %v3171, %v3381
    %v3421 = vadd.f32 %v3173, %v3383
    %v3422 = vadd.f32 %v3176, %v3386
    %v3423 = vadd.f32 %v3178, %v3388
    %v3424 = vadd.f32 %v3181, %v3391
    %v3425 = vadd.f32 %v3183, %v3393
    %v3426 = vadd.f32 %v3186, %v3396
    %v3427 = vadd.f32 %v3188, %v3398
    %v3428 = vadd.f32 %v3191, %v3401
    %v3429 = vadd.f32 %v3193, %v3403
    %v3430 = vadd.f32 %v3196, %v3406
    %v3431 = vadd.f32 %v3198, %v3408
    %v3432 = vadd.f32 %v3201, %v3411
    %v3433 = vadd.f32 %v3203, %v3413
    %v3434 = vadd.f32 %v3206, %v3416
    %v3435 = vadd.f32 %v3208, %v3418
    %v3436 = vmul.f32 %v321, %v3283
    %v3437 = vmul.f32 %v326, %v3284
    %v3438 = vmul.f32 %v331, %v3285
    %v3439 = vmul.f32 %v336, %v3286
    %v3440 = vmul.f32 %v341, %v3287
    %v3441 = vmul.f32 %v346, %v3288
    %v3442 = vmul.f32 %v351, %v3289
    %v3443 = vmul.f32 %v356, %v3290
    %v3444 = vmul.f32 %v361, %v3291
    %v3445 = vmul.f32 %v366, %v3292
    %v3446 = vmul.f32 %v371, %v3293
    %v3447 = vmul.f32 %v376, %v3294
    %v3448 = vmul.f32 %v381, %v3295
    %v3449 = vmul.f32 %v386, %v3296
    %v3450 = vmul.f32 %v391, %v3297
    %v3451 = vmul.f32 %v396, %v3298
    %v3452 = vpack.c.bf16 %v3437, %v3436
    %v3453 = vpack.c.bf16 %v3439, %v3438
    %v3454 = vpack.c.bf16 %v3441, %v3440
    %v3455 = vpack.c.bf16 %v3443, %v3442
    %v3456 = vpack.c.bf16 %v3445, %v3444
    %v3457 = vpack.c.bf16 %v3447, %v3446
    %v3458 = vpack.c.bf16 %v3449, %v3448
    %v3459 = vpack.c.bf16 %v3451, %v3450
    %3460 = vmatpush.bf16.msra.mxu0 %v3459
    %3461 = vmatpush.bf16.msra.mxu0 %v3458
    %3462 = vmatpush.bf16.msra.mxu0 %v3457
    %3463 = vmatpush.bf16.msra.mxu0 %v3456
    %3464 = vmatpush.bf16.msra.mxu0 %v3455
    %3465 = vmatpush.bf16.msra.mxu0 %v3454
    %3466 = vmatpush.bf16.msra.mxu0 %v3453
    %3467 = vmatpush.bf16.msra.mxu0 %v3452
    %3468 = vmatmul.bf16.gmra.mxu0 %v454
    %v3469 = vpop.f32.mrf.mxu0
    %v3470 = vadd.f32 0.0, %v3469
    %v3471 = vpop.f32.mrf.mxu0
    %v3472 = vadd.f32 0.0, %v3471
    %3473 = vmatmul.bf16.gmra.mxu0 %v455
    %v3474 = vpop.f32.mrf.mxu0
    %v3475 = vadd.f32 0.0, %v3474
    %v3476 = vpop.f32.mrf.mxu0
    %v3477 = vadd.f32 0.0, %v3476
    %3478 = vmatmul.bf16.gmra.mxu0 %v456
    %v3479 = vpop.f32.mrf.mxu0
    %v3480 = vadd.f32 0.0, %v3479
    %v3481 = vpop.f32.mrf.mxu0
    %v3482 = vadd.f32 0.0, %v3481
    %3483 = vmatmul.bf16.gmra.mxu0 %v457
    %v3484 = vpop.f32.mrf.mxu0
    %v3485 = vadd.f32 0.0, %v3484
    %v3486 = vpop.f32.mrf.mxu0
    %v3487 = vadd.f32 0.0, %v3486
    %3488 = vmatmul.bf16.gmra.mxu0 %v458
    %v3489 = vpop.f32.mrf.mxu0
    %v3490 = vadd.f32 0.0, %v3489
    %v3491 = vpop.f32.mrf.mxu0
    %v3492 = vadd.f32 0.0, %v3491
    %3493 = vmatmul.bf16.gmra.mxu0 %v459
    %v3494 = vpop.f32.mrf.mxu0
    %v3495 = vadd.f32 0.0, %v3494
    %v3496 = vpop.f32.mrf.mxu0
    %v3497 = vadd.f32 0.0, %v3496
    %3498 = vmatmul.bf16.gmra.mxu0 %v460
    %v3499 = vpop.f32.mrf.mxu0
    %v3500 = vadd.f32 0.0, %v3499
    %v3501 = vpop.f32.mrf.mxu0
    %v3502 = vadd.f32 0.0, %v3501
    %3503 = vmatmul.bf16.gmra.mxu0 %v461
    %v3504 = vpop.f32.mrf.mxu0
    %v3505 = vadd.f32 0.0, %v3504
    %v3506 = vpop.f32.mrf.mxu0
    %v3507 = vadd.f32 0.0, %v3506
    %3508 = vdwg.mxu0
    %v3509 = vmul.f32 %v321, %v3470
    %v3510 = vmul.f32 %v326, %v3472
    %v3511 = vmul.f32 %v331, %v3475
    %v3512 = vmul.f32 %v336, %v3477
    %v3513 = vmul.f32 %v341, %v3480
    %v3514 = vmul.f32 %v346, %v3482
    %v3515 = vmul.f32 %v351, %v3485
    %v3516 = vmul.f32 %v356, %v3487
    %v3517 = vmul.f32 %v361, %v3490
    %v3518 = vmul.f32 %v366, %v3492
    %v3519 = vmul.f32 %v371, %v3495
    %v3520 = vmul.f32 %v376, %v3497
    %v3521 = vmul.f32 %v381, %v3500
    %v3522 = vmul.f32 %v386, %v3502
    %v3523 = vmul.f32 %v391, %v3505
    %v3524 = vmul.f32 %v396, %v3507
    %v3525 = vpack.c.bf16 %v3510, %v3509
    %v3526 = vpack.c.bf16 %v3512, %v3511
    %v3527 = vpack.c.bf16 %v3514, %v3513
    %v3528 = vpack.c.bf16 %v3516, %v3515
    %v3529 = vpack.c.bf16 %v3518, %v3517
    %v3530 = vpack.c.bf16 %v3520, %v3519
    %v3531 = vpack.c.bf16 %v3522, %v3521
    %v3532 = vpack.c.bf16 %v3524, %v3523
    %v3533 = vld [vmem:[#allocation11 + $0xc0] sm:$0xf]
    %v3534 = vld [vmem:[#allocation11 + $0xc4] sm:$0xf]
    %v3535 = vld [vmem:[#allocation11 + $0xc8] sm:$0xf]
    %v3536 = vld [vmem:[#allocation11 + $0xcc] sm:$0xf]
    %v3537 = vld [vmem:[#allocation11 + $0xd0] sm:$0xf]
    %v3538 = vld [vmem:[#allocation11 + $0xd4] sm:$0xf]
    %v3539 = vld [vmem:[#allocation11 + $0xd8] sm:$0xf]
    %v3540 = vld [vmem:[#allocation11 + $0xdc] sm:$0xf]
    %v3541 = vld [vmem:[#allocation11 + $0xe0] sm:$0xf]
    %v3542 = vld [vmem:[#allocation11 + $0xe4] sm:$0xf]
    %v3543 = vld [vmem:[#allocation11 + $0xe8] sm:$0xf]
    %v3544 = vld [vmem:[#allocation11 + $0xec] sm:$0xf]
    %v3545 = vld [vmem:[#allocation11 + $0xf0] sm:$0xf]
    %v3546 = vld [vmem:[#allocation11 + $0xf4] sm:$0xf]
    %v3547 = vld [vmem:[#allocation11 + $0xf8] sm:$0xf]
    %v3548 = vld [vmem:[#allocation11 + $0xfc] sm:$0xf]
    %v3565 = vunpack.c.l.b16 %v3533
    %v3566 = vunpack.c.l.b16 %v3534
    %v3567 = vunpack.c.l.b16 %v3535
    %v3568 = vunpack.c.l.b16 %v3536
    %v3569 = vunpack.c.l.b16 %v3537
    %v3570 = vunpack.c.l.b16 %v3538
    %v3571 = vunpack.c.l.b16 %v3539
    %v3572 = vunpack.c.l.b16 %v3540
    %v3573 = vunpack.c.l.b16 %v3541
    %v3574 = vunpack.c.l.b16 %v3542
    %v3575 = vunpack.c.l.b16 %v3543
    %v3576 = vunpack.c.l.b16 %v3544
    %v3577 = vunpack.c.l.b16 %v3545
    %v3578 = vunpack.c.l.b16 %v3546
    %v3579 = vunpack.c.l.b16 %v3547
    %v3580 = vunpack.c.l.b16 %v3548
    %v3581 = vpack.c.b16 %v3566, %v3565
    %v3582 = vpack.c.b16 %v3568, %v3567
    %v3583 = vpack.c.b16 %v3570, %v3569
    %v3584 = vpack.c.b16 %v3572, %v3571
    %v3585 = vpack.c.b16 %v3574, %v3573
    %v3586 = vpack.c.b16 %v3576, %v3575
    %v3587 = vpack.c.b16 %v3578, %v3577
    %v3588 = vpack.c.b16 %v3580, %v3579
    %3597 = vmatpush.bf16.msra.mxu0 %v3588
    %3598 = vmatpush.bf16.msra.mxu0 %v3587
    %3599 = vmatpush.bf16.msra.mxu0 %v3586
    %3600 = vmatpush.bf16.msra.mxu0 %v3585
    %3601 = vmatpush.bf16.msra.mxu0 %v3584
    %3602 = vmatpush.bf16.msra.mxu0 %v3583
    %3603 = vmatpush.bf16.msra.mxu0 %v3582
    %3604 = vmatpush.bf16.msra.mxu0 %v3581
    %3605 = vmatmul.bf16.gmra.mxu0 %v3525
    %v3606 = vpop.f32.mrf.mxu0
    %v3607 = vadd.f32 0.0, %v3606
    %v3608 = vpop.f32.mrf.mxu0
    %v3609 = vadd.f32 0.0, %v3608
    %3610 = vmatmul.bf16.gmra.mxu0 %v3526
    %v3611 = vpop.f32.mrf.mxu0
    %v3612 = vadd.f32 0.0, %v3611
    %v3613 = vpop.f32.mrf.mxu0
    %v3614 = vadd.f32 0.0, %v3613
    %3615 = vmatmul.bf16.gmra.mxu0 %v3527
    %v3616 = vpop.f32.mrf.mxu0
    %v3617 = vadd.f32 0.0, %v3616
    %v3618 = vpop.f32.mrf.mxu0
    %v3619 = vadd.f32 0.0, %v3618
    %3620 = vmatmul.bf16.gmra.mxu0 %v3528
    %v3621 = vpop.f32.mrf.mxu0
    %v3622 = vadd.f32 0.0, %v3621
    %v3623 = vpop.f32.mrf.mxu0
    %v3624 = vadd.f32 0.0, %v3623
    %3625 = vmatmul.bf16.gmra.mxu0 %v3529
    %v3626 = vpop.f32.mrf.mxu0
    %v3627 = vadd.f32 0.0, %v3626
    %v3628 = vpop.f32.mrf.mxu0
    %v3629 = vadd.f32 0.0, %v3628
    %3630 = vmatmul.bf16.gmra.mxu0 %v3530
    %v3631 = vpop.f32.mrf.mxu0
    %v3632 = vadd.f32 0.0, %v3631
    %v3633 = vpop.f32.mrf.mxu0
    %v3634 = vadd.f32 0.0, %v3633
    %3635 = vmatmul.bf16.gmra.mxu0 %v3531
    %v3636 = vpop.f32.mrf.mxu0
    %v3637 = vadd.f32 0.0, %v3636
    %v3638 = vpop.f32.mrf.mxu0
    %v3639 = vadd.f32 0.0, %v3638
    %3640 = vmatmul.bf16.gmra.mxu0 %v3532
    %v3641 = vpop.f32.mrf.mxu0
    %v3642 = vadd.f32 0.0, %v3641
    %v3643 = vpop.f32.mrf.mxu0
    %v3644 = vadd.f32 0.0, %v3643
    %3645 = vdwg.mxu0
    %v3646 = vadd.f32 %v3420, %v3607
    %v3647 = vadd.f32 %v3421, %v3609
    %v3648 = vadd.f32 %v3422, %v3612
    %v3649 = vadd.f32 %v3423, %v3614
    %v3650 = vadd.f32 %v3424, %v3617
    %v3651 = vadd.f32 %v3425, %v3619
    %v3652 = vadd.f32 %v3426, %v3622
    %v3653 = vadd.f32 %v3427, %v3624
    %v3654 = vadd.f32 %v3428, %v3627
    %v3655 = vadd.f32 %v3429, %v3629
    %v3656 = vadd.f32 %v3430, %v3632
    %v3657 = vadd.f32 %v3431, %v3634
    %v3658 = vadd.f32 %v3432, %v3637
    %v3659 = vadd.f32 %v3433, %v3639
    %v3660 = vadd.f32 %v3434, %v3642
    %v3661 = vadd.f32 %v3435, %v3644
    %v3662 = vld [vmem:[%s11] sm:$0x1]
    %v3664 = vperm.slane %v3662, 0
    %v3666 = vadd.f32 %v3646, %v3664
    %v3667 = vadd.f32 %v3647, %v3664
    %v3668 = vadd.f32 %v3648, %v3664
    %v3669 = vadd.f32 %v3649, %v3664
    %v3670 = vadd.f32 %v3650, %v3664
    %v3671 = vadd.f32 %v3651, %v3664
    %v3672 = vadd.f32 %v3652, %v3664
    %v3673 = vadd.f32 %v3653, %v3664
    %v3674 = vadd.f32 %v3654, %v3664
    %v3675 = vadd.f32 %v3655, %v3664
    %v3676 = vadd.f32 %v3656, %v3664
    %v3677 = vadd.f32 %v3657, %v3664
    %v3678 = vadd.f32 %v3658, %v3664
    %v3679 = vadd.f32 %v3659, %v3664
    %v3680 = vadd.f32 %v3660, %v3664
    %v3681 = vadd.f32 %v3661, %v3664
    %v3682 = vmax.f32 %v3666, 0.0
    %v3683 = vmax.f32 %v3667, 0.0
    %v3684 = vmax.f32 %v3668, 0.0
    %v3685 = vmax.f32 %v3669, 0.0
    %v3686 = vmax.f32 %v3670, 0.0
    %v3687 = vmax.f32 %v3671, 0.0
    %v3688 = vmax.f32 %v3672, 0.0
    %v3689 = vmax.f32 %v3673, 0.0
    %v3690 = vmax.f32 %v3674, 0.0
    %v3691 = vmax.f32 %v3675, 0.0
    %v3692 = vmax.f32 %v3676, 0.0
    %v3693 = vmax.f32 %v3677, 0.0
    %v3694 = vmax.f32 %v3678, 0.0
    %v3695 = vmax.f32 %v3679, 0.0
    %v3696 = vmax.f32 %v3680, 0.0
    %v3697 = vmax.f32 %v3681, 0.0
    %v3698 = vpack.c.bf16 %v3683, %v3682
    %v3699 = vpack.c.bf16 %v3685, %v3684
    %v3700 = vpack.c.bf16 %v3687, %v3686
    %v3701 = vpack.c.bf16 %v3689, %v3688
    %v3702 = vpack.c.bf16 %v3691, %v3690
    %v3703 = vpack.c.bf16 %v3693, %v3692
    %v3704 = vpack.c.bf16 %v3695, %v3694
    %v3705 = vpack.c.bf16 %v3697, %v3696
    %v3706 = vld [vmem:[#allocation12] sm:$0xf]
    %v3707 = vld [vmem:[#allocation12 + $0x4] sm:$0xf]
    %v3708 = vld [vmem:[#allocation12 + $0x8] sm:$0xf]
    %v3709 = vld [vmem:[#allocation12 + $0xc] sm:$0xf]
    %v3710 = vld [vmem:[#allocation12 + $0x10] sm:$0xf]
    %v3711 = vld [vmem:[#allocation12 + $0x14] sm:$0xf]
    %v3712 = vld [vmem:[#allocation12 + $0x18] sm:$0xf]
    %v3713 = vld [vmem:[#allocation12 + $0x1c] sm:$0xf]
    %v3714 = vld [vmem:[#allocation12 + $0x20] sm:$0xf]
    %v3715 = vld [vmem:[#allocation12 + $0x24] sm:$0xf]
    %v3716 = vld [vmem:[#allocation12 + $0x28] sm:$0xf]
    %v3717 = vld [vmem:[#allocation12 + $0x2c] sm:$0xf]
    %v3718 = vld [vmem:[#allocation12 + $0x30] sm:$0xf]
    %v3719 = vld [vmem:[#allocation12 + $0x34] sm:$0xf]
    %v3720 = vld [vmem:[#allocation12 + $0x38] sm:$0xf]
    %v3721 = vld [vmem:[#allocation12 + $0x3c] sm:$0xf]
    %v3722 = vmul.f32 %v321, %v3682
    %v3723 = vmul.f32 %v326, %v3683
    %v3724 = vmul.f32 %v331, %v3684
    %v3725 = vmul.f32 %v336, %v3685
    %v3726 = vmul.f32 %v341, %v3686
    %v3727 = vmul.f32 %v346, %v3687
    %v3728 = vmul.f32 %v351, %v3688
    %v3729 = vmul.f32 %v356, %v3689
    %v3730 = vmul.f32 %v361, %v3690
    %v3731 = vmul.f32 %v366, %v3691
    %v3732 = vmul.f32 %v371, %v3692
    %v3733 = vmul.f32 %v376, %v3693
    %v3734 = vmul.f32 %v381, %v3694
    %v3735 = vmul.f32 %v386, %v3695
    %v3736 = vmul.f32 %v391, %v3696
    %v3737 = vmul.f32 %v396, %v3697
    %v3738 = vpack.c.bf16 %v3723, %v3722
    %v3739 = vpack.c.bf16 %v3725, %v3724
    %v3740 = vpack.c.bf16 %v3727, %v3726
    %v3741 = vpack.c.bf16 %v3729, %v3728
    %v3742 = vpack.c.bf16 %v3731, %v3730
    %v3743 = vpack.c.bf16 %v3733, %v3732
    %v3744 = vpack.c.bf16 %v3735, %v3734
    %v3745 = vpack.c.bf16 %v3737, %v3736
    %3746 = vmatpush.bf16.msra.mxu0 %v3745
    %3747 = vmatpush.bf16.msra.mxu0 %v3744
    %3748 = vmatpush.bf16.msra.mxu0 %v3743
    %3749 = vmatpush.bf16.msra.mxu0 %v3742
    %3750 = vmatpush.bf16.msra.mxu0 %v3741
    %3751 = vmatpush.bf16.msra.mxu0 %v3740
    %3752 = vmatpush.bf16.msra.mxu0 %v3739
    %3753 = vmatpush.bf16.msra.mxu0 %v3738
    %3754 = vmatmul.bf16.gmra.mxu0 %v454
    %v3755 = vpop.f32.mrf.mxu0
    %v3756 = vadd.f32 0.0, %v3755
    %v3757 = vpop.f32.mrf.mxu0
    %v3758 = vadd.f32 0.0, %v3757
    %3759 = vmatmul.bf16.gmra.mxu0 %v455
    %v3760 = vpop.f32.mrf.mxu0
    %v3761 = vadd.f32 0.0, %v3760
    %v3762 = vpop.f32.mrf.mxu0
    %v3763 = vadd.f32 0.0, %v3762
    %3764 = vmatmul.bf16.gmra.mxu0 %v456
    %v3765 = vpop.f32.mrf.mxu0
    %v3766 = vadd.f32 0.0, %v3765
    %v3767 = vpop.f32.mrf.mxu0
    %v3768 = vadd.f32 0.0, %v3767
    %3769 = vmatmul.bf16.gmra.mxu0 %v457
    %v3770 = vpop.f32.mrf.mxu0
    %v3771 = vadd.f32 0.0, %v3770
    %v3772 = vpop.f32.mrf.mxu0
    %v3773 = vadd.f32 0.0, %v3772
    %3774 = vmatmul.bf16.gmra.mxu0 %v458
    %v3775 = vpop.f32.mrf.mxu0
    %v3776 = vadd.f32 0.0, %v3775
    %v3777 = vpop.f32.mrf.mxu0
    %v3778 = vadd.f32 0.0, %v3777
    %3779 = vmatmul.bf16.gmra.mxu0 %v459
    %v3780 = vpop.f32.mrf.mxu0
    %v3781 = vadd.f32 0.0, %v3780
    %v3782 = vpop.f32.mrf.mxu0
    %v3783 = vadd.f32 0.0, %v3782
    %3784 = vmatmul.bf16.gmra.mxu0 %v460
    %v3785 = vpop.f32.mrf.mxu0
    %v3786 = vadd.f32 0.0, %v3785
    %v3787 = vpop.f32.mrf.mxu0
    %v3788 = vadd.f32 0.0, %v3787
    %3789 = vmatmul.bf16.gmra.mxu0 %v461
    %v3790 = vpop.f32.mrf.mxu0
    %v3791 = vadd.f32 0.0, %v3790
    %v3792 = vpop.f32.mrf.mxu0
    %v3793 = vadd.f32 0.0, %v3792
    %3794 = vdwg.mxu0
    %v3795 = vmul.f32 %v321, %v3756
    %v3796 = vmul.f32 %v326, %v3758
    %v3797 = vmul.f32 %v331, %v3761
    %v3798 = vmul.f32 %v336, %v3763
    %v3799 = vmul.f32 %v341, %v3766
    %v3800 = vmul.f32 %v346, %v3768
    %v3801 = vmul.f32 %v351, %v3771
    %v3802 = vmul.f32 %v356, %v3773
    %v3803 = vmul.f32 %v361, %v3776
    %v3804 = vmul.f32 %v366, %v3778
    %v3805 = vmul.f32 %v371, %v3781
    %v3806 = vmul.f32 %v376, %v3783
    %v3807 = vmul.f32 %v381, %v3786
    %v3808 = vmul.f32 %v386, %v3788
    %v3809 = vmul.f32 %v391, %v3791
    %v3810 = vmul.f32 %v396, %v3793
    %v3811 = vpack.c.bf16 %v3796, %v3795
    %v3812 = vpack.c.bf16 %v3798, %v3797
    %v3813 = vpack.c.bf16 %v3800, %v3799
    %v3814 = vpack.c.bf16 %v3802, %v3801
    %v3815 = vpack.c.bf16 %v3804, %v3803
    %v3816 = vpack.c.bf16 %v3806, %v3805
    %v3817 = vpack.c.bf16 %v3808, %v3807
    %v3818 = vpack.c.bf16 %v3810, %v3809
    %v3819 = vld [vmem:[#allocation12 + $0x40] sm:$0xf]
    %v3820 = vld [vmem:[#allocation12 + $0x44] sm:$0xf]
    %v3821 = vld [vmem:[#allocation12 + $0x48] sm:$0xf]
    %v3822 = vld [vmem:[#allocation12 + $0x4c] sm:$0xf]
    %v3823 = vld [vmem:[#allocation12 + $0x50] sm:$0xf]
    %v3824 = vld [vmem:[#allocation12 + $0x54] sm:$0xf]
    %v3825 = vld [vmem:[#allocation12 + $0x58] sm:$0xf]
    %v3826 = vld [vmem:[#allocation12 + $0x5c] sm:$0xf]
    %v3827 = vld [vmem:[#allocation12 + $0x60] sm:$0xf]
    %v3828 = vld [vmem:[#allocation12 + $0x64] sm:$0xf]
    %v3829 = vld [vmem:[#allocation12 + $0x68] sm:$0xf]
    %v3830 = vld [vmem:[#allocation12 + $0x6c] sm:$0xf]
    %v3831 = vld [vmem:[#allocation12 + $0x70] sm:$0xf]
    %v3832 = vld [vmem:[#allocation12 + $0x74] sm:$0xf]
    %v3833 = vld [vmem:[#allocation12 + $0x78] sm:$0xf]
    %v3834 = vld [vmem:[#allocation12 + $0x7c] sm:$0xf]
    %v3851 = vunpack.c.l.b16 %v3819
    %v3852 = vunpack.c.l.b16 %v3820
    %v3853 = vunpack.c.l.b16 %v3821
    %v3854 = vunpack.c.l.b16 %v3822
    %v3855 = vunpack.c.l.b16 %v3823
    %v3856 = vunpack.c.l.b16 %v3824
    %v3857 = vunpack.c.l.b16 %v3825
    %v3858 = vunpack.c.l.b16 %v3826
    %v3859 = vunpack.c.l.b16 %v3827
    %v3860 = vunpack.c.l.b16 %v3828
    %v3861 = vunpack.c.l.b16 %v3829
    %v3862 = vunpack.c.l.b16 %v3830
    %v3863 = vunpack.c.l.b16 %v3831
    %v3864 = vunpack.c.l.b16 %v3832
    %v3865 = vunpack.c.l.b16 %v3833
    %v3866 = vunpack.c.l.b16 %v3834
    %v3867 = vpack.c.b16 %v3852, %v3851
    %v3868 = vpack.c.b16 %v3854, %v3853
    %v3869 = vpack.c.b16 %v3856, %v3855
    %v3870 = vpack.c.b16 %v3858, %v3857
    %v3871 = vpack.c.b16 %v3860, %v3859
    %v3872 = vpack.c.b16 %v3862, %v3861
    %v3873 = vpack.c.b16 %v3864, %v3863
    %v3874 = vpack.c.b16 %v3866, %v3865
    %3883 = vmatpush.bf16.msra.mxu0 %v3874
    %3884 = vmatpush.bf16.msra.mxu0 %v3873
    %3885 = vmatpush.bf16.msra.mxu0 %v3872
    %3886 = vmatpush.bf16.msra.mxu0 %v3871
    %3887 = vmatpush.bf16.msra.mxu0 %v3870
    %3888 = vmatpush.bf16.msra.mxu0 %v3869
    %3889 = vmatpush.bf16.msra.mxu0 %v3868
    %3890 = vmatpush.bf16.msra.mxu0 %v3867
    %3891 = vmatmul.bf16.gmra.mxu0 %v3811
    %v3892 = vpop.f32.mrf.mxu0
    %v3893 = vadd.f32 0.0, %v3892
    %v3894 = vpop.f32.mrf.mxu0
    %v3895 = vadd.f32 0.0, %v3894
    %3896 = vmatmul.bf16.gmra.mxu0 %v3812
    %v3897 = vpop.f32.mrf.mxu0
    %v3898 = vadd.f32 0.0, %v3897
    %v3899 = vpop.f32.mrf.mxu0
    %v3900 = vadd.f32 0.0, %v3899
    %3901 = vmatmul.bf16.gmra.mxu0 %v3813
    %v3902 = vpop.f32.mrf.mxu0
    %v3903 = vadd.f32 0.0, %v3902
    %v3904 = vpop.f32.mrf.mxu0
    %v3905 = vadd.f32 0.0, %v3904
    %3906 = vmatmul.bf16.gmra.mxu0 %v3814
    %v3907 = vpop.f32.mrf.mxu0
    %v3908 = vadd.f32 0.0, %v3907
    %v3909 = vpop.f32.mrf.mxu0
    %v3910 = vadd.f32 0.0, %v3909
    %3911 = vmatmul.bf16.gmra.mxu0 %v3815
    %v3912 = vpop.f32.mrf.mxu0
    %v3913 = vadd.f32 0.0, %v3912
    %v3914 = vpop.f32.mrf.mxu0
    %v3915 = vadd.f32 0.0, %v3914
    %3916 = vmatmul.bf16.gmra.mxu0 %v3816
    %v3917 = vpop.f32.mrf.mxu0
    %v3918 = vadd.f32 0.0, %v3917
    %v3919 = vpop.f32.mrf.mxu0
    %v3920 = vadd.f32 0.0, %v3919
    %3921 = vmatmul.bf16.gmra.mxu0 %v3817
    %v3922 = vpop.f32.mrf.mxu0
    %v3923 = vadd.f32 0.0, %v3922
    %v3924 = vpop.f32.mrf.mxu0
    %v3925 = vadd.f32 0.0, %v3924
    %3926 = vmatmul.bf16.gmra.mxu0 %v3818
    %v3927 = vpop.f32.mrf.mxu0
    %v3928 = vadd.f32 0.0, %v3927
    %v3929 = vpop.f32.mrf.mxu0
    %v3930 = vadd.f32 0.0, %v3929
    %3931 = vdwg.mxu0
    %v3948 = vunpack.c.l.b16 %v3706
    %v3949 = vunpack.c.l.b16 %v3707
    %v3950 = vunpack.c.l.b16 %v3708
    %v3951 = vunpack.c.l.b16 %v3709
    %v3952 = vunpack.c.l.b16 %v3710
    %v3953 = vunpack.c.l.b16 %v3711
    %v3954 = vunpack.c.l.b16 %v3712
    %v3955 = vunpack.c.l.b16 %v3713
    %v3956 = vunpack.c.l.b16 %v3714
    %v3957 = vunpack.c.l.b16 %v3715
    %v3958 = vunpack.c.l.b16 %v3716
    %v3959 = vunpack.c.l.b16 %v3717
    %v3960 = vunpack.c.l.b16 %v3718
    %v3961 = vunpack.c.l.b16 %v3719
    %v3962 = vunpack.c.l.b16 %v3720
    %v3963 = vunpack.c.l.b16 %v3721
    %v3964 = vpack.c.b16 %v3949, %v3948
    %v3965 = vpack.c.b16 %v3951, %v3950
    %v3966 = vpack.c.b16 %v3953, %v3952
    %v3967 = vpack.c.b16 %v3955, %v3954
    %v3968 = vpack.c.b16 %v3957, %v3956
    %v3969 = vpack.c.b16 %v3959, %v3958
    %v3970 = vpack.c.b16 %v3961, %v3960
    %v3971 = vpack.c.b16 %v3963, %v3962
    %3980 = vmatpush.bf16.msra.mxu0 %v3971
    %3981 = vmatpush.bf16.msra.mxu0 %v3970
    %3982 = vmatpush.bf16.msra.mxu0 %v3969
    %3983 = vmatpush.bf16.msra.mxu0 %v3968
    %3984 = vmatpush.bf16.msra.mxu0 %v3967
    %3985 = vmatpush.bf16.msra.mxu0 %v3966
    %3986 = vmatpush.bf16.msra.mxu0 %v3965
    %3987 = vmatpush.bf16.msra.mxu0 %v3964
    %3988 = vmatmul.bf16.gmra.mxu0 %v3698
    %v3989 = vpop.f32.mrf.mxu0
    %v3990 = vadd.f32 %v3893, %v3989
    %v3991 = vpop.f32.mrf.mxu0
    %v3992 = vadd.f32 %v3895, %v3991
    %3993 = vmatmul.bf16.gmra.mxu0 %v3699
    %v3994 = vpop.f32.mrf.mxu0
    %v3995 = vadd.f32 %v3898, %v3994
    %v3996 = vpop.f32.mrf.mxu0
    %v3997 = vadd.f32 %v3900, %v3996
    %3998 = vmatmul.bf16.gmra.mxu0 %v3700
    %v3999 = vpop.f32.mrf.mxu0
    %v4000 = vadd.f32 %v3903, %v3999
    %v4001 = vpop.f32.mrf.mxu0
    %v4002 = vadd.f32 %v3905, %v4001
    %4003 = vmatmul.bf16.gmra.mxu0 %v3701
    %v4004 = vpop.f32.mrf.mxu0
    %v4005 = vadd.f32 %v3908, %v4004
    %v4006 = vpop.f32.mrf.mxu0
    %v4007 = vadd.f32 %v3910, %v4006
    %4008 = vmatmul.bf16.gmra.mxu0 %v3702
    %v4009 = vpop.f32.mrf.mxu0
    %v4010 = vadd.f32 %v3913, %v4009
    %v4011 = vpop.f32.mrf.mxu0
    %v4012 = vadd.f32 %v3915, %v4011
    %4013 = vmatmul.bf16.gmra.mxu0 %v3703
    %v4014 = vpop.f32.mrf.mxu0
    %v4015 = vadd.f32 %v3918, %v4014
    %v4016 = vpop.f32.mrf.mxu0
    %v4017 = vadd.f32 %v3920, %v4016
    %4018 = vmatmul.bf16.gmra.mxu0 %v3704
    %v4019 = vpop.f32.mrf.mxu0
    %v4020 = vadd.f32 %v3923, %v4019
    %v4021 = vpop.f32.mrf.mxu0
    %v4022 = vadd.f32 %v3925, %v4021
    %4023 = vmatmul.bf16.gmra.mxu0 %v3705
    %v4024 = vpop.f32.mrf.mxu0
    %v4025 = vadd.f32 %v3928, %v4024
    %v4026 = vpop.f32.mrf.mxu0
    %v4027 = vadd.f32 %v3930, %v4026
    %4028 = vdwg.mxu0
    %v4029 = vmul.f32 %v321, %v3795
    %v4030 = vmul.f32 %v326, %v3796
    %v4031 = vmul.f32 %v331, %v3797
    %v4032 = vmul.f32 %v336, %v3798
    %v4033 = vmul.f32 %v341, %v3799
    %v4034 = vmul.f32 %v346, %v3800
    %v4035 = vmul.f32 %v351, %v3801
    %v4036 = vmul.f32 %v356, %v3802
    %v4037 = vmul.f32 %v361, %v3803
    %v4038 = vmul.f32 %v366, %v3804
    %v4039 = vmul.f32 %v371, %v3805
    %v4040 = vmul.f32 %v376, %v3806
    %v4041 = vmul.f32 %v381, %v3807
    %v4042 = vmul.f32 %v386, %v3808
    %v4043 = vmul.f32 %v391, %v3809
    %v4044 = vmul.f32 %v396, %v3810
    %v4045 = vpack.c.bf16 %v4030, %v4029
    %v4046 = vpack.c.bf16 %v4032, %v4031
    %v4047 = vpack.c.bf16 %v4034, %v4033
    %v4048 = vpack.c.bf16 %v4036, %v4035
    %v4049 = vpack.c.bf16 %v4038, %v4037
    %v4050 = vpack.c.bf16 %v4040, %v4039
    %v4051 = vpack.c.bf16 %v4042, %v4041
    %v4052 = vpack.c.bf16 %v4044, %v4043
    %4053 = vmatpush.bf16.msra.mxu0 %v4052
    %4054 = vmatpush.bf16.msra.mxu0 %v4051
    %4055 = vmatpush.bf16.msra.mxu0 %v4050
    %4056 = vmatpush.bf16.msra.mxu0 %v4049
    %4057 = vmatpush.bf16.msra.mxu0 %v4048
    %4058 = vmatpush.bf16.msra.mxu0 %v4047
    %4059 = vmatpush.bf16.msra.mxu0 %v4046
    %4060 = vmatpush.bf16.msra.mxu0 %v4045
    %4061 = vmatmul.bf16.gmra.mxu0 %v454
    %v4062 = vpop.f32.mrf.mxu0
    %v4063 = vadd.f32 0.0, %v4062
    %v4064 = vpop.f32.mrf.mxu0
    %v4065 = vadd.f32 0.0, %v4064
    %4066 = vmatmul.bf16.gmra.mxu0 %v455
    %v4067 = vpop.f32.mrf.mxu0
    %v4068 = vadd.f32 0.0, %v4067
    %v4069 = vpop.f32.mrf.mxu0
    %v4070 = vadd.f32 0.0, %v4069
    %4071 = vmatmul.bf16.gmra.mxu0 %v456
    %v4072 = vpop.f32.mrf.mxu0
    %v4073 = vadd.f32 0.0, %v4072
    %v4074 = vpop.f32.mrf.mxu0
    %v4075 = vadd.f32 0.0, %v4074
    %4076 = vmatmul.bf16.gmra.mxu0 %v457
    %v4077 = vpop.f32.mrf.mxu0
    %v4078 = vadd.f32 0.0, %v4077
    %v4079 = vpop.f32.mrf.mxu0
    %v4080 = vadd.f32 0.0, %v4079
    %4081 = vmatmul.bf16.gmra.mxu0 %v458
    %v4082 = vpop.f32.mrf.mxu0
    %v4083 = vadd.f32 0.0, %v4082
    %v4084 = vpop.f32.mrf.mxu0
    %v4085 = vadd.f32 0.0, %v4084
    %4086 = vmatmul.bf16.gmra.mxu0 %v459
    %v4087 = vpop.f32.mrf.mxu0
    %v4088 = vadd.f32 0.0, %v4087
    %v4089 = vpop.f32.mrf.mxu0
    %v4090 = vadd.f32 0.0, %v4089
    %4091 = vmatmul.bf16.gmra.mxu0 %v460
    %v4092 = vpop.f32.mrf.mxu0
    %v4093 = vadd.f32 0.0, %v4092
    %v4094 = vpop.f32.mrf.mxu0
    %v4095 = vadd.f32 0.0, %v4094
    %4096 = vmatmul.bf16.gmra.mxu0 %v461
    %v4097 = vpop.f32.mrf.mxu0
    %v4098 = vadd.f32 0.0, %v4097
    %v4099 = vpop.f32.mrf.mxu0
    %v4100 = vadd.f32 0.0, %v4099
    %4101 = vdwg.mxu0
    %v4102 = vmul.f32 %v321, %v4063
    %v4103 = vmul.f32 %v326, %v4065
    %v4104 = vmul.f32 %v331, %v4068
    %v4105 = vmul.f32 %v336, %v4070
    %v4106 = vmul.f32 %v341, %v4073
    %v4107 = vmul.f32 %v346, %v4075
    %v4108 = vmul.f32 %v351, %v4078
    %v4109 = vmul.f32 %v356, %v4080
    %v4110 = vmul.f32 %v361, %v4083
    %v4111 = vmul.f32 %v366, %v4085
    %v4112 = vmul.f32 %v371, %v4088
    %v4113 = vmul.f32 %v376, %v4090
    %v4114 = vmul.f32 %v381, %v4093
    %v4115 = vmul.f32 %v386, %v4095
    %v4116 = vmul.f32 %v391, %v4098
    %v4117 = vmul.f32 %v396, %v4100
    %v4118 = vpack.c.bf16 %v4103, %v4102
    %v4119 = vpack.c.bf16 %v4105, %v4104
    %v4120 = vpack.c.bf16 %v4107, %v4106
    %v4121 = vpack.c.bf16 %v4109, %v4108
    %v4122 = vpack.c.bf16 %v4111, %v4110
    %v4123 = vpack.c.bf16 %v4113, %v4112
    %v4124 = vpack.c.bf16 %v4115, %v4114
    %v4125 = vpack.c.bf16 %v4117, %v4116
    %v4126 = vld [vmem:[#allocation12 + $0x80] sm:$0xf]
    %v4127 = vld [vmem:[#allocation12 + $0x84] sm:$0xf]
    %v4128 = vld [vmem:[#allocation12 + $0x88] sm:$0xf]
    %v4129 = vld [vmem:[#allocation12 + $0x8c] sm:$0xf]
    %v4130 = vld [vmem:[#allocation12 + $0x90] sm:$0xf]
    %v4131 = vld [vmem:[#allocation12 + $0x94] sm:$0xf]
    %v4132 = vld [vmem:[#allocation12 + $0x98] sm:$0xf]
    %v4133 = vld [vmem:[#allocation12 + $0x9c] sm:$0xf]
    %v4134 = vld [vmem:[#allocation12 + $0xa0] sm:$0xf]
    %v4135 = vld [vmem:[#allocation12 + $0xa4] sm:$0xf]
    %v4136 = vld [vmem:[#allocation12 + $0xa8] sm:$0xf]
    %v4137 = vld [vmem:[#allocation12 + $0xac] sm:$0xf]
    %v4138 = vld [vmem:[#allocation12 + $0xb0] sm:$0xf]
    %v4139 = vld [vmem:[#allocation12 + $0xb4] sm:$0xf]
    %v4140 = vld [vmem:[#allocation12 + $0xb8] sm:$0xf]
    %v4141 = vld [vmem:[#allocation12 + $0xbc] sm:$0xf]
    %v4158 = vunpack.c.l.b16 %v4126
    %v4159 = vunpack.c.l.b16 %v4127
    %v4160 = vunpack.c.l.b16 %v4128
    %v4161 = vunpack.c.l.b16 %v4129
    %v4162 = vunpack.c.l.b16 %v4130
    %v4163 = vunpack.c.l.b16 %v4131
    %v4164 = vunpack.c.l.b16 %v4132
    %v4165 = vunpack.c.l.b16 %v4133
    %v4166 = vunpack.c.l.b16 %v4134
    %v4167 = vunpack.c.l.b16 %v4135
    %v4168 = vunpack.c.l.b16 %v4136
    %v4169 = vunpack.c.l.b16 %v4137
    %v4170 = vunpack.c.l.b16 %v4138
    %v4171 = vunpack.c.l.b16 %v4139
    %v4172 = vunpack.c.l.b16 %v4140
    %v4173 = vunpack.c.l.b16 %v4141
    %v4174 = vpack.c.b16 %v4159, %v4158
    %v4175 = vpack.c.b16 %v4161, %v4160
    %v4176 = vpack.c.b16 %v4163, %v4162
    %v4177 = vpack.c.b16 %v4165, %v4164
    %v4178 = vpack.c.b16 %v4167, %v4166
    %v4179 = vpack.c.b16 %v4169, %v4168
    %v4180 = vpack.c.b16 %v4171, %v4170
    %v4181 = vpack.c.b16 %v4173, %v4172
    %4190 = vmatpush.bf16.msra.mxu0 %v4181
    %4191 = vmatpush.bf16.msra.mxu0 %v4180
    %4192 = vmatpush.bf16.msra.mxu0 %v4179
    %4193 = vmatpush.bf16.msra.mxu0 %v4178
    %4194 = vmatpush.bf16.msra.mxu0 %v4177
    %4195 = vmatpush.bf16.msra.mxu0 %v4176
    %4196 = vmatpush.bf16.msra.mxu0 %v4175
    %4197 = vmatpush.bf16.msra.mxu0 %v4174
    %4198 = vmatmul.bf16.gmra.mxu0 %v4118
    %v4199 = vpop.f32.mrf.mxu0
    %v4200 = vadd.f32 0.0, %v4199
    %v4201 = vpop.f32.mrf.mxu0
    %v4202 = vadd.f32 0.0, %v4201
    %4203 = vmatmul.bf16.gmra.mxu0 %v4119
    %v4204 = vpop.f32.mrf.mxu0
    %v4205 = vadd.f32 0.0, %v4204
    %v4206 = vpop.f32.mrf.mxu0
    %v4207 = vadd.f32 0.0, %v4206
    %4208 = vmatmul.bf16.gmra.mxu0 %v4120
    %v4209 = vpop.f32.mrf.mxu0
    %v4210 = vadd.f32 0.0, %v4209
    %v4211 = vpop.f32.mrf.mxu0
    %v4212 = vadd.f32 0.0, %v4211
    %4213 = vmatmul.bf16.gmra.mxu0 %v4121
    %v4214 = vpop.f32.mrf.mxu0
    %v4215 = vadd.f32 0.0, %v4214
    %v4216 = vpop.f32.mrf.mxu0
    %v4217 = vadd.f32 0.0, %v4216
    %4218 = vmatmul.bf16.gmra.mxu0 %v4122
    %v4219 = vpop.f32.mrf.mxu0
    %v4220 = vadd.f32 0.0, %v4219
    %v4221 = vpop.f32.mrf.mxu0
    %v4222 = vadd.f32 0.0, %v4221
    %4223 = vmatmul.bf16.gmra.mxu0 %v4123
    %v4224 = vpop.f32.mrf.mxu0
    %v4225 = vadd.f32 0.0, %v4224
    %v4226 = vpop.f32.mrf.mxu0
    %v4227 = vadd.f32 0.0, %v4226
    %4228 = vmatmul.bf16.gmra.mxu0 %v4124
    %v4229 = vpop.f32.mrf.mxu0
    %v4230 = vadd.f32 0.0, %v4229
    %v4231 = vpop.f32.mrf.mxu0
    %v4232 = vadd.f32 0.0, %v4231
    %4233 = vmatmul.bf16.gmra.mxu0 %v4125
    %v4234 = vpop.f32.mrf.mxu0
    %v4235 = vadd.f32 0.0, %v4234
    %v4236 = vpop.f32.mrf.mxu0
    %v4237 = vadd.f32 0.0, %v4236
    %4238 = vdwg.mxu0
    %v4239 = vadd.f32 %v3990, %v4200
    %v4240 = vadd.f32 %v3992, %v4202
    %v4241 = vadd.f32 %v3995, %v4205
    %v4242 = vadd.f32 %v3997, %v4207
    %v4243 = vadd.f32 %v4000, %v4210
    %v4244 = vadd.f32 %v4002, %v4212
    %v4245 = vadd.f32 %v4005, %v4215
    %v4246 = vadd.f32 %v4007, %v4217
    %v4247 = vadd.f32 %v4010, %v4220
    %v4248 = vadd.f32 %v4012, %v4222
    %v4249 = vadd.f32 %v4015, %v4225
    %v4250 = vadd.f32 %v4017, %v4227
    %v4251 = vadd.f32 %v4020, %v4230
    %v4252 = vadd.f32 %v4022, %v4232
    %v4253 = vadd.f32 %v4025, %v4235
    %v4254 = vadd.f32 %v4027, %v4237
    %v4255 = vmul.f32 %v321, %v4102
    %v4256 = vmul.f32 %v326, %v4103
    %v4257 = vmul.f32 %v331, %v4104
    %v4258 = vmul.f32 %v336, %v4105
    %v4259 = vmul.f32 %v341, %v4106
    %v4260 = vmul.f32 %v346, %v4107
    %v4261 = vmul.f32 %v351, %v4108
    %v4262 = vmul.f32 %v356, %v4109
    %v4263 = vmul.f32 %v361, %v4110
    %v4264 = vmul.f32 %v366, %v4111
    %v4265 = vmul.f32 %v371, %v4112
    %v4266 = vmul.f32 %v376, %v4113
    %v4267 = vmul.f32 %v381, %v4114
    %v4268 = vmul.f32 %v386, %v4115
    %v4269 = vmul.f32 %v391, %v4116
    %v4270 = vmul.f32 %v396, %v4117
    %v4271 = vpack.c.bf16 %v4256, %v4255
    %v4272 = vpack.c.bf16 %v4258, %v4257
    %v4273 = vpack.c.bf16 %v4260, %v4259
    %v4274 = vpack.c.bf16 %v4262, %v4261
    %v4275 = vpack.c.bf16 %v4264, %v4263
    %v4276 = vpack.c.bf16 %v4266, %v4265
    %v4277 = vpack.c.bf16 %v4268, %v4267
    %v4278 = vpack.c.bf16 %v4270, %v4269
    %4279 = vmatpush.bf16.msra.mxu0 %v4278
    %4280 = vmatpush.bf16.msra.mxu0 %v4277
    %4281 = vmatpush.bf16.msra.mxu0 %v4276
    %4282 = vmatpush.bf16.msra.mxu0 %v4275
    %4283 = vmatpush.bf16.msra.mxu0 %v4274
    %4284 = vmatpush.bf16.msra.mxu0 %v4273
    %4285 = vmatpush.bf16.msra.mxu0 %v4272
    %4286 = vmatpush.bf16.msra.mxu0 %v4271
    %4287 = vmatmul.bf16.gmra.mxu0 %v454
    %v4288 = vpop.f32.mrf.mxu0
    %v4289 = vadd.f32 0.0, %v4288
    %v4290 = vpop.f32.mrf.mxu0
    %v4291 = vadd.f32 0.0, %v4290
    %4292 = vmatmul.bf16.gmra.mxu0 %v455
    %v4293 = vpop.f32.mrf.mxu0
    %v4294 = vadd.f32 0.0, %v4293
    %v4295 = vpop.f32.mrf.mxu0
    %v4296 = vadd.f32 0.0, %v4295
    %4297 = vmatmul.bf16.gmra.mxu0 %v456
    %v4298 = vpop.f32.mrf.mxu0
    %v4299 = vadd.f32 0.0, %v4298
    %v4300 = vpop.f32.mrf.mxu0
    %v4301 = vadd.f32 0.0, %v4300
    %4302 = vmatmul.bf16.gmra.mxu0 %v457
    %v4303 = vpop.f32.mrf.mxu0
    %v4304 = vadd.f32 0.0, %v4303
    %v4305 = vpop.f32.mrf.mxu0
    %v4306 = vadd.f32 0.0, %v4305
    %4307 = vmatmul.bf16.gmra.mxu0 %v458
    %v4308 = vpop.f32.mrf.mxu0
    %v4309 = vadd.f32 0.0, %v4308
    %v4310 = vpop.f32.mrf.mxu0
    %v4311 = vadd.f32 0.0, %v4310
    %4312 = vmatmul.bf16.gmra.mxu0 %v459
    %v4313 = vpop.f32.mrf.mxu0
    %v4314 = vadd.f32 0.0, %v4313
    %v4315 = vpop.f32.mrf.mxu0
    %v4316 = vadd.f32 0.0, %v4315
    %4317 = vmatmul.bf16.gmra.mxu0 %v460
    %v4318 = vpop.f32.mrf.mxu0
    %v4319 = vadd.f32 0.0, %v4318
    %v4320 = vpop.f32.mrf.mxu0
    %v4321 = vadd.f32 0.0, %v4320
    %4322 = vmatmul.bf16.gmra.mxu0 %v461
    %v4323 = vpop.f32.mrf.mxu0
    %v4324 = vadd.f32 0.0, %v4323
    %v4325 = vpop.f32.mrf.mxu0
    %v4326 = vadd.f32 0.0, %v4325
    %4327 = vdwg.mxu0
    %v4328 = vmul.f32 %v321, %v4289
    %v4329 = vmul.f32 %v326, %v4291
    %v4330 = vmul.f32 %v331, %v4294
    %v4331 = vmul.f32 %v336, %v4296
    %v4332 = vmul.f32 %v341, %v4299
    %v4333 = vmul.f32 %v346, %v4301
    %v4334 = vmul.f32 %v351, %v4304
    %v4335 = vmul.f32 %v356, %v4306
    %v4336 = vmul.f32 %v361, %v4309
    %v4337 = vmul.f32 %v366, %v4311
    %v4338 = vmul.f32 %v371, %v4314
    %v4339 = vmul.f32 %v376, %v4316
    %v4340 = vmul.f32 %v381, %v4319
    %v4341 = vmul.f32 %v386, %v4321
    %v4342 = vmul.f32 %v391, %v4324
    %v4343 = vmul.f32 %v396, %v4326
    %v4344 = vpack.c.bf16 %v4329, %v4328
    %v4345 = vpack.c.bf16 %v4331, %v4330
    %v4346 = vpack.c.bf16 %v4333, %v4332
    %v4347 = vpack.c.bf16 %v4335, %v4334
    %v4348 = vpack.c.bf16 %v4337, %v4336
    %v4349 = vpack.c.bf16 %v4339, %v4338
    %v4350 = vpack.c.bf16 %v4341, %v4340
    %v4351 = vpack.c.bf16 %v4343, %v4342
    %v4352 = vld [vmem:[#allocation12 + $0xc0] sm:$0xf]
    %v4353 = vld [vmem:[#allocation12 + $0xc4] sm:$0xf]
    %v4354 = vld [vmem:[#allocation12 + $0xc8] sm:$0xf]
    %v4355 = vld [vmem:[#allocation12 + $0xcc] sm:$0xf]
    %v4356 = vld [vmem:[#allocation12 + $0xd0] sm:$0xf]
    %v4357 = vld [vmem:[#allocation12 + $0xd4] sm:$0xf]
    %v4358 = vld [vmem:[#allocation12 + $0xd8] sm:$0xf]
    %v4359 = vld [vmem:[#allocation12 + $0xdc] sm:$0xf]
    %v4360 = vld [vmem:[#allocation12 + $0xe0] sm:$0xf]
    %v4361 = vld [vmem:[#allocation12 + $0xe4] sm:$0xf]
    %v4362 = vld [vmem:[#allocation12 + $0xe8] sm:$0xf]
    %v4363 = vld [vmem:[#allocation12 + $0xec] sm:$0xf]
    %v4364 = vld [vmem:[#allocation12 + $0xf0] sm:$0xf]
    %v4365 = vld [vmem:[#allocation12 + $0xf4] sm:$0xf]
    %v4366 = vld [vmem:[#allocation12 + $0xf8] sm:$0xf]
    %v4367 = vld [vmem:[#allocation12 + $0xfc] sm:$0xf]
    %v4384 = vunpack.c.l.b16 %v4352
    %v4385 = vunpack.c.l.b16 %v4353
    %v4386 = vunpack.c.l.b16 %v4354
    %v4387 = vunpack.c.l.b16 %v4355
    %v4388 = vunpack.c.l.b16 %v4356
    %v4389 = vunpack.c.l.b16 %v4357
    %v4390 = vunpack.c.l.b16 %v4358
    %v4391 = vunpack.c.l.b16 %v4359
    %v4392 = vunpack.c.l.b16 %v4360
    %v4393 = vunpack.c.l.b16 %v4361
    %v4394 = vunpack.c.l.b16 %v4362
    %v4395 = vunpack.c.l.b16 %v4363
    %v4396 = vunpack.c.l.b16 %v4364
    %v4397 = vunpack.c.l.b16 %v4365
    %v4398 = vunpack.c.l.b16 %v4366
    %v4399 = vunpack.c.l.b16 %v4367
    %v4400 = vpack.c.b16 %v4385, %v4384
    %v4401 = vpack.c.b16 %v4387, %v4386
    %v4402 = vpack.c.b16 %v4389, %v4388
    %v4403 = vpack.c.b16 %v4391, %v4390
    %v4404 = vpack.c.b16 %v4393, %v4392
    %v4405 = vpack.c.b16 %v4395, %v4394
    %v4406 = vpack.c.b16 %v4397, %v4396
    %v4407 = vpack.c.b16 %v4399, %v4398
    %4416 = vmatpush.bf16.msra.mxu0 %v4407
    %4417 = vmatpush.bf16.msra.mxu0 %v4406
    %4418 = vmatpush.bf16.msra.mxu0 %v4405
    %4419 = vmatpush.bf16.msra.mxu0 %v4404
    %4420 = vmatpush.bf16.msra.mxu0 %v4403
    %4421 = vmatpush.bf16.msra.mxu0 %v4402
    %4422 = vmatpush.bf16.msra.mxu0 %v4401
    %4423 = vmatpush.bf16.msra.mxu0 %v4400
    %4424 = vmatmul.bf16.gmra.mxu0 %v4344
    %v4425 = vpop.f32.mrf.mxu0
    %v4426 = vadd.f32 0.0, %v4425
    %v4427 = vpop.f32.mrf.mxu0
    %v4428 = vadd.f32 0.0, %v4427
    %4429 = vmatmul.bf16.gmra.mxu0 %v4345
    %v4430 = vpop.f32.mrf.mxu0
    %v4431 = vadd.f32 0.0, %v4430
    %v4432 = vpop.f32.mrf.mxu0
    %v4433 = vadd.f32 0.0, %v4432
    %4434 = vmatmul.bf16.gmra.mxu0 %v4346
    %v4435 = vpop.f32.mrf.mxu0
    %v4436 = vadd.f32 0.0, %v4435
    %v4437 = vpop.f32.mrf.mxu0
    %v4438 = vadd.f32 0.0, %v4437
    %4439 = vmatmul.bf16.gmra.mxu0 %v4347
    %v4440 = vpop.f32.mrf.mxu0
    %v4441 = vadd.f32 0.0, %v4440
    %v4442 = vpop.f32.mrf.mxu0
    %v4443 = vadd.f32 0.0, %v4442
    %4444 = vmatmul.bf16.gmra.mxu0 %v4348
    %v4445 = vpop.f32.mrf.mxu0
    %v4446 = vadd.f32 0.0, %v4445
    %v4447 = vpop.f32.mrf.mxu0
    %v4448 = vadd.f32 0.0, %v4447
    %4449 = vmatmul.bf16.gmra.mxu0 %v4349
    %v4450 = vpop.f32.mrf.mxu0
    %v4451 = vadd.f32 0.0, %v4450
    %v4452 = vpop.f32.mrf.mxu0
    %v4453 = vadd.f32 0.0, %v4452
    %4454 = vmatmul.bf16.gmra.mxu0 %v4350
    %v4455 = vpop.f32.mrf.mxu0
    %v4456 = vadd.f32 0.0, %v4455
    %v4457 = vpop.f32.mrf.mxu0
    %v4458 = vadd.f32 0.0, %v4457
    %4459 = vmatmul.bf16.gmra.mxu0 %v4351
    %v4460 = vpop.f32.mrf.mxu0
    %v4461 = vadd.f32 0.0, %v4460
    %v4462 = vpop.f32.mrf.mxu0
    %v4463 = vadd.f32 0.0, %v4462
    %4464 = vdwg.mxu0
    %v4465 = vadd.f32 %v4239, %v4426
    %v4466 = vadd.f32 %v4240, %v4428
    %v4467 = vadd.f32 %v4241, %v4431
    %v4468 = vadd.f32 %v4242, %v4433
    %v4469 = vadd.f32 %v4243, %v4436
    %v4470 = vadd.f32 %v4244, %v4438
    %v4471 = vadd.f32 %v4245, %v4441
    %v4472 = vadd.f32 %v4246, %v4443
    %v4473 = vadd.f32 %v4247, %v4446
    %v4474 = vadd.f32 %v4248, %v4448
    %v4475 = vadd.f32 %v4249, %v4451
    %v4476 = vadd.f32 %v4250, %v4453
    %v4477 = vadd.f32 %v4251, %v4456
    %v4478 = vadd.f32 %v4252, %v4458
    %v4479 = vadd.f32 %v4253, %v4461
    %v4480 = vadd.f32 %v4254, %v4463
    %v4481 = vld [vmem:[%s13] sm:$0x1]
    %v4483 = vperm.slane %v4481, 0
    %v4485 = vadd.f32 %v4465, %v4483
    %v4486 = vadd.f32 %v4466, %v4483
    %v4487 = vadd.f32 %v4467, %v4483
    %v4488 = vadd.f32 %v4468, %v4483
    %v4489 = vadd.f32 %v4469, %v4483
    %v4490 = vadd.f32 %v4470, %v4483
    %v4491 = vadd.f32 %v4471, %v4483
    %v4492 = vadd.f32 %v4472, %v4483
    %v4493 = vadd.f32 %v4473, %v4483
    %v4494 = vadd.f32 %v4474, %v4483
    %v4495 = vadd.f32 %v4475, %v4483
    %v4496 = vadd.f32 %v4476, %v4483
    %v4497 = vadd.f32 %v4477, %v4483
    %v4498 = vadd.f32 %v4478, %v4483
    %v4499 = vadd.f32 %v4479, %v4483
    %v4500 = vadd.f32 %v4480, %v4483
    %v4501 = vmax.f32 %v4485, 0.0
    %v4502 = vmax.f32 %v4486, 0.0
    %v4503 = vmax.f32 %v4487, 0.0
    %v4504 = vmax.f32 %v4488, 0.0
    %v4505 = vmax.f32 %v4489, 0.0
    %v4506 = vmax.f32 %v4490, 0.0
    %v4507 = vmax.f32 %v4491, 0.0
    %v4508 = vmax.f32 %v4492, 0.0
    %v4509 = vmax.f32 %v4493, 0.0
    %v4510 = vmax.f32 %v4494, 0.0
    %v4511 = vmax.f32 %v4495, 0.0
    %v4512 = vmax.f32 %v4496, 0.0
    %v4513 = vmax.f32 %v4497, 0.0
    %v4514 = vmax.f32 %v4498, 0.0
    %v4515 = vmax.f32 %v4499, 0.0
    %v4516 = vmax.f32 %v4500, 0.0
    %v4517 = vld [vmem:[%s3] sm:$0x1]
    %4518 = vmatpush.msra.mxu0 %v4516
    %4519 = vmatpush.msra.mxu0 %v4515
    %4520 = vmatpush.msra.mxu0 %v4514
    %4521 = vmatpush.msra.mxu0 %v4513
    %4522 = vmatpush.msra.mxu0 %v4512
    %4523 = vmatpush.msra.mxu0 %v4511
    %4524 = vmatpush.msra.mxu0 %v4510
    %4525 = vmatpush.msra.mxu0 %v4509
    %4526 = vmatpush.msra.mxu0 %v4508
    %4527 = vmatpush.msra.mxu0 %v4507
    %4528 = vmatpush.msra.mxu0 %v4506
    %4529 = vmatpush.msra.mxu0 %v4505
    %4530 = vmatpush.msra.mxu0 %v4504
    %4531 = vmatpush.msra.mxu0 %v4503
    %4532 = vmatpush.msra.mxu0 %v4502
    %4533 = vmatpush.msra.mxu0 %v4501
    %4534 = vmatmul.f32.gmra.mxu0 %v4517
    %v4535 = vpop.f32.mrf.mxu0
    %v4536 = vadd.f32 0.0, %v4535
    %4537 = vdwg.mxu0
    %v4538 = vld [vmem:[%s14] sm:$0xff]
    %v4539 = vld [vmem:[%s14 + $0x8] sm:$0xff]
    %v4540 = vld [vmem:[%s14 + $0x10] sm:$0xff]
    %v4541 = vld [vmem:[%s14 + $0x18] sm:$0xff]
    %v4542 = vld [vmem:[%s14 + $0x20] sm:$0xff]
    %v4543 = vld [vmem:[%s14 + $0x28] sm:$0xff]
    %v4544 = vld [vmem:[%s14 + $0x30] sm:$0xff]
    %v4545 = vld [vmem:[%s14 + $0x38] sm:$0xff]
    %v4546 = vld [vmem:[%s14 + $0x40] sm:$0xff]
    %v4547 = vld [vmem:[%s14 + $0x48] sm:$0xff]
    %v4548 = vld [vmem:[%s14 + $0x50] sm:$0xff]
    %v4549 = vld [vmem:[%s14 + $0x58] sm:$0xff]
    %v4550 = vld [vmem:[%s14 + $0x60] sm:$0xff]
    %v4551 = vld [vmem:[%s14 + $0x68] sm:$0xff]
    %v4552 = vld [vmem:[%s14 + $0x70] sm:$0xff]
    %v4553 = vld [vmem:[%s14 + $0x78] sm:$0xff]
    %v4554 = vld [vmem:[#allocation2] sm:$0x1]
    %4555 = vmatpush.msra.mxu0 %v4553
    %4556 = vmatpush.msra.mxu0 %v4552
    %4557 = vmatpush.msra.mxu0 %v4551
    %4558 = vmatpush.msra.mxu0 %v4550
    %4559 = vmatpush.msra.mxu0 %v4549
    %4560 = vmatpush.msra.mxu0 %v4548
    %4561 = vmatpush.msra.mxu0 %v4547
    %4562 = vmatpush.msra.mxu0 %v4546
    %4563 = vmatpush.msra.mxu0 %v4545
    %4564 = vmatpush.msra.mxu0 %v4544
    %4565 = vmatpush.msra.mxu0 %v4543
    %4566 = vmatpush.msra.mxu0 %v4542
    %4567 = vmatpush.msra.mxu0 %v4541
    %4568 = vmatpush.msra.mxu0 %v4540
    %4569 = vmatpush.msra.mxu0 %v4539
    %4570 = vmatpush.msra.mxu0 %v4538
    %4571 = vmatmul.f32.gmra.mxu0 %v4536
    %v4572 = vpop.f32.mrf.mxu0
    %v4573 = vadd.f32 %v4554, %v4572
    %4574 = vdwg.mxu0
    %vm4575 = vcmask 0
    %4576 = vst.msk [vmem:[#allocation14] sm:$0x1] %vm4575, %v4573
    // Predicated region
    $region90: #{tpu_custom_call.1} parent=1 // pred_check
      _
    $region91: #{tpu_custom_call.1} parent=1 // pred_check_branch
      %4578 = sbr.rel (0) target = $region93
    $region92: #{tpu_custom_call.1} parent=1 // pred_region
      %4580 = vsyncadd [#allocation5], 0
      %s4582 = sshll.u32 [#allocation14], 4
      %s4583 = int_to_ptr.vmem [resolvable:$true] %s4582
      %s4584 = sshll.u32 %s16, 4
      %s4585 = int_to_ptr.hbm [resolvable:$true] %s4584
      %4587 = dma.vmem_to_hbm [thread:$0]  %s4583, 16, %s4585, [#allocation5]
    $region93: #{tpu_custom_call.1} parent=1 // pred_fallthru
      _
    // Predicated region
    $region94: #{tpu_custom_call.1} parent=1 // pred_check
      _
    $region95: #{tpu_custom_call.1} parent=1 // pred_check_branch
      %4589 = sbr.rel (0) target = $region97
    $region96: #{tpu_custom_call.1} parent=1 // pred_region
      %4591 = dma.done [#allocation5], 16
    $region97: #{tpu_custom_call.1} parent=1 // pred_fallthru
      _
    %4592 = vsyncpa [#allocation4], 1
    %4593 = vsyncpa [#allocation7], 1
    %4594 = vsyncpa [#allocation10], 1
    %4595 = vsyncpa [#allocation13], 1
    %4596 = vsyncpa [#allocation5], 1

</llo_original>
